<compile_context>
chip_gen: v7x
topology: tpu7x:2x2x1
jax: 0.10.0
libtpu: 0.0.40
codegen_flags: <defaults>
</compile_context>

<pallas_src>
import math

import jax
import jax.numpy as jnp
from jax.experimental import pallas as pl
from jax.experimental.pallas import tpu as pltpu

# ----------------------------- config (small, roberta-like) ------------------
VOCAB = 100
HIDDEN = 128         # stands in for 768 (kept lane-dense: multiple of 128)
N_HEADS = 4          # stands in for 12
HEAD_DIM = HIDDEN // N_HEADS
FFN = 256            # stands in for 3072
N_LAYERS = 2         # stands in for 12
MAX_POS = 64
TYPE_VOCAB = 2
NUM_CLASSES = 2
LOGIT_PAD = 128      # lane-dense logits slab; sliced to NUM_CLASSES in wrapper
LN_EPS = 1e-5
PAD_IDX = 1          # roberta padding idx / position offset

BATCH = 2
SEQ = 8
TOKENS = BATCH * SEQ


# ----------------------------- helpers ----------------------------------------
def _ln(x, g, b):
    """LayerNorm over last axis (x already contains any fused residual add)."""
    mu = jnp.mean(x, axis=-1, keepdims=True)
    var = jnp.mean((x - mu) * (x - mu), axis=-1, keepdims=True)
    return (x - mu) * jax.lax.rsqrt(var + LN_EPS) * g + b


def _gelu(x):
    # TODO(synk): exact erf-GELU (HF Roberta) if/when erf lowering is available;
    # tanh approximation used here.
    c = 0.7978845608028654  # sqrt(2/pi)
    return 0.5 * x * (1.0 + jnp.tanh(c * (x + 0.044715 * x * x * x)))


# ----------------------------- fused encoder + head kernel --------------------
def _roberta_kernel(x0_ref, mask_ref,
                    wqkv_ref, bqkv_ref, wo_ref, bo_ref, g1_ref, be1_ref,
                    w1_ref, bf1_ref, w2_ref, bf2_ref, g2_ref, be2_ref,
                    pw_ref, pb_ref, cw_ref, cb_ref,
                    logits_ref, xc_ref):
    l = pl.program_id(0)

    # Seed the VMEM-resident bf16 carry with the (already LayerNorm'd) embeddings.
    @pl.when(l == 0)
    def _():
        xc_ref[...] = x0_ref[...]

    x = xc_ref[...]                                  # [T, H] bf16 carry (VMEM)
    mask = mask_ref[...]                             # [B, 1, S] additive key mask

    # ---- merged QKV projection: one [T,H]x[H,3H] bf16 MXU pass; cast once ----
    qkv = (jnp.dot(x, wqkv_ref[0], preferred_element_type=jnp.float32)
           + bqkv_ref[0]).astype(jnp.bfloat16)       # [T, 3H] bf16

    # lane-aligned 128-wide q/k/v split (free); heads sliced at HEAD_DIM lanes.
    q_all = qkv[:, :HIDDEN]
    k_all = qkv[:, HIDDEN:2 * HIDDEN]
    v_all = qkv[:, 2 * HIDDEN:]

    scale = 1.0 / math.sqrt(HEAD_DIM)
    ctx_parts = []
    for h in range(N_HEADS):                         # static unroll (N_HEADS small)
        lo = h * HEAD_DIM
        qh = q_all[:, lo:lo + HEAD_DIM].reshape(BATCH, SEQ, HEAD_DIM)
        kh = k_all[:, lo:lo + HEAD_DIM].reshape(BATCH, SEQ, HEAD_DIM)
        vh = v_all[:, lo:lo + HEAD_DIM].reshape(BATCH, SEQ, HEAD_DIM)
        s = jnp.einsum("bqd,bkd->bqk", qh, kh,
                       preferred_element_type=jnp.float32) * scale
        s = s + mask                                 # broadcast over query rows
        s = s - jnp.max(s, axis=-1, keepdims=True)
        p = jnp.exp(s)
        p = p * pl.reciprocal(jnp.sum(p, axis=-1, keepdims=True), approx=True)
        ctx_parts.append(
            jnp.einsum("bqk,bkd->bqd", p.astype(jnp.bfloat16), vh,
                       preferred_element_type=jnp.float32))
    # context assembled token-major, lane-dense [T, H]
    ctx = jnp.concatenate(ctx_parts, axis=-1).reshape(TOKENS, HIDDEN)

    # ---- output projection + fused residual + LN1 (stats in f32) ----
    attn = jnp.dot(ctx.astype(jnp.bfloat16), wo_ref[0],
                   preferred_element_type=jnp.float32) + bo_ref[0]
    y = _ln(x.astype(jnp.float32) + attn, g1_ref[0], be1_ref[0])

    # ---- FFN (w1 -> GELU -> w2) + fused residual + LN2 ----
    hh = jnp.dot(y.astype(jnp.bfloat16), w1_ref[0],
                 preferred_element_type=jnp.float32) + bf1_ref[0]
    hh = _gelu(hh)
    hh = jnp.dot(hh.astype(jnp.bfloat16), w2_ref[0],
                 preferred_element_type=jnp.float32) + bf2_ref[0]
    out = _ln(y + hh, g2_ref[0], be2_ref[0])         # [T, H] f32

    xc_ref[...] = out.astype(jnp.bfloat16)           # bf16 carry to next layer

    # ---- classification head fused into the final grid step ----
    @pl.when(l == N_LAYERS - 1)
    def _():
        pooled = out.reshape(BATCH, SEQ, HIDDEN)[:, 0, :].astype(jnp.bfloat16)  # CLS
        hcls = jnp.dot(pooled, pw_ref[...],
                       preferred_element_type=jnp.float32) + pb_ref[...]
        hcls = jnp.maximum(hcls, 0.0)                # ReLU; Dropout(0.1) = identity (eval)
        logits_ref[...] = (jnp.dot(hcls.astype(jnp.bfloat16), cw_ref[...],
                                   preferred_element_type=jnp.float32)
                           + cb_ref[...]).astype(logits_ref.dtype)


def roberta_fused_forward(x0_bf16, add_mask, params):
    T, H = x0_bf16.shape
    logits_slab = pl.pallas_call(
        _roberta_kernel,
        out_shape=jax.ShapeDtypeStruct((BATCH, LOGIT_PAD), jnp.float32),
        grid=(N_LAYERS,),
        in_specs=[
            pl.BlockSpec((T, H), lambda l: (0, 0)),                 # emb (post-LN, bf16)
            pl.BlockSpec((BATCH, 1, SEQ), lambda l: (0, 0, 0)),     # additive key mask
            pl.BlockSpec((1, H, 3 * H), lambda l: (l, 0, 0)),       # merged w_qkv (bf16)
            pl.BlockSpec((1, 1, 3 * H), lambda l: (l, 0, 0)),       # b_qkv
            pl.BlockSpec((1, H, H), lambda l: (l, 0, 0)),           # w_o (bf16)
            pl.BlockSpec((1, 1, H), lambda l: (l, 0, 0)),           # b_o
            pl.BlockSpec((1, 1, H), lambda l: (l, 0, 0)),           # ln1 gamma
            pl.BlockSpec((1, 1, H), lambda l: (l, 0, 0)),           # ln1 beta
            pl.BlockSpec((1, H, FFN), lambda l: (l, 0, 0)),         # w1 (bf16)
            pl.BlockSpec((1, 1, FFN), lambda l: (l, 0, 0)),         # b1
            pl.BlockSpec((1, FFN, H), lambda l: (l, 0, 0)),         # w2 (bf16)
            pl.BlockSpec((1, 1, H), lambda l: (l, 0, 0)),           # b2
            pl.BlockSpec((1, 1, H), lambda l: (l, 0, 0)),           # ln2 gamma
            pl.BlockSpec((1, 1, H), lambda l: (l, 0, 0)),           # ln2 beta
            pl.BlockSpec((H, H), lambda l: (0, 0)),                 # pre_classifier W (bf16)
            pl.BlockSpec((1, H), lambda l: (0, 0)),                 # pre_classifier b
            pl.BlockSpec((H, LOGIT_PAD), lambda l: (0, 0)),         # classifier W (padded, bf16)
            pl.BlockSpec((1, LOGIT_PAD), lambda l: (0, 0)),         # classifier b (padded)
        ],
        out_specs=pl.BlockSpec((BATCH, LOGIT_PAD), lambda l: (0, 0)),
        scratch_shapes=[pltpu.VMEM((T, H), jnp.bfloat16)],          # layer-to-layer carry
        compiler_params=pltpu.CompilerParams(
            dimension_semantics=("arbitrary",),                     # sequential over layers
            vmem_limit_bytes=32 * 1024 * 1024),
    )(x0_bf16, add_mask,
      params["w_qkv"], params["b_qkv"],
      params["w_o"], params["b_o"],
      params["ln1_g"], params["ln1_b"],
      params["w1"], params["b1"],
      params["w2"], params["b2"],
      params["ln2_g"], params["ln2_b"],
      params["pre_w"], params["pre_b"],
      params["cls_w_pad"], params["cls_b_pad"])
    return logits_slab[:, :NUM_CLASSES]


# ----------------------------- parameters ------------------------------------
def init_params(key):
    keys = iter(jax.random.split(key, 3 + 6 * N_LAYERS + 2))

    def nrm(shape):
        return 0.02 * jax.random.normal(next(keys), shape, jnp.float32)

    w_qkv, w_o, w1, w2 = [], [], [], []
    for _ in range(N_LAYERS):
        wq, wk, wv = nrm((HIDDEN, HIDDEN)), nrm((HIDDEN, HIDDEN)), nrm((HIDDEN, HIDDEN))
        w_qkv.append(jnp.concatenate([wq, wk, wv], axis=1))        # merged QKV [H, 3H]
        w_o.append(nrm((HIDDEN, HIDDEN)))
        w1.append(nrm((HIDDEN, FFN)))
        w2.append(nrm((FFN, HIDDEN)))

    cls_w = nrm((HIDDEN, NUM_CLASSES))
    cls_w_pad = jnp.zeros((HIDDEN, LOGIT_PAD), jnp.float32).at[:, :NUM_CLASSES].set(cls_w)

    L = N_LAYERS
    return {
        # embeddings (f32, gathered + LayerNorm'd in plain XLA in the wrapper)
        "word_emb": nrm((VOCAB, HIDDEN)),
        "pos_emb": nrm((MAX_POS, HIDDEN)),
        "type_emb": nrm((TYPE_VOCAB, HIDDEN)),
        "emb_ln_g": jnp.ones((1, HIDDEN), jnp.float32),
        "emb_ln_b": jnp.zeros((1, HIDDEN), jnp.float32),
        # encoder weights: MXU operands bf16, biases / LN params f32
        "w_qkv": jnp.stack(w_qkv).astype(jnp.bfloat16),            # [L, H, 3H]
        "b_qkv": jnp.zeros((L, 1, 3 * HIDDEN), jnp.float32),
        "w_o": jnp.stack(w_o).astype(jnp.bfloat16),                # [L, H, H]
        "b_o": jnp.zeros((L, 1, HIDDEN), jnp.float32),
        "ln1_g": jnp.ones((L, 1, HIDDEN), jnp.float32),
        "ln1_b": jnp.zeros((L, 1, HIDDEN), jnp.float32),
        "w1": jnp.stack(w1).astype(jnp.bfloat16),                  # [L, H, F]
        "b1": jnp.zeros((L, 1, FFN), jnp.float32),
        "w2": jnp.stack(w2).astype(jnp.bfloat16),                  # [L, F, H]
        "b2": jnp.zeros((L, 1, HIDDEN), jnp.float32),
        "ln2_g": jnp.ones((L, 1, HIDDEN), jnp.float32),
        "ln2_b": jnp.zeros((L, 1, HIDDEN), jnp.float32),
        # classification head (exactly as in RobertaClass); classifier padded lane-dense
        "pre_w": nrm((HIDDEN, HIDDEN)).astype(jnp.bfloat16),
        "pre_b": jnp.zeros((1, HIDDEN), jnp.float32),
        "cls_w_pad": cls_w_pad.astype(jnp.bfloat16),               # [H, 128], cols >=2 are zero
        "cls_b_pad": jnp.zeros((1, LOGIT_PAD), jnp.float32),
    }


# ----------------------------- forward ----------------------------------------
def roberta_class_forward(params, input_ids, attention_mask, token_type_ids):
    B, S = input_ids.shape

    # HF create_position_ids_from_input_ids: positions from non-pad tokens.
    pad_mask = (input_ids != PAD_IDX).astype(jnp.int32)
    pos_ids = jnp.cumsum(pad_mask, axis=1) * pad_mask + PAD_IDX
    pos_ids = jnp.minimum(pos_ids, MAX_POS - 1)

    emb = (params["word_emb"][input_ids]
           + params["pos_emb"][pos_ids]
           + params["type_emb"][token_type_ids]).reshape(B * S, HIDDEN)

    # Embedding LayerNorm in XLA (one-time op) -> bf16 seed for the kernel carry.
    mu = jnp.mean(emb, axis=-1, keepdims=True)
    var = jnp.mean((emb - mu) * (emb - mu), axis=-1, keepdims=True)
    emb = (emb - mu) * jax.lax.rsqrt(var + LN_EPS) * params["emb_ln_g"] + params["emb_ln_b"]
    x0 = emb.astype(jnp.bfloat16)

    add_mask = ((1.0 - attention_mask.astype(jnp.float32)) * -1e9).reshape(B, 1, S)

    # whole model (N transformer layers + classification head) in ONE pallas_call.
    return roberta_fused_forward(x0, add_mask, params)            # [B, 2]


# ----------------------------- main -------------------------------------------
if __name__ == "__main__":
    key = jax.random.PRNGKey(0)
    k_param, k_ids = jax.random.split(key)

    params = init_params(k_param)
    input_ids = jax.random.randint(k_ids, (BATCH, SEQ), 2, VOCAB, dtype=jnp.int32)
    attention_mask = jnp.ones((BATCH, SEQ), dtype=jnp.int32)
    token_type_ids = jnp.zeros((BATCH, SEQ), dtype=jnp.int32)

    forward = jax.jit(roberta_class_forward)
    logits = forward(params, input_ids, attention_mask, token_type_ids)
    logits = jax.block_until_ready(logits)
    assert logits.shape == (BATCH, NUM_CLASSES)
    print("KERNEL_OK")
</pallas_src>

<mosaic_0001>
module attributes {stable_mosaic.version = 11 : i64} {
  func.func @_roberta_kernel(%arg0: i32, %arg1: memref<16x128xbf16, #tpu.memory_space<vmem>>, %arg2: memref<2x1x8xf32, #tpu.memory_space<vmem>>, %arg3: memref<1x128x384xbf16, #tpu.memory_space<vmem>>, %arg4: memref<1x1x384xf32, #tpu.memory_space<vmem>>, %arg5: memref<1x128x128xbf16, #tpu.memory_space<vmem>>, %arg6: memref<1x1x128xf32, #tpu.memory_space<vmem>>, %arg7: memref<1x1x128xf32, #tpu.memory_space<vmem>>, %arg8: memref<1x1x128xf32, #tpu.memory_space<vmem>>, %arg9: memref<1x128x256xbf16, #tpu.memory_space<vmem>>, %arg10: memref<1x1x256xf32, #tpu.memory_space<vmem>>, %arg11: memref<1x256x128xbf16, #tpu.memory_space<vmem>>, %arg12: memref<1x1x128xf32, #tpu.memory_space<vmem>>, %arg13: memref<1x1x128xf32, #tpu.memory_space<vmem>>, %arg14: memref<1x1x128xf32, #tpu.memory_space<vmem>>, %arg15: memref<128x128xbf16, #tpu.memory_space<vmem>>, %arg16: memref<1x128xf32, #tpu.memory_space<vmem>>, %arg17: memref<128x128xbf16, #tpu.memory_space<vmem>>, %arg18: memref<1x128xf32, #tpu.memory_space<vmem>>, %arg19: memref<2x128xf32, #tpu.memory_space<vmem>>, %arg20: memref<16x128xbf16, #tpu.memory_space<vmem>>) attributes {dimension_semantics = [#tpu.dimension_semantics<arbitrary>], iteration_bounds = array<i64: 2>, scalar_prefetch = 0 : i64, scratch_operands = 1 : i64, tpu.core_type = #tpu.core_type<tc>, window_params = [{pipeline_mode = #tpu.pipeline_mode<synchronous>, transform_indices = @transform_0, window_bounds = array<i64: 16, 128>}, {pipeline_mode = #tpu.pipeline_mode<synchronous>, transform_indices = @transform_1, window_bounds = array<i64: 2, 1, 8>}, {transform_indices = @transform_2, window_bounds = array<i64: 1, 128, 384>}, {transform_indices = @transform_3, window_bounds = array<i64: 1, 1, 384>}, {transform_indices = @transform_4, window_bounds = array<i64: 1, 128, 128>}, {transform_indices = @transform_5, window_bounds = array<i64: 1, 1, 128>}, {transform_indices = @transform_6, window_bounds = array<i64: 1, 1, 128>}, {transform_indices = @transform_7, window_bounds = array<i64: 1, 1, 128>}, {transform_indices = @transform_8, window_bounds = array<i64: 1, 128, 256>}, {transform_indices = @transform_9, window_bounds = array<i64: 1, 1, 256>}, {transform_indices = @transform_10, window_bounds = array<i64: 1, 256, 128>}, {transform_indices = @transform_11, window_bounds = array<i64: 1, 1, 128>}, {transform_indices = @transform_12, window_bounds = array<i64: 1, 1, 128>}, {transform_indices = @transform_13, window_bounds = array<i64: 1, 1, 128>}, {pipeline_mode = #tpu.pipeline_mode<synchronous>, transform_indices = @transform_14, window_bounds = array<i64: 128, 128>}, {pipeline_mode = #tpu.pipeline_mode<synchronous>, transform_indices = @transform_15, window_bounds = array<i64: 1, 128>}, {pipeline_mode = #tpu.pipeline_mode<synchronous>, transform_indices = @transform_16, window_bounds = array<i64: 128, 128>}, {pipeline_mode = #tpu.pipeline_mode<synchronous>, transform_indices = @transform_17, window_bounds = array<i64: 1, 128>}, {pipeline_mode = #tpu.pipeline_mode<synchronous>, transform_indices = @transform_18, window_bounds = array<i64: 2, 128>}]} {
    %c0_i32 = arith.constant 0 : i32
    %0 = arith.cmpi eq, %arg0, %c0_i32 : i32
    %1 = arith.extui %0 : i1 to i32
    %c0_i32_0 = arith.constant 0 : i32
    %2 = arith.cmpi ne, %1, %c0_i32_0 : i32
    scf.if %2 {
      %c0_81 = arith.constant 0 : index
      %c0_82 = arith.constant 0 : index
      %211 = vector.load %arg1[%c0_81, %c0_82] : memref<16x128xbf16, #tpu.memory_space<vmem>>, vector<16x128xbf16>
      %c0_83 = arith.constant 0 : index
      %c0_84 = arith.constant 0 : index
      %212 = vector.load %arg20[%c0_83, %c0_84] : memref<16x128xbf16, #tpu.memory_space<vmem>>, vector<16x128xbf16>
      tpu.vector_store %arg20[%c0_83, %c0_84], %211 {strides = array<i32>} : memref<16x128xbf16, #tpu.memory_space<vmem>>, vector<16x128xbf16>,
    } else {
    }
    %c0 = arith.constant 0 : index
    %c0_1 = arith.constant 0 : index
    %3 = vector.load %arg20[%c0, %c0_1] : memref<16x128xbf16, #tpu.memory_space<vmem>>, vector<16x128xbf16>
    %c0_2 = arith.constant 0 : index
    %c0_3 = arith.constant 0 : index
    %c0_4 = arith.constant 0 : index
    %4 = vector.load %arg2[%c0_2, %c0_3, %c0_4] : memref<2x1x8xf32, #tpu.memory_space<vmem>>, vector<2x1x8xf32>
    %c0_5 = arith.constant 0 : index
    %c0_6 = arith.constant 0 : index
    %c0_7 = arith.constant 0 : index
    %5 = vector.load %arg3[%c0_5, %c0_6, %c0_7] : memref<1x128x384xbf16, #tpu.memory_space<vmem>>, vector<1x128x384xbf16>
    %6 = vector.shape_cast %5 : vector<1x128x384xbf16> to vector<128x384xbf16>
    %cst = arith.constant dense<0.000000e+00> : vector<16x384xf32>
    %7 = tpu.matmul %3, %6, %cst {dimension_numbers = #tpu.dot_dimension_numbers<[1], [0], [0], [1], [0, 0, 1, 1], [], []>} : vector<16x128xbf16>, vector<128x384xbf16>, vector<16x384xf32> -> vector<16x384xf32>
    %c0_8 = arith.constant 0 : index
    %c0_9 = arith.constant 0 : index
    %c0_10 = arith.constant 0 : index
    %8 = vector.load %arg4[%c0_8, %c0_9, %c0_10] : memref<1x1x384xf32, #tpu.memory_space<vmem>>, vector<1x1x384xf32>
    %9 = vector.shape_cast %8 : vector<1x1x384xf32> to vector<1x384xf32>
    %10 = vector.broadcast %9 : vector<1x384xf32> to vector<16x384xf32>
    %11 = arith.addf %7, %10 : vector<16x384xf32>
    %12 = arith.truncf %11 : vector<16x384xf32> to vector<16x384xbf16>
    %13 = vector.extract_strided_slice %12 {offsets = [0, 0], sizes = [16, 128], strides = [1, 1]} : vector<16x384xbf16> to vector<16x128xbf16>
    %14 = vector.extract_strided_slice %12 {offsets = [0, 128], sizes = [16, 128], strides = [1, 1]} : vector<16x384xbf16> to vector<16x128xbf16>
    %15 = vector.extract_strided_slice %12 {offsets = [0, 256], sizes = [16, 128], strides = [1, 1]} : vector<16x384xbf16> to vector<16x128xbf16>
    %16 = vector.extract_strided_slice %13 {offsets = [0, 0], sizes = [16, 32], strides = [1, 1]} : vector<16x128xbf16> to vector<16x32xbf16>
    %17 = vector.shape_cast %16 : vector<16x32xbf16> to vector<2x8x32xbf16>
    %18 = vector.extract_strided_slice %14 {offsets = [0, 0], sizes = [16, 32], strides = [1, 1]} : vector<16x128xbf16> to vector<16x32xbf16>
    %19 = vector.shape_cast %18 : vector<16x32xbf16> to vector<2x8x32xbf16>
    %20 = vector.extract_strided_slice %15 {offsets = [0, 0], sizes = [16, 32], strides = [1, 1]} : vector<16x128xbf16> to vector<16x32xbf16>
    %21 = vector.shape_cast %20 : vector<16x32xbf16> to vector<2x8x32xbf16>
    "tpu.trace_start"() <{level = 10 : i32, message = "bqd,bkd->bqk"}> : () -> ()
    %cst_11 = arith.constant dense<0.000000e+00> : vector<2x8x8xf32>
    %22 = tpu.matmul %17, %19, %cst_11 {dimension_numbers = #tpu.dot_dimension_numbers<[2], [2], [1], [1], [0, 0, 0, 1, 1, 1], [0], [0]>} : vector<2x8x32xbf16>, vector<2x8x32xbf16>, vector<2x8x8xf32> -> vector<2x8x8xf32>
    "tpu.trace_stop"() : () -> ()
    %cst_12 = arith.constant 0.176776692 : f32
    %23 = vector.broadcast %cst_12 : f32 to vector<2x8x8xf32>
    %24 = arith.mulf %22, %23 : vector<2x8x8xf32>
    %25 = vector.broadcast %4 : vector<2x1x8xf32> to vector<2x8x8xf32>
    %26 = arith.addf %24, %25 : vector<2x8x8xf32>
    %cst_13 = arith.constant dense<0xFF800000> : vector<2x8xf32>
    %27 = vector.multi_reduction <maximumf>, %26, %cst_13 [2] : vector<2x8x8xf32> to vector<2x8xf32>
    %28 = vector.shape_cast %27 : vector<2x8xf32> to vector<2x8x1xf32>
    %29 = vector.broadcast %28 : vector<2x8x1xf32> to vector<2x8x8xf32>
    %30 = arith.subf %26, %29 : vector<2x8x8xf32>
    %31 = math.exp %30 : vector<2x8x8xf32>
    %cst_14 = arith.constant dense<0.000000e+00> : vector<2x8xf32>
    %32 = vector.multi_reduction <add>, %31, %cst_14 [2] : vector<2x8x8xf32> to vector<2x8xf32>
    %33 = vector.shape_cast %32 : vector<2x8xf32> to vector<2x8x1xf32>
    %34 = tpu.reciprocal %33 {approx = true} : vector<2x8x1xf32> -> vector<2x8x1xf32>
    %35 = vector.broadcast %34 : vector<2x8x1xf32> to vector<2x8x8xf32>
    %36 = arith.mulf %31, %35 : vector<2x8x8xf32>
    %37 = arith.truncf %36 : vector<2x8x8xf32> to vector<2x8x8xbf16>
    "tpu.trace_start"() <{level = 10 : i32, message = "bqk,bkd->bqd"}> : () -> ()
    %cst_15 = arith.constant dense<0.000000e+00> : vector<2x8x32xf32>
    %38 = tpu.matmul %37, %21, %cst_15 {dimension_numbers = #tpu.dot_dimension_numbers<[2], [1], [1], [2], [0, 0, 0, 1, 1, 2], [0], [0]>} : vector<2x8x8xbf16>, vector<2x8x32xbf16>, vector<2x8x32xf32> -> vector<2x8x32xf32>
    "tpu.trace_stop"() : () -> ()
    %39 = vector.extract_strided_slice %13 {offsets = [0, 32], sizes = [16, 32], strides = [1, 1]} : vector<16x128xbf16> to vector<16x32xbf16>
    %40 = vector.shape_cast %39 : vector<16x32xbf16> to vector<2x8x32xbf16>
    %41 = vector.extract_strided_slice %14 {offsets = [0, 32], sizes = [16, 32], strides = [1, 1]} : vector<16x128xbf16> to vector<16x32xbf16>
    %42 = vector.shape_cast %41 : vector<16x32xbf16> to vector<2x8x32xbf16>
    %43 = vector.extract_strided_slice %15 {offsets = [0, 32], sizes = [16, 32], strides = [1, 1]} : vector<16x128xbf16> to vector<16x32xbf16>
    %44 = vector.shape_cast %43 : vector<16x32xbf16> to vector<2x8x32xbf16>
    "tpu.trace_start"() <{level = 10 : i32, message = "bqd,bkd->bqk"}> : () -> ()
    %cst_16 = arith.constant dense<0.000000e+00> : vector<2x8x8xf32>
    %45 = tpu.matmul %40, %42, %cst_16 {dimension_numbers = #tpu.dot_dimension_numbers<[2], [2], [1], [1], [0, 0, 0, 1, 1, 1], [0], [0]>} : vector<2x8x32xbf16>, vector<2x8x32xbf16>, vector<2x8x8xf32> -> vector<2x8x8xf32>
    "tpu.trace_stop"() : () -> ()
    %cst_17 = arith.constant 0.176776692 : f32
    %46 = vector.broadcast %cst_17 : f32 to vector<2x8x8xf32>
    %47 = arith.mulf %45, %46 : vector<2x8x8xf32>
    %48 = vector.broadcast %4 : vector<2x1x8xf32> to vector<2x8x8xf32>
    %49 = arith.addf %47, %48 : vector<2x8x8xf32>
    %cst_18 = arith.constant dense<0xFF800000> : vector<2x8xf32>
    %50 = vector.multi_reduction <maximumf>, %49, %cst_18 [2] : vector<2x8x8xf32> to vector<2x8xf32>
    %51 = vector.shape_cast %50 : vector<2x8xf32> to vector<2x8x1xf32>
    %52 = vector.broadcast %51 : vector<2x8x1xf32> to vector<2x8x8xf32>
    %53 = arith.subf %49, %52 : vector<2x8x8xf32>
    %54 = math.exp %53 : vector<2x8x8xf32>
    %cst_19 = arith.constant dense<0.000000e+00> : vector<2x8xf32>
    %55 = vector.multi_reduction <add>, %54, %cst_19 [2] : vector<2x8x8xf32> to vector<2x8xf32>
    %56 = vector.shape_cast %55 : vector<2x8xf32> to vector<2x8x1xf32>
    %57 = tpu.reciprocal %56 {approx = true} : vector<2x8x1xf32> -> vector<2x8x1xf32>
    %58 = vector.broadcast %57 : vector<2x8x1xf32> to vector<2x8x8xf32>
    %59 = arith.mulf %54, %58 : vector<2x8x8xf32>
    %60 = arith.truncf %59 : vector<2x8x8xf32> to vector<2x8x8xbf16>
    "tpu.trace_start"() <{level = 10 : i32, message = "bqk,bkd->bqd"}> : () -> ()
    %cst_20 = arith.constant dense<0.000000e+00> : vector<2x8x32xf32>
    %61 = tpu.matmul %60, %44, %cst_20 {dimension_numbers = #tpu.dot_dimension_numbers<[2], [1], [1], [2], [0, 0, 0, 1, 1, 2], [0], [0]>} : vector<2x8x8xbf16>, vector<2x8x32xbf16>, vector<2x8x32xf32> -> vector<2x8x32xf32>
    "tpu.trace_stop"() : () -> ()
    %62 = vector.extract_strided_slice %13 {offsets = [0, 64], sizes = [16, 32], strides = [1, 1]} : vector<16x128xbf16> to vector<16x32xbf16>
    %63 = vector.shape_cast %62 : vector<16x32xbf16> to vector<2x8x32xbf16>
    %64 = vector.extract_strided_slice %14 {offsets = [0, 64], sizes = [16, 32], strides = [1, 1]} : vector<16x128xbf16> to vector<16x32xbf16>
    %65 = vector.shape_cast %64 : vector<16x32xbf16> to vector<2x8x32xbf16>
    %66 = vector.extract_strided_slice %15 {offsets = [0, 64], sizes = [16, 32], strides = [1, 1]} : vector<16x128xbf16> to vector<16x32xbf16>
    %67 = vector.shape_cast %66 : vector<16x32xbf16> to vector<2x8x32xbf16>
    "tpu.trace_start"() <{level = 10 : i32, message = "bqd,bkd->bqk"}> : () -> ()
    %cst_21 = arith.constant dense<0.000000e+00> : vector<2x8x8xf32>
    %68 = tpu.matmul %63, %65, %cst_21 {dimension_numbers = #tpu.dot_dimension_numbers<[2], [2], [1], [1], [0, 0, 0, 1, 1, 1], [0], [0]>} : vector<2x8x32xbf16>, vector<2x8x32xbf16>, vector<2x8x8xf32> -> vector<2x8x8xf32>
    "tpu.trace_stop"() : () -> ()
    %cst_22 = arith.constant 0.176776692 : f32
    %69 = vector.broadcast %cst_22 : f32 to vector<2x8x8xf32>
    %70 = arith.mulf %68, %69 : vector<2x8x8xf32>
    %71 = vector.broadcast %4 : vector<2x1x8xf32> to vector<2x8x8xf32>
    %72 = arith.addf %70, %71 : vector<2x8x8xf32>
    %cst_23 = arith.constant dense<0xFF800000> : vector<2x8xf32>
    %73 = vector.multi_reduction <maximumf>, %72, %cst_23 [2] : vector<2x8x8xf32> to vector<2x8xf32>
    %74 = vector.shape_cast %73 : vector<2x8xf32> to vector<2x8x1xf32>
    %75 = vector.broadcast %74 : vector<2x8x1xf32> to vector<2x8x8xf32>
    %76 = arith.subf %72, %75 : vector<2x8x8xf32>
    %77 = math.exp %76 : vector<2x8x8xf32>
    %cst_24 = arith.constant dense<0.000000e+00> : vector<2x8xf32>
    %78 = vector.multi_reduction <add>, %77, %cst_24 [2] : vector<2x8x8xf32> to vector<2x8xf32>
    %79 = vector.shape_cast %78 : vector<2x8xf32> to vector<2x8x1xf32>
    %80 = tpu.reciprocal %79 {approx = true} : vector<2x8x1xf32> -> vector<2x8x1xf32>
    %81 = vector.broadcast %80 : vector<2x8x1xf32> to vector<2x8x8xf32>
    %82 = arith.mulf %77, %81 : vector<2x8x8xf32>
    %83 = arith.truncf %82 : vector<2x8x8xf32> to vector<2x8x8xbf16>
    "tpu.trace_start"() <{level = 10 : i32, message = "bqk,bkd->bqd"}> : () -> ()
    %cst_25 = arith.constant dense<0.000000e+00> : vector<2x8x32xf32>
    %84 = tpu.matmul %83, %67, %cst_25 {dimension_numbers = #tpu.dot_dimension_numbers<[2], [1], [1], [2], [0, 0, 0, 1, 1, 2], [0], [0]>} : vector<2x8x8xbf16>, vector<2x8x32xbf16>, vector<2x8x32xf32> -> vector<2x8x32xf32>
    "tpu.trace_stop"() : () -> ()
    %85 = vector.extract_strided_slice %13 {offsets = [0, 96], sizes = [16, 32], strides = [1, 1]} : vector<16x128xbf16> to vector<16x32xbf16>
    %86 = vector.shape_cast %85 : vector<16x32xbf16> to vector<2x8x32xbf16>
    %87 = vector.extract_strided_slice %14 {offsets = [0, 96], sizes = [16, 32], strides = [1, 1]} : vector<16x128xbf16> to vector<16x32xbf16>
    %88 = vector.shape_cast %87 : vector<16x32xbf16> to vector<2x8x32xbf16>
    %89 = vector.extract_strided_slice %15 {offsets = [0, 96], sizes = [16, 32], strides = [1, 1]} : vector<16x128xbf16> to vector<16x32xbf16>
    %90 = vector.shape_cast %89 : vector<16x32xbf16> to vector<2x8x32xbf16>
    "tpu.trace_start"() <{level = 10 : i32, message = "bqd,bkd->bqk"}> : () -> ()
    %cst_26 = arith.constant dense<0.000000e+00> : vector<2x8x8xf32>
    %91 = tpu.matmul %86, %88, %cst_26 {dimension_numbers = #tpu.dot_dimension_numbers<[2], [2], [1], [1], [0, 0, 0, 1, 1, 1], [0], [0]>} : vector<2x8x32xbf16>, vector<2x8x32xbf16>, vector<2x8x8xf32> -> vector<2x8x8xf32>
    "tpu.trace_stop"() : () -> ()
    %cst_27 = arith.constant 0.176776692 : f32
    %92 = vector.broadcast %cst_27 : f32 to vector<2x8x8xf32>
    %93 = arith.mulf %91, %92 : vector<2x8x8xf32>
    %94 = vector.broadcast %4 : vector<2x1x8xf32> to vector<2x8x8xf32>
    %95 = arith.addf %93, %94 : vector<2x8x8xf32>
    %cst_28 = arith.constant dense<0xFF800000> : vector<2x8xf32>
    %96 = vector.multi_reduction <maximumf>, %95, %cst_28 [2] : vector<2x8x8xf32> to vector<2x8xf32>
    %97 = vector.shape_cast %96 : vector<2x8xf32> to vector<2x8x1xf32>
    %98 = vector.broadcast %97 : vector<2x8x1xf32> to vector<2x8x8xf32>
    %99 = arith.subf %95, %98 : vector<2x8x8xf32>
    %100 = math.exp %99 : vector<2x8x8xf32>
    %cst_29 = arith.constant dense<0.000000e+00> : vector<2x8xf32>
    %101 = vector.multi_reduction <add>, %100, %cst_29 [2] : vector<2x8x8xf32> to vector<2x8xf32>
    %102 = vector.shape_cast %101 : vector<2x8xf32> to vector<2x8x1xf32>
    %103 = tpu.reciprocal %102 {approx = true} : vector<2x8x1xf32> -> vector<2x8x1xf32>
    %104 = vector.broadcast %103 : vector<2x8x1xf32> to vector<2x8x8xf32>
    %105 = arith.mulf %100, %104 : vector<2x8x8xf32>
    %106 = arith.truncf %105 : vector<2x8x8xf32> to vector<2x8x8xbf16>
    "tpu.trace_start"() <{level = 10 : i32, message = "bqk,bkd->bqd"}> : () -> ()
    %cst_30 = arith.constant dense<0.000000e+00> : vector<2x8x32xf32>
    %107 = tpu.matmul %106, %90, %cst_30 {dimension_numbers = #tpu.dot_dimension_numbers<[2], [1], [1], [2], [0, 0, 0, 1, 1, 2], [0], [0]>} : vector<2x8x8xbf16>, vector<2x8x32xbf16>, vector<2x8x32xf32> -> vector<2x8x32xf32>
    "tpu.trace_stop"() : () -> ()
    %108 = tpu.concatenate %38, %61, %84, %107 in 2 : vector<2x8x32xf32>, vector<2x8x32xf32>, vector<2x8x32xf32>, vector<2x8x32xf32> -> vector<2x8x128xf32>
    %109 = vector.shape_cast %108 : vector<2x8x128xf32> to vector<16x128xf32>
    %110 = arith.truncf %109 : vector<16x128xf32> to vector<16x128xbf16>
    %c0_31 = arith.constant 0 : index
    %c0_32 = arith.constant 0 : index
    %c0_33 = arith.constant 0 : index
    %111 = vector.load %arg5[%c0_31, %c0_32, %c0_33] : memref<1x128x128xbf16, #tpu.memory_space<vmem>>, vector<1x128x128xbf16>
    %112 = vector.shape_cast %111 : vector<1x128x128xbf16> to vector<128x128xbf16>
    %cst_34 = arith.constant dense<0.000000e+00> : vector<16x128xf32>
    %113 = tpu.matmul %110, %112, %cst_34 {dimension_numbers = #tpu.dot_dimension_numbers<[1], [0], [0], [1], [0, 0, 1, 1], [], []>} : vector<16x128xbf16>, vector<128x128xbf16>, vector<16x128xf32> -> vector<16x128xf32>
    %c0_35 = arith.constant 0 : index
    %c0_36 = arith.constant 0 : index
    %c0_37 = arith.constant 0 : index
    %114 = vector.load %arg6[%c0_35, %c0_36, %c0_37] : memref<1x1x128xf32, #tpu.memory_space<vmem>>, vector<1x1x128xf32>
    %115 = vector.shape_cast %114 : vector<1x1x128xf32> to vector<1x128xf32>
    %116 = vector.broadcast %115 : vector<1x128xf32> to vector<16x128xf32>
    %117 = arith.addf %113, %116 : vector<16x128xf32>
    %118 = arith.extf %3 : vector<16x128xbf16> to vector<16x128xf32>
    %119 = arith.addf %118, %117 : vector<16x128xf32>
    %c0_38 = arith.constant 0 : index
    %c0_39 = arith.constant 0 : index
    %c0_40 = arith.constant 0 : index
    %120 = vector.load %arg7[%c0_38, %c0_39, %c0_40] : memref<1x1x128xf32, #tpu.memory_space<vmem>>, vector<1x1x128xf32>
    %121 = vector.shape_cast %120 : vector<1x1x128xf32> to vector<1x128xf32>
    %c0_41 = arith.constant 0 : index
    %c0_42 = arith.constant 0 : index
    %c0_43 = arith.constant 0 : index
    %122 = vector.load %arg8[%c0_41, %c0_42, %c0_43] : memref<1x1x128xf32, #tpu.memory_space<vmem>>, vector<1x1x128xf32>
    %123 = vector.shape_cast %122 : vector<1x1x128xf32> to vector<1x128xf32>
    %cst_44 = arith.constant dense<0.000000e+00> : vector<16xf32>
    %124 = vector.multi_reduction <add>, %119, %cst_44 [1] : vector<16x128xf32> to vector<16xf32>
    %125 = vector.shape_cast %124 : vector<16xf32> to vector<16x1xf32>
    %cst_45 = arith.constant 1.280000e+02 : f32
    %126 = vector.broadcast %cst_45 : f32 to vector<16x1xf32>
    %127 = arith.divf %125, %126 : vector<16x1xf32>
    %128 = vector.broadcast %127 : vector<16x1xf32> to vector<16x128xf32>
    %129 = arith.subf %119, %128 : vector<16x128xf32>
    %130 = vector.broadcast %127 : vector<16x1xf32> to vector<16x128xf32>
    %131 = arith.subf %119, %130 : vector<16x128xf32>
    %132 = arith.mulf %129, %131 : vector<16x128xf32>
    %cst_46 = arith.constant dense<0.000000e+00> : vector<16xf32>
    %133 = vector.multi_reduction <add>, %132, %cst_46 [1] : vector<16x128xf32> to vector<16xf32>
    %134 = vector.shape_cast %133 : vector<16xf32> to vector<16x1xf32>
    %cst_47 = arith.constant 1.280000e+02 : f32
    %135 = vector.broadcast %cst_47 : f32 to vector<16x1xf32>
    %136 = arith.divf %134, %135 : vector<16x1xf32>
    %137 = vector.broadcast %127 : vector<16x1xf32> to vector<16x128xf32>
    %138 = arith.subf %119, %137 : vector<16x128xf32>
    %cst_48 = arith.constant 9.99999974E-6 : f32
    %139 = vector.broadcast %cst_48 : f32 to vector<16x1xf32>
    %140 = arith.addf %136, %139 : vector<16x1xf32>
    %141 = math.rsqrt %140 : vector<16x1xf32>
    %142 = vector.broadcast %141 : vector<16x1xf32> to vector<16x128xf32>
    %143 = arith.mulf %138, %142 : vector<16x128xf32>
    %144 = vector.broadcast %121 : vector<1x128xf32> to vector<16x128xf32>
    %145 = arith.mulf %143, %144 : vector<16x128xf32>
    %146 = vector.broadcast %123 : vector<1x128xf32> to vector<16x128xf32>
    %147 = arith.addf %145, %146 : vector<16x128xf32>
    %148 = arith.truncf %147 : vector<16x128xf32> to vector<16x128xbf16>
    %c0_49 = arith.constant 0 : index
    %c0_50 = arith.constant 0 : index
    %c0_51 = arith.constant 0 : index
    %149 = vector.load %arg9[%c0_49, %c0_50, %c0_51] : memref<1x128x256xbf16, #tpu.memory_space<vmem>>, vector<1x128x256xbf16>
    %150 = vector.shape_cast %149 : vector<1x128x256xbf16> to vector<128x256xbf16>
    %cst_52 = arith.constant dense<0.000000e+00> : vector<16x256xf32>
    %151 = tpu.matmul %148, %150, %cst_52 {dimension_numbers = #tpu.dot_dimension_numbers<[1], [0], [0], [1], [0, 0, 1, 1], [], []>} : vector<16x128xbf16>, vector<128x256xbf16>, vector<16x256xf32> -> vector<16x256xf32>
    %c0_53 = arith.constant 0 : index
    %c0_54 = arith.constant 0 : index
    %c0_55 = arith.constant 0 : index
    %152 = vector.load %arg10[%c0_53, %c0_54, %c0_55] : memref<1x1x256xf32, #tpu.memory_space<vmem>>, vector<1x1x256xf32>
    %153 = vector.shape_cast %152 : vector<1x1x256xf32> to vector<1x256xf32>
    %154 = vector.broadcast %153 : vector<1x256xf32> to vector<16x256xf32>
    %155 = arith.addf %151, %154 : vector<16x256xf32>
    %cst_56 = arith.constant 5.000000e-01 : f32
    %156 = vector.broadcast %cst_56 : f32 to vector<16x256xf32>
    %157 = arith.mulf %156, %155 : vector<16x256xf32>
    %cst_57 = arith.constant 4.471500e-02 : f32
    %158 = vector.broadcast %cst_57 : f32 to vector<16x256xf32>
    %159 = arith.mulf %158, %155 : vector<16x256xf32>
    %160 = arith.mulf %159, %155 : vector<16x256xf32>
    %161 = arith.mulf %160, %155 : vector<16x256xf32>
    %162 = arith.addf %155, %161 : vector<16x256xf32>
    %cst_58 = arith.constant 0.797884583 : f32
    %163 = vector.broadcast %cst_58 : f32 to vector<16x256xf32>
    %164 = arith.mulf %163, %162 : vector<16x256xf32>
    %165 = math.tanh %164 : vector<16x256xf32>
    %cst_59 = arith.constant 1.000000e+00 : f32
    %166 = vector.broadcast %cst_59 : f32 to vector<16x256xf32>
    %167 = arith.addf %166, %165 : vector<16x256xf32>
    %168 = arith.mulf %157, %167 : vector<16x256xf32>
    %169 = arith.truncf %168 : vector<16x256xf32> to vector<16x256xbf16>
    %c0_60 = arith.constant 0 : index
    %c0_61 = arith.constant 0 : index
    %c0_62 = arith.constant 0 : index
    %170 = vector.load %arg11[%c0_60, %c0_61, %c0_62] : memref<1x256x128xbf16, #tpu.memory_space<vmem>>, vector<1x256x128xbf16>
    %171 = vector.shape_cast %170 : vector<1x256x128xbf16> to vector<256x128xbf16>
    %cst_63 = arith.constant dense<0.000000e+00> : vector<16x128xf32>
    %172 = tpu.matmul %169, %171, %cst_63 {dimension_numbers = #tpu.dot_dimension_numbers<[1], [0], [0], [1], [0, 0, 1, 1], [], []>} : vector<16x256xbf16>, vector<256x128xbf16>, vector<16x128xf32> -> vector<16x128xf32>
    %c0_64 = arith.constant 0 : index
    %c0_65 = arith.constant 0 : index
    %c0_66 = arith.constant 0 : index
    %173 = vector.load %arg12[%c0_64, %c0_65, %c0_66] : memref<1x1x128xf32, #tpu.memory_space<vmem>>, vector<1x1x128xf32>
    %174 = vector.shape_cast %173 : vector<1x1x128xf32> to vector<1x128xf32>
    %175 = vector.broadcast %174 : vector<1x128xf32> to vector<16x128xf32>
    %176 = arith.addf %172, %175 : vector<16x128xf32>
    %177 = arith.addf %147, %176 : vector<16x128xf32>
    %c0_67 = arith.constant 0 : index
    %c0_68 = arith.constant 0 : index
    %c0_69 = arith.constant 0 : index
    %178 = vector.load %arg13[%c0_67, %c0_68, %c0_69] : memref<1x1x128xf32, #tpu.memory_space<vmem>>, vector<1x1x128xf32>
    %179 = vector.shape_cast %178 : vector<1x1x128xf32> to vector<1x128xf32>
    %c0_70 = arith.constant 0 : index
    %c0_71 = arith.constant 0 : index
    %c0_72 = arith.constant 0 : index
    %180 = vector.load %arg14[%c0_70, %c0_71, %c0_72] : memref<1x1x128xf32, #tpu.memory_space<vmem>>, vector<1x1x128xf32>
    %181 = vector.shape_cast %180 : vector<1x1x128xf32> to vector<1x128xf32>
    %cst_73 = arith.constant dense<0.000000e+00> : vector<16xf32>
    %182 = vector.multi_reduction <add>, %177, %cst_73 [1] : vector<16x128xf32> to vector<16xf32>
    %183 = vector.shape_cast %182 : vector<16xf32> to vector<16x1xf32>
    %cst_74 = arith.constant 1.280000e+02 : f32
    %184 = vector.broadcast %cst_74 : f32 to vector<16x1xf32>
    %185 = arith.divf %183, %184 : vector<16x1xf32>
    %186 = vector.broadcast %185 : vector<16x1xf32> to vector<16x128xf32>
    %187 = arith.subf %177, %186 : vector<16x128xf32>
    %188 = vector.broadcast %185 : vector<16x1xf32> to vector<16x128xf32>
    %189 = arith.subf %177, %188 : vector<16x128xf32>
    %190 = arith.mulf %187, %189 : vector<16x128xf32>
    %cst_75 = arith.constant dense<0.000000e+00> : vector<16xf32>
    %191 = vector.multi_reduction <add>, %190, %cst_75 [1] : vector<16x128xf32> to vector<16xf32>
    %192 = vector.shape_cast %191 : vector<16xf32> to vector<16x1xf32>
    %cst_76 = arith.constant 1.280000e+02 : f32
    %193 = vector.broadcast %cst_76 : f32 to vector<16x1xf32>
    %194 = arith.divf %192, %193 : vector<16x1xf32>
    %195 = vector.broadcast %185 : vector<16x1xf32> to vector<16x128xf32>
    %196 = arith.subf %177, %195 : vector<16x128xf32>
    %cst_77 = arith.constant 9.99999974E-6 : f32
    %197 = vector.broadcast %cst_77 : f32 to vector<16x1xf32>
    %198 = arith.addf %194, %197 : vector<16x1xf32>
    %199 = math.rsqrt %198 : vector<16x1xf32>
    %200 = vector.broadcast %199 : vector<16x1xf32> to vector<16x128xf32>
    %201 = arith.mulf %196, %200 : vector<16x128xf32>
    %202 = vector.broadcast %179 : vector<1x128xf32> to vector<16x128xf32>
    %203 = arith.mulf %201, %202 : vector<16x128xf32>
    %204 = vector.broadcast %181 : vector<1x128xf32> to vector<16x128xf32>
    %205 = arith.addf %203, %204 : vector<16x128xf32>
    %206 = arith.truncf %205 : vector<16x128xf32> to vector<16x128xbf16>
    %c0_78 = arith.constant 0 : index
    %c0_79 = arith.constant 0 : index
    %207 = vector.load %arg20[%c0_78, %c0_79] : memref<16x128xbf16, #tpu.memory_space<vmem>>, vector<16x128xbf16>
    tpu.vector_store %arg20[%c0_78, %c0_79], %206 {strides = array<i32>} : memref<16x128xbf16, #tpu.memory_space<vmem>>, vector<16x128xbf16>,
    %c1_i32 = arith.constant 1 : i32
    %208 = arith.cmpi eq, %arg0, %c1_i32 : i32
    %209 = arith.extui %208 : i1 to i32
    %c0_i32_80 = arith.constant 0 : i32
    %210 = arith.cmpi ne, %209, %c0_i32_80 : i32
    scf.if %210 {
      %211 = vector.shape_cast %205 : vector<16x128xf32> to vector<2x8x128xf32>
      %212 = vector.extract_strided_slice %211 {offsets = [0, 0, 0], sizes = [2, 1, 128], strides = [1, 1, 1]} : vector<2x8x128xf32> to vector<2x1x128xf32>
      %213 = vector.shape_cast %212 : vector<2x1x128xf32> to vector<2x128xf32>
      %214 = arith.truncf %213 : vector<2x128xf32> to vector<2x128xbf16>
      %c0_81 = arith.constant 0 : index
      %c0_82 = arith.constant 0 : index
      %215 = vector.load %arg15[%c0_81, %c0_82] : memref<128x128xbf16, #tpu.memory_space<vmem>>, vector<128x128xbf16>
      %cst_83 = arith.constant dense<0.000000e+00> : vector<2x128xf32>
      %216 = tpu.matmul %214, %215, %cst_83 {dimension_numbers = #tpu.dot_dimension_numbers<[1], [0], [0], [1], [0, 0, 1, 1], [], []>} : vector<2x128xbf16>, vector<128x128xbf16>, vector<2x128xf32> -> vector<2x128xf32>
      %c0_84 = arith.constant 0 : index
      %c0_85 = arith.constant 0 : index
      %217 = vector.load %arg16[%c0_84, %c0_85] : memref<1x128xf32, #tpu.memory_space<vmem>>, vector<1x128xf32>
      %218 = vector.broadcast %217 : vector<1x128xf32> to vector<2x128xf32>
      %219 = arith.addf %216, %218 : vector<2x128xf32>
      %cst_86 = arith.constant 0.000000e+00 : f32
      %220 = vector.broadcast %cst_86 : f32 to vector<2x128xf32>
      %221 = arith.maximumf %219, %220 : vector<2x128xf32>
      %222 = arith.truncf %221 : vector<2x128xf32> to vector<2x128xbf16>
      %c0_87 = arith.constant 0 : index
      %c0_88 = arith.constant 0 : index
      %223 = vector.load %arg17[%c0_87, %c0_88] : memref<128x128xbf16, #tpu.memory_space<vmem>>, vector<128x128xbf16>
      %cst_89 = arith.constant dense<0.000000e+00> : vector<2x128xf32>
      %224 = tpu.matmul %222, %223, %cst_89 {dimension_numbers = #tpu.dot_dimension_numbers<[1], [0], [0], [1], [0, 0, 1, 1], [], []>} : vector<2x128xbf16>, vector<128x128xbf16>, vector<2x128xf32> -> vector<2x128xf32>
      %c0_90 = arith.constant 0 : index
      %c0_91 = arith.constant 0 : index
      %225 = vector.load %arg18[%c0_90, %c0_91] : memref<1x128xf32, #tpu.memory_space<vmem>>, vector<1x128xf32>
      %226 = vector.broadcast %225 : vector<1x128xf32> to vector<2x128xf32>
      %227 = arith.addf %224, %226 : vector<2x128xf32>
      %c0_92 = arith.constant 0 : index
      %c0_93 = arith.constant 0 : index
      %228 = vector.load %arg19[%c0_92, %c0_93] : memref<2x128xf32, #tpu.memory_space<vmem>>, vector<2x128xf32>
      tpu.vector_store %arg19[%c0_92, %c0_93], %227 {strides = array<i32>} : memref<2x128xf32, #tpu.memory_space<vmem>>, vector<2x128xf32>,
    } else {
    }
    return
  }
  func.func @transform_0(%arg0: i32) -> (i32, i32) {
    %c0_i32 = arith.constant 0 : i32
    %c0_i32_0 = arith.constant 0 : i32
    %c0_i32_1 = arith.constant 0 : i32
    return %c0_i32, %c0_i32_0 : i32, i32
  }
  func.func @transform_1(%arg0: i32) -> (i32, i32, i32) {
    %c0_i32 = arith.constant 0 : i32
    %c0_i32_0 = arith.constant 0 : i32
    %c0_i32_1 = arith.constant 0 : i32
    %c0_i32_2 = arith.constant 0 : i32
    return %c0_i32, %c0_i32_0, %c0_i32_1 : i32, i32, i32
  }
  func.func @transform_2(%arg0: i32) -> (i32, i32, i32) {
    %c0_i32 = arith.constant 0 : i32
    %c0_i32_0 = arith.constant 0 : i32
    %c0_i32_1 = arith.constant 0 : i32
    return %arg0, %c0_i32, %c0_i32_0 : i32, i32, i32
  }
  func.func @transform_3(%arg0: i32) -> (i32, i32, i32) {
    %c0_i32 = arith.constant 0 : i32
    %c0_i32_0 = arith.constant 0 : i32
    %c0_i32_1 = arith.constant 0 : i32
    return %arg0, %c0_i32, %c0_i32_0 : i32, i32, i32
  }
  func.func @transform_4(%arg0: i32) -> (i32, i32, i32) {
    %c0_i32 = arith.constant 0 : i32
    %c0_i32_0 = arith.constant 0 : i32
    %c0_i32_1 = arith.constant 0 : i32
    return %arg0, %c0_i32, %c0_i32_0 : i32, i32, i32
  }
  func.func @transform_5(%arg0: i32) -> (i32, i32, i32) {
    %c0_i32 = arith.constant 0 : i32
    %c0_i32_0 = arith.constant 0 : i32
    %c0_i32_1 = arith.constant 0 : i32
    return %arg0, %c0_i32, %c0_i32_0 : i32, i32, i32
  }
  func.func @transform_6(%arg0: i32) -> (i32, i32, i32) {
    %c0_i32 = arith.constant 0 : i32
    %c0_i32_0 = arith.constant 0 : i32
    %c0_i32_1 = arith.constant 0 : i32
    return %arg0, %c0_i32, %c0_i32_0 : i32, i32, i32
  }
  func.func @transform_7(%arg0: i32) -> (i32, i32, i32) {
    %c0_i32 = arith.constant 0 : i32
    %c0_i32_0 = arith.constant 0 : i32
    %c0_i32_1 = arith.constant 0 : i32
    return %arg0, %c0_i32, %c0_i32_0 : i32, i32, i32
  }
  func.func @transform_8(%arg0: i32) -> (i32, i32, i32) {
    %c0_i32 = arith.constant 0 : i32
    %c0_i32_0 = arith.constant 0 : i32
    %c0_i32_1 = arith.constant 0 : i32
    return %arg0, %c0_i32, %c0_i32_0 : i32, i32, i32
  }
  func.func @transform_9(%arg0: i32) -> (i32, i32, i32) {
    %c0_i32 = arith.constant 0 : i32
    %c0_i32_0 = arith.constant 0 : i32
    %c0_i32_1 = arith.constant 0 : i32
    return %arg0, %c0_i32, %c0_i32_0 : i32, i32, i32
  }
  func.func @transform_10(%arg0: i32) -> (i32, i32, i32) {
    %c0_i32 = arith.constant 0 : i32
    %c0_i32_0 = arith.constant 0 : i32
    %c0_i32_1 = arith.constant 0 : i32
    return %arg0, %c0_i32, %c0_i32_0 : i32, i32, i32
  }
  func.func @transform_11(%arg0: i32) -> (i32, i32, i32) {
    %c0_i32 = arith.constant 0 : i32
    %c0_i32_0 = arith.constant 0 : i32
    %c0_i32_1 = arith.constant 0 : i32
    return %arg0, %c0_i32, %c0_i32_0 : i32, i32, i32
  }
  func.func @transform_12(%arg0: i32) -> (i32, i32, i32) {
    %c0_i32 = arith.constant 0 : i32
    %c0_i32_0 = arith.constant 0 : i32
    %c0_i32_1 = arith.constant 0 : i32
    return %arg0, %c0_i32, %c0_i32_0 : i32, i32, i32
  }
  func.func @transform_13(%arg0: i32) -> (i32, i32, i32) {
    %c0_i32 = arith.constant 0 : i32
    %c0_i32_0 = arith.constant 0 : i32
    %c0_i32_1 = arith.constant 0 : i32
    return %arg0, %c0_i32, %c0_i32_0 : i32, i32, i32
  }
  func.func @transform_14(%arg0: i32) -> (i32, i32) {
    %c0_i32 = arith.constant 0 : i32
    %c0_i32_0 = arith.constant 0 : i32
    %c0_i32_1 = arith.constant 0 : i32
    return %c0_i32, %c0_i32_0 : i32, i32
  }
  func.func @transform_15(%arg0: i32) -> (i32, i32) {
    %c0_i32 = arith.constant 0 : i32
    %c0_i32_0 = arith.constant 0 : i32
    %c0_i32_1 = arith.constant 0 : i32
    return %c0_i32, %c0_i32_0 : i32, i32
  }
  func.func @transform_16(%arg0: i32) -> (i32, i32) {
    %c0_i32 = arith.constant 0 : i32
    %c0_i32_0 = arith.constant 0 : i32
    %c0_i32_1 = arith.constant 0 : i32
    return %c0_i32, %c0_i32_0 : i32, i32
  }
  func.func @transform_17(%arg0: i32) -> (i32, i32) {
    %c0_i32 = arith.constant 0 : i32
    %c0_i32_0 = arith.constant 0 : i32
    %c0_i32_1 = arith.constant 0 : i32
    return %c0_i32, %c0_i32_0 : i32, i32
  }
  func.func @transform_18(%arg0: i32) -> (i32, i32) {
    %c0_i32 = arith.constant 0 : i32
    %c0_i32_0 = arith.constant 0 : i32
    %c0_i32_1 = arith.constant 0 : i32
    return %c0_i32, %c0_i32_0 : i32, i32
  }
}

</mosaic_0001>

<llo_original>
// kernel: roberta_class_forward.1
$region0: #{roberta_class_forward.1}
  #allocation0 [shape = 'u32[]', space=smem, size = 0x4, offset = 0x4, fixed_abs, tag = 'smem constant byte address 0x4 - core index']
  #allocation1 [shape = 'u32[144,128]{1,0:T(1,128)}', space=vmem, size = 0x12000, scoped, tag = 'internal scratch']
  #allocation2 [shape = 'bf16[16,128]{1,0:T(16,128)(2,1)}', space=vmem, size = 0x1000, scoped, tag = 'scratch operand']
  %s0 = inlined_call_operand.vmem [shape: bf16[16,128], index: 0, kind: input, shape index: {}]
  %s1 = inlined_call_operand.vmem [shape: f32[2,1,8], index: 1, kind: input, shape index: {}]
  %s2 = inlined_call_operand.hbm [shape: bf16[2,128,384], index: 2, kind: input, shape index: {}]
  %s3 = inlined_call_operand.vmem [shape: f32[2,1,384], index: 3, kind: input, shape index: {}]
  %s4 = inlined_call_operand.hbm [shape: bf16[2,128,128], index: 4, kind: input, shape index: {}]
  %s5 = inlined_call_operand.vmem [shape: f32[2,1,128], index: 5, kind: input, shape index: {}]
  %s6 = inlined_call_operand.vmem [shape: f32[2,1,128], index: 6, kind: input, shape index: {}]
  %s7 = inlined_call_operand.vmem [shape: f32[2,1,128], index: 7, kind: input, shape index: {}]
  %s8 = inlined_call_operand.vmem [shape: bf16[2,128,256], index: 8, kind: input, shape index: {}]
  %s9 = inlined_call_operand.vmem [shape: f32[2,1,256], index: 9, kind: input, shape index: {}]
  %s10 = inlined_call_operand.vmem [shape: bf16[2,256,128], index: 10, kind: input, shape index: {}]
  %s11 = inlined_call_operand.vmem [shape: f32[2,1,128], index: 11, kind: input, shape index: {}]
  %s12 = inlined_call_operand.vmem [shape: f32[2,1,128], index: 12, kind: input, shape index: {}]
  %s13 = inlined_call_operand.vmem [shape: f32[2,1,128], index: 13, kind: input, shape index: {}]
  %s14 = inlined_call_operand.hbm [shape: bf16[128,128], index: 14, kind: input, shape index: {}]
  %s15 = inlined_call_operand.vmem [shape: f32[1,128], index: 15, kind: input, shape index: {}]
  %s16 = inlined_call_operand.vmem [shape: bf16[128,128], index: 16, kind: input, shape index: {}]
  %s17 = inlined_call_operand.vmem [shape: f32[1,128], index: 17, kind: input, shape index: {}]
  %s18 = inlined_call_operand.hbm [shape: f32[2,128], index: 18, kind: output, shape index: {}]
  %s19 = sld [smem:[#allocation0]]
  $region125: #{roberta_class_forward.1} parent=0
    _
  %s21 = ssub.s32 1, %s19
  %s22 = scalar_select 0, %s21, %s19
  $region1: #{roberta_class_forward.1} parent=0
    #allocation3 [shape = 'u8[196608]{0}', space=vmem, size = 0x30000, scoped, tag = 'input window, operand 2']
    #allocation4 [shape = 's32[2]{0}', space=sflag, size = 0x8, scoped, tag = 'scoped memory for roberta_class_forward.1']
    #allocation5 [shape = 's32[2]{0}', space=sflag, size = 0x8, scoped, tag = 'scoped memory for roberta_class_forward.1']
    #allocation6 [shape = 'u8[65536]{0}', space=vmem, size = 0x10000, scoped, tag = 'input window, operand 4']
    #allocation7 [shape = 's32[2]{0}', space=sflag, size = 0x8, scoped, tag = 'scoped memory for roberta_class_forward.1']
    #allocation8 [shape = 'u8[32768]{0}', space=vmem, size = 0x8000, scoped, tag = 'input window, operand 14, single buffered']
    #allocation9 [shape = 'u8[1024]{0}', space=vmem, size = 0x400, scoped, tag = 'output window, operand 0, single buffered']
    %23 = vsyncpa [#allocation4], 0
    %s24 = scalar_lea.sflag [#allocation4], 1
    %25 = vsyncpa %s24, 0
    %26 = vsyncpa [#allocation7], 0
    %s27 = scalar_lea.sflag [#allocation7], 1
    %28 = vsyncpa %s27, 0
    %29 = vsyncpa [#allocation5], 0
    loop: start=0, step=1, limit=4
    $region2: #{roberta_class_forward.1} parent=1 // loop_pre_header
      _
    $region3: #{roberta_class_forward.1} parent=1 // loop_header
      %s31 = sphi 0, %s35
      %p32 = scmp.ge.s32.totalorder %s31, 4
      %s39 = sphi 0, %s39
      %s41 = sphi 0, %s39
      %s42 = sphi 0, %s41
      %s56 = sphi 0, %s42
      %s60 = sphi 0, %s60
      %s62 = sphi 0, %s60
      %s63 = sphi 0, %s62
      %s77 = sphi 0, %s63
      %s83 = sphi 0, %s85
      %s86 = sphi 0, %s83
      %s87 = sphi 0, %s86
      %s103 = sphi 0, %s87
      %s109 = sphi 0, %s111
      %s112 = sphi 0, %s109
      %s113 = sphi 0, %s112
      %s129 = sphi 0, %s113
      %s135 = sphi 0, %s137
      %s138 = sphi 0, %s135
      %s139 = sphi 0, %s138
      %s155 = sphi 0, %s139
      %s161 = sphi 0, %s163
      %s164 = sphi 0, %s161
      %s165 = sphi 0, %s164
      %s181 = sphi 0, %s165
      %s187 = sphi 0, %s189
      %s190 = sphi 0, %s187
      %s191 = sphi 0, %s190
      %s207 = sphi 0, %s191
      %s213 = sphi 0, %s215
      %s216 = sphi 0, %s213
      %s217 = sphi 0, %s216
      %s233 = sphi 0, %s217
      %s239 = sphi 0, %s241
      %s242 = sphi 0, %s239
      %s243 = sphi 0, %s242
      %s259 = sphi 0, %s243
      %s265 = sphi 0, %s267
      %s268 = sphi 0, %s265
      %s269 = sphi 0, %s268
      %s285 = sphi 0, %s269
      %s291 = sphi 0, %s293
      %s294 = sphi 0, %s291
      %s295 = sphi 0, %s294
      %s311 = sphi 0, %s295
      %s317 = sphi 0, %s319
      %s320 = sphi 0, %s317
      %s321 = sphi 0, %s320
      %s337 = sphi 0, %s321
      %s343 = sphi 0, %s345
      %s346 = sphi 0, %s343
      %s347 = sphi 0, %s346
      %s363 = sphi 0, %s347
      %s369 = sphi 0, %s371
      %s372 = sphi 0, %s369
      %s373 = sphi 0, %s372
      %s389 = sphi 0, %s373
      %s393 = sphi 0, %s393
      %s395 = sphi 0, %s393
      %s396 = sphi 0, %s395
      %s410 = sphi 0, %s396
      %s414 = sphi 0, %s414
      %s416 = sphi 0, %s414
      %s417 = sphi 0, %s416
      %s431 = sphi 0, %s417
      %s435 = sphi 0, %s435
      %s437 = sphi 0, %s435
      %s438 = sphi 0, %s437
      %s452 = sphi 0, %s438
      %s456 = sphi 0, %s456
      %s458 = sphi 0, %s456
      %s459 = sphi 0, %s458
      %s473 = sphi 0, %s459
      %s477 = sphi 0, %s477
      %s479 = sphi 0, %s477
      %s480 = sphi 0, %s479
      %s494 = sphi 0, %s480
    $region4: #{roberta_class_forward.1} parent=1 // loop_header_branch
      %34 = sbr.rel (%p32) target = $region8
    $region5: #{roberta_class_forward.1} parent=1 // loop_body
      %s36 = ssub.s32 %s31, 1
      %s37 = ssub.s32 %s31, 2
      %s38 = sadd.s32 %s31, 1
      %s40 = sadd.s32 %s39, 1
      %p43 = scmp.eq.s32.totalorder %s31, 1
      %p44 = scmp.ne.s32.totalorder %s39, %s41
      %p45 = scmp.eq.s32.totalorder %s31, 0
      %p46 = por %p44, %p45
      %p47 = scmp.ne.s32.totalorder %s39, %s41
      %p48 = scmp.eq.s32.totalorder %s36, 1
      %p49 = por %p47, %p48
      %p50 = scmp.ne.s32.totalorder %s41, %s42
      %p51 = scmp.eq.s32.totalorder %s36, 0
      %p52 = por %p50, %p51
      %p53 = scmp.ne.s32.totalorder %s41, %s42
      %p54 = scmp.eq.s32.totalorder %s37, 1
      %p55 = por %p53, %p54
      %p57 = scmp.ne.s32.totalorder %s42, %s56
      %p58 = scmp.eq.s32.totalorder %s37, 0
      %p59 = por %p57, %p58
      %s61 = sadd.s32 %s60, 1
      %p64 = scmp.eq.s32.totalorder %s31, 1
      %p65 = scmp.ne.s32.totalorder %s60, %s62
      %p66 = scmp.eq.s32.totalorder %s31, 0
      %p67 = por %p65, %p66
      %p68 = scmp.ne.s32.totalorder %s60, %s62
      %p69 = scmp.eq.s32.totalorder %s36, 1
      %p70 = por %p68, %p69
      %p71 = scmp.ne.s32.totalorder %s62, %s63
      %p72 = scmp.eq.s32.totalorder %s36, 0
      %p73 = por %p71, %p72
      %p74 = scmp.ne.s32.totalorder %s62, %s63
      %p75 = scmp.eq.s32.totalorder %s37, 1
      %p76 = por %p74, %p75
      %p78 = scmp.ne.s32.totalorder %s63, %s77
      %p79 = scmp.eq.s32.totalorder %s37, 0
      %p80 = por %p78, %p79
      %s81 = ssub.s32 %s31, %s38
      %p82 = scmp.eq.s32.totalorder %s81, 0
      %s84 = sadd.s32 %s83, 1
      %s85 = scalar_select %p82, %s83, %s84
      %p88 = pneg %p82
      %p89 = scmp.eq.s32.totalorder %s31, 1
      %p90 = por %p88, %p89
      %p91 = scmp.ne.s32.totalorder %s83, %s86
      %p92 = scmp.eq.s32.totalorder %s31, 0
      %p93 = por %p91, %p92
      %p94 = scmp.ne.s32.totalorder %s83, %s86
      %p95 = scmp.eq.s32.totalorder %s36, 1
      %p96 = por %p94, %p95
      %p97 = scmp.ne.s32.totalorder %s86, %s87
      %p98 = scmp.eq.s32.totalorder %s36, 0
      %p99 = por %p97, %p98
      %p100 = scmp.ne.s32.totalorder %s86, %s87
      %p101 = scmp.eq.s32.totalorder %s37, 1
      %p102 = por %p100, %p101
      %p104 = scmp.ne.s32.totalorder %s87, %s103
      %p105 = scmp.eq.s32.totalorder %s37, 0
      %p106 = por %p104, %p105
      %s107 = ssub.s32 %s31, %s38
      %p108 = scmp.eq.s32.totalorder %s107, 0
      %s110 = sadd.s32 %s109, 1
      %s111 = scalar_select %p108, %s109, %s110
      %p114 = pneg %p108
      %p115 = scmp.eq.s32.totalorder %s31, 1
      %p116 = por %p114, %p115
      %p117 = scmp.ne.s32.totalorder %s109, %s112
      %p118 = scmp.eq.s32.totalorder %s31, 0
      %p119 = por %p117, %p118
      %p120 = scmp.ne.s32.totalorder %s109, %s112
      %p121 = scmp.eq.s32.totalorder %s36, 1
      %p122 = por %p120, %p121
      %p123 = scmp.ne.s32.totalorder %s112, %s113
      %p124 = scmp.eq.s32.totalorder %s36, 0
      %p125 = por %p123, %p124
      %p126 = scmp.ne.s32.totalorder %s112, %s113
      %p127 = scmp.eq.s32.totalorder %s37, 1
      %p128 = por %p126, %p127
      %p130 = scmp.ne.s32.totalorder %s113, %s129
      %p131 = scmp.eq.s32.totalorder %s37, 0
      %p132 = por %p130, %p131
      %s133 = ssub.s32 %s31, %s38
      %p134 = scmp.eq.s32.totalorder %s133, 0
      %s136 = sadd.s32 %s135, 1
      %s137 = scalar_select %p134, %s135, %s136
      %p140 = pneg %p134
      %p141 = scmp.eq.s32.totalorder %s31, 1
      %p142 = por %p140, %p141
      %p143 = scmp.ne.s32.totalorder %s135, %s138
      %p144 = scmp.eq.s32.totalorder %s31, 0
      %p145 = por %p143, %p144
      %p146 = scmp.ne.s32.totalorder %s135, %s138
      %p147 = scmp.eq.s32.totalorder %s36, 1
      %p148 = por %p146, %p147
      %p149 = scmp.ne.s32.totalorder %s138, %s139
      %p150 = scmp.eq.s32.totalorder %s36, 0
      %p151 = por %p149, %p150
      %p152 = scmp.ne.s32.totalorder %s138, %s139
      %p153 = scmp.eq.s32.totalorder %s37, 1
      %p154 = por %p152, %p153
      %p156 = scmp.ne.s32.totalorder %s139, %s155
      %p157 = scmp.eq.s32.totalorder %s37, 0
      %p158 = por %p156, %p157
      %s159 = ssub.s32 %s31, %s38
      %p160 = scmp.eq.s32.totalorder %s159, 0
      %s162 = sadd.s32 %s161, 1
      %s163 = scalar_select %p160, %s161, %s162
      %p166 = pneg %p160
      %p167 = scmp.eq.s32.totalorder %s31, 1
      %p168 = por %p166, %p167
      %p169 = scmp.ne.s32.totalorder %s161, %s164
      %p170 = scmp.eq.s32.totalorder %s31, 0
      %p171 = por %p169, %p170
      %p172 = scmp.ne.s32.totalorder %s161, %s164
      %p173 = scmp.eq.s32.totalorder %s36, 1
      %p174 = por %p172, %p173
      %p175 = scmp.ne.s32.totalorder %s164, %s165
      %p176 = scmp.eq.s32.totalorder %s36, 0
      %p177 = por %p175, %p176
      %p178 = scmp.ne.s32.totalorder %s164, %s165
      %p179 = scmp.eq.s32.totalorder %s37, 1
      %p180 = por %p178, %p179
      %p182 = scmp.ne.s32.totalorder %s165, %s181
      %p183 = scmp.eq.s32.totalorder %s37, 0
      %p184 = por %p182, %p183
      %s185 = ssub.s32 %s31, %s38
      %p186 = scmp.eq.s32.totalorder %s185, 0
      %s188 = sadd.s32 %s187, 1
      %s189 = scalar_select %p186, %s187, %s188
      %p192 = pneg %p186
      %p193 = scmp.eq.s32.totalorder %s31, 1
      %p194 = por %p192, %p193
      %p195 = scmp.ne.s32.totalorder %s187, %s190
      %p196 = scmp.eq.s32.totalorder %s31, 0
      %p197 = por %p195, %p196
      %p198 = scmp.ne.s32.totalorder %s187, %s190
      %p199 = scmp.eq.s32.totalorder %s36, 1
      %p200 = por %p198, %p199
      %p201 = scmp.ne.s32.totalorder %s190, %s191
      %p202 = scmp.eq.s32.totalorder %s36, 0
      %p203 = por %p201, %p202
      %p204 = scmp.ne.s32.totalorder %s190, %s191
      %p205 = scmp.eq.s32.totalorder %s37, 1
      %p206 = por %p204, %p205
      %p208 = scmp.ne.s32.totalorder %s191, %s207
      %p209 = scmp.eq.s32.totalorder %s37, 0
      %p210 = por %p208, %p209
      %s211 = ssub.s32 %s31, %s38
      %p212 = scmp.eq.s32.totalorder %s211, 0
      %s214 = sadd.s32 %s213, 1
      %s215 = scalar_select %p212, %s213, %s214
      %p218 = pneg %p212
      %p219 = scmp.eq.s32.totalorder %s31, 1
      %p220 = por %p218, %p219
      %p221 = scmp.ne.s32.totalorder %s213, %s216
      %p222 = scmp.eq.s32.totalorder %s31, 0
      %p223 = por %p221, %p222
      %p224 = scmp.ne.s32.totalorder %s213, %s216
      %p225 = scmp.eq.s32.totalorder %s36, 1
      %p226 = por %p224, %p225
      %p227 = scmp.ne.s32.totalorder %s216, %s217
      %p228 = scmp.eq.s32.totalorder %s36, 0
      %p229 = por %p227, %p228
      %p230 = scmp.ne.s32.totalorder %s216, %s217
      %p231 = scmp.eq.s32.totalorder %s37, 1
      %p232 = por %p230, %p231
      %p234 = scmp.ne.s32.totalorder %s217, %s233
      %p235 = scmp.eq.s32.totalorder %s37, 0
      %p236 = por %p234, %p235
      %s237 = ssub.s32 %s31, %s38
      %p238 = scmp.eq.s32.totalorder %s237, 0
      %s240 = sadd.s32 %s239, 1
      %s241 = scalar_select %p238, %s239, %s240
      %p244 = pneg %p238
      %p245 = scmp.eq.s32.totalorder %s31, 1
      %p246 = por %p244, %p245
      %p247 = scmp.ne.s32.totalorder %s239, %s242
      %p248 = scmp.eq.s32.totalorder %s31, 0
      %p249 = por %p247, %p248
      %p250 = scmp.ne.s32.totalorder %s239, %s242
      %p251 = scmp.eq.s32.totalorder %s36, 1
      %p252 = por %p250, %p251
      %p253 = scmp.ne.s32.totalorder %s242, %s243
      %p254 = scmp.eq.s32.totalorder %s36, 0
      %p255 = por %p253, %p254
      %p256 = scmp.ne.s32.totalorder %s242, %s243
      %p257 = scmp.eq.s32.totalorder %s37, 1
      %p258 = por %p256, %p257
      %p260 = scmp.ne.s32.totalorder %s243, %s259
      %p261 = scmp.eq.s32.totalorder %s37, 0
      %p262 = por %p260, %p261
      %s263 = ssub.s32 %s31, %s38
      %p264 = scmp.eq.s32.totalorder %s263, 0
      %s266 = sadd.s32 %s265, 1
      %s267 = scalar_select %p264, %s265, %s266
      %p270 = pneg %p264
      %p271 = scmp.eq.s32.totalorder %s31, 1
      %p272 = por %p270, %p271
      %p273 = scmp.ne.s32.totalorder %s265, %s268
      %p274 = scmp.eq.s32.totalorder %s31, 0
      %p275 = por %p273, %p274
      %p276 = scmp.ne.s32.totalorder %s265, %s268
      %p277 = scmp.eq.s32.totalorder %s36, 1
      %p278 = por %p276, %p277
      %p279 = scmp.ne.s32.totalorder %s268, %s269
      %p280 = scmp.eq.s32.totalorder %s36, 0
      %p281 = por %p279, %p280
      %p282 = scmp.ne.s32.totalorder %s268, %s269
      %p283 = scmp.eq.s32.totalorder %s37, 1
      %p284 = por %p282, %p283
      %p286 = scmp.ne.s32.totalorder %s269, %s285
      %p287 = scmp.eq.s32.totalorder %s37, 0
      %p288 = por %p286, %p287
      %s289 = ssub.s32 %s31, %s38
      %p290 = scmp.eq.s32.totalorder %s289, 0
      %s292 = sadd.s32 %s291, 1
      %s293 = scalar_select %p290, %s291, %s292
      %p296 = pneg %p290
      %p297 = scmp.eq.s32.totalorder %s31, 1
      %p298 = por %p296, %p297
      %p299 = scmp.ne.s32.totalorder %s291, %s294
      %p300 = scmp.eq.s32.totalorder %s31, 0
      %p301 = por %p299, %p300
      %p302 = scmp.ne.s32.totalorder %s291, %s294
      %p303 = scmp.eq.s32.totalorder %s36, 1
      %p304 = por %p302, %p303
      %p305 = scmp.ne.s32.totalorder %s294, %s295
      %p306 = scmp.eq.s32.totalorder %s36, 0
      %p307 = por %p305, %p306
      %p308 = scmp.ne.s32.totalorder %s294, %s295
      %p309 = scmp.eq.s32.totalorder %s37, 1
      %p310 = por %p308, %p309
      %p312 = scmp.ne.s32.totalorder %s295, %s311
      %p313 = scmp.eq.s32.totalorder %s37, 0
      %p314 = por %p312, %p313
      %s315 = ssub.s32 %s31, %s38
      %p316 = scmp.eq.s32.totalorder %s315, 0
      %s318 = sadd.s32 %s317, 1
      %s319 = scalar_select %p316, %s317, %s318
      %p322 = pneg %p316
      %p323 = scmp.eq.s32.totalorder %s31, 1
      %p324 = por %p322, %p323
      %p325 = scmp.ne.s32.totalorder %s317, %s320
      %p326 = scmp.eq.s32.totalorder %s31, 0
      %p327 = por %p325, %p326
      %p328 = scmp.ne.s32.totalorder %s317, %s320
      %p329 = scmp.eq.s32.totalorder %s36, 1
      %p330 = por %p328, %p329
      %p331 = scmp.ne.s32.totalorder %s320, %s321
      %p332 = scmp.eq.s32.totalorder %s36, 0
      %p333 = por %p331, %p332
      %p334 = scmp.ne.s32.totalorder %s320, %s321
      %p335 = scmp.eq.s32.totalorder %s37, 1
      %p336 = por %p334, %p335
      %p338 = scmp.ne.s32.totalorder %s321, %s337
      %p339 = scmp.eq.s32.totalorder %s37, 0
      %p340 = por %p338, %p339
      %s341 = ssub.s32 %s31, %s38
      %p342 = scmp.eq.s32.totalorder %s341, 0
      %s344 = sadd.s32 %s343, 1
      %s345 = scalar_select %p342, %s343, %s344
      %p348 = pneg %p342
      %p349 = scmp.eq.s32.totalorder %s31, 1
      %p350 = por %p348, %p349
      %p351 = scmp.ne.s32.totalorder %s343, %s346
      %p352 = scmp.eq.s32.totalorder %s31, 0
      %p353 = por %p351, %p352
      %p354 = scmp.ne.s32.totalorder %s343, %s346
      %p355 = scmp.eq.s32.totalorder %s36, 1
      %p356 = por %p354, %p355
      %p357 = scmp.ne.s32.totalorder %s346, %s347
      %p358 = scmp.eq.s32.totalorder %s36, 0
      %p359 = por %p357, %p358
      %p360 = scmp.ne.s32.totalorder %s346, %s347
      %p361 = scmp.eq.s32.totalorder %s37, 1
      %p362 = por %p360, %p361
      %p364 = scmp.ne.s32.totalorder %s347, %s363
      %p365 = scmp.eq.s32.totalorder %s37, 0
      %p366 = por %p364, %p365
      %s367 = ssub.s32 %s31, %s38
      %p368 = scmp.eq.s32.totalorder %s367, 0
      %s370 = sadd.s32 %s369, 1
      %s371 = scalar_select %p368, %s369, %s370
      %p374 = pneg %p368
      %p375 = scmp.eq.s32.totalorder %s31, 1
      %p376 = por %p374, %p375
      %p377 = scmp.ne.s32.totalorder %s369, %s372
      %p378 = scmp.eq.s32.totalorder %s31, 0
      %p379 = por %p377, %p378
      %p380 = scmp.ne.s32.totalorder %s369, %s372
      %p381 = scmp.eq.s32.totalorder %s36, 1
      %p382 = por %p380, %p381
      %p383 = scmp.ne.s32.totalorder %s372, %s373
      %p384 = scmp.eq.s32.totalorder %s36, 0
      %p385 = por %p383, %p384
      %p386 = scmp.ne.s32.totalorder %s372, %s373
      %p387 = scmp.eq.s32.totalorder %s37, 1
      %p388 = por %p386, %p387
      %p390 = scmp.ne.s32.totalorder %s373, %s389
      %p391 = scmp.eq.s32.totalorder %s37, 0
      %p392 = por %p390, %p391
      %s394 = sadd.s32 %s393, 1
      %p397 = scmp.eq.s32.totalorder %s31, 1
      %p398 = scmp.ne.s32.totalorder %s393, %s395
      %p399 = scmp.eq.s32.totalorder %s31, 0
      %p400 = por %p398, %p399
      %p401 = scmp.ne.s32.totalorder %s393, %s395
      %p402 = scmp.eq.s32.totalorder %s36, 1
      %p403 = por %p401, %p402
      %p404 = scmp.ne.s32.totalorder %s395, %s396
      %p405 = scmp.eq.s32.totalorder %s36, 0
      %p406 = por %p404, %p405
      %p407 = scmp.ne.s32.totalorder %s395, %s396
      %p408 = scmp.eq.s32.totalorder %s37, 1
      %p409 = por %p407, %p408
      %p411 = scmp.ne.s32.totalorder %s396, %s410
      %p412 = scmp.eq.s32.totalorder %s37, 0
      %p413 = por %p411, %p412
      %s415 = sadd.s32 %s414, 1
      %p418 = scmp.eq.s32.totalorder %s31, 1
      %p419 = scmp.ne.s32.totalorder %s414, %s416
      %p420 = scmp.eq.s32.totalorder %s31, 0
      %p421 = por %p419, %p420
      %p422 = scmp.ne.s32.totalorder %s414, %s416
      %p423 = scmp.eq.s32.totalorder %s36, 1
      %p424 = por %p422, %p423
      %p425 = scmp.ne.s32.totalorder %s416, %s417
      %p426 = scmp.eq.s32.totalorder %s36, 0
      %p427 = por %p425, %p426
      %p428 = scmp.ne.s32.totalorder %s416, %s417
      %p429 = scmp.eq.s32.totalorder %s37, 1
      %p430 = por %p428, %p429
      %p432 = scmp.ne.s32.totalorder %s417, %s431
      %p433 = scmp.eq.s32.totalorder %s37, 0
      %p434 = por %p432, %p433
      %s436 = sadd.s32 %s435, 1
      %p439 = scmp.eq.s32.totalorder %s31, 1
      %p440 = scmp.ne.s32.totalorder %s435, %s437
      %p441 = scmp.eq.s32.totalorder %s31, 0
      %p442 = por %p440, %p441
      %p443 = scmp.ne.s32.totalorder %s435, %s437
      %p444 = scmp.eq.s32.totalorder %s36, 1
      %p445 = por %p443, %p444
      %p446 = scmp.ne.s32.totalorder %s437, %s438
      %p447 = scmp.eq.s32.totalorder %s36, 0
      %p448 = por %p446, %p447
      %p449 = scmp.ne.s32.totalorder %s437, %s438
      %p450 = scmp.eq.s32.totalorder %s37, 1
      %p451 = por %p449, %p450
      %p453 = scmp.ne.s32.totalorder %s438, %s452
      %p454 = scmp.eq.s32.totalorder %s37, 0
      %p455 = por %p453, %p454
      %s457 = sadd.s32 %s456, 1
      %p460 = scmp.eq.s32.totalorder %s31, 1
      %p461 = scmp.ne.s32.totalorder %s456, %s458
      %p462 = scmp.eq.s32.totalorder %s31, 0
      %p463 = por %p461, %p462
      %p464 = scmp.ne.s32.totalorder %s456, %s458
      %p465 = scmp.eq.s32.totalorder %s36, 1
      %p466 = por %p464, %p465
      %p467 = scmp.ne.s32.totalorder %s458, %s459
      %p468 = scmp.eq.s32.totalorder %s36, 0
      %p469 = por %p467, %p468
      %p470 = scmp.ne.s32.totalorder %s458, %s459
      %p471 = scmp.eq.s32.totalorder %s37, 1
      %p472 = por %p470, %p471
      %p474 = scmp.ne.s32.totalorder %s459, %s473
      %p475 = scmp.eq.s32.totalorder %s37, 0
      %p476 = por %p474, %p475
      %s478 = sadd.s32 %s477, 1
      %p481 = scmp.eq.s32.totalorder %s31, 1
      %p482 = scmp.ne.s32.totalorder %s477, %s479
      %p483 = scmp.eq.s32.totalorder %s31, 0
      %p484 = por %p482, %p483
      %p485 = scmp.ne.s32.totalorder %s477, %s479
      %p486 = scmp.eq.s32.totalorder %s36, 1
      %p487 = por %p485, %p486
      %p488 = scmp.ne.s32.totalorder %s479, %s480
      %p489 = scmp.eq.s32.totalorder %s36, 0
      %p490 = por %p488, %p489
      %p491 = scmp.ne.s32.totalorder %s479, %s480
      %p492 = scmp.eq.s32.totalorder %s37, 1
      %p493 = por %p491, %p492
      %p495 = scmp.ne.s32.totalorder %s480, %s494
      %p496 = scmp.eq.s32.totalorder %s37, 0
      %p497 = por %p495, %p496
      %p498 = scmp.le.s32.totalorder 1, %s31
      %p499 = scmp.lt.s32.totalorder %s31, 3
      %p500 = pnand %p498, %p499
      %p501 = pneg %p500
      // Predicated region
      $region9: #{roberta_class_forward.1} parent=5 // pred_check
        _
      $region10: #{roberta_class_forward.1} parent=5 // pred_check_branch
        %503 = sbr.rel (%p500) target = $region12
      $region11: #{roberta_class_forward.1} parent=5 // pred_region
        %s504 = ssub.s32 %s31, 1
        // Predicated region
        $region13: #{roberta_class_forward.1} parent=11 // pred_check
          %p505 = pneg %p52
        $region14: #{roberta_class_forward.1} parent=11 // pred_check_branch
          %507 = sbr.rel (%p505) target = $region16
        $region15: #{roberta_class_forward.1} parent=11 // pred_region
          _
        $region16: #{roberta_class_forward.1} parent=11 // pred_fallthru
          _
        // Predicated region
        $region17: #{roberta_class_forward.1} parent=11 // pred_check
          %p508 = pneg %p73
        $region18: #{roberta_class_forward.1} parent=11 // pred_check_branch
          %510 = sbr.rel (%p508) target = $region20
        $region19: #{roberta_class_forward.1} parent=11 // pred_region
          _
        $region20: #{roberta_class_forward.1} parent=11 // pred_fallthru
          _
        // Predicated region
        $region21: #{roberta_class_forward.1} parent=11 // pred_check
          %p511 = pneg %p406
        $region22: #{roberta_class_forward.1} parent=11 // pred_check_branch
          %513 = sbr.rel (%p511) target = $region24
        $region23: #{roberta_class_forward.1} parent=11 // pred_region
          %s515 = ssub.s32 1024, 1024
          %516 = vsyncadd [#allocation7], %s515
          %s517 = sshll.u32 [#allocation8], 4
          %s518 = int_to_ptr.vmem [resolvable:$true] %s517
          %523 = dma.hbm_to_vmem [thread:$0]  %s14, 1024, %s518, [#allocation7], 64, 64, 4
        $region24: #{roberta_class_forward.1} parent=11 // pred_fallthru
          _
        // Predicated region
        $region25: #{roberta_class_forward.1} parent=11 // pred_check
          %p524 = pneg %p427
        $region26: #{roberta_class_forward.1} parent=11 // pred_check_branch
          %526 = sbr.rel (%p524) target = $region28
        $region27: #{roberta_class_forward.1} parent=11 // pred_region
          _
        $region28: #{roberta_class_forward.1} parent=11 // pred_fallthru
          _
        // Predicated region
        $region29: #{roberta_class_forward.1} parent=11 // pred_check
          %p527 = pneg %p448
        $region30: #{roberta_class_forward.1} parent=11 // pred_check_branch
          %529 = sbr.rel (%p527) target = $region32
        $region31: #{roberta_class_forward.1} parent=11 // pred_region
          _
        $region32: #{roberta_class_forward.1} parent=11 // pred_fallthru
          _
        // Predicated region
        $region33: #{roberta_class_forward.1} parent=11 // pred_check
          %p530 = pneg %p469
        $region34: #{roberta_class_forward.1} parent=11 // pred_check_branch
          %532 = sbr.rel (%p530) target = $region36
        $region35: #{roberta_class_forward.1} parent=11 // pred_region
          _
        $region36: #{roberta_class_forward.1} parent=11 // pred_fallthru
          _
      $region12: #{roberta_class_forward.1} parent=5 // pred_fallthru
        _
      %p533 = scmp.lt.s32.totalorder %s31, 2
      // Predicated region
      $region37: #{roberta_class_forward.1} parent=5 // pred_check
        %p534 = pneg %p533
      $region38: #{roberta_class_forward.1} parent=5 // pred_check_branch
        %536 = sbr.rel (%p534) target = $region40
      $region39: #{roberta_class_forward.1} parent=5 // pred_region
        // Predicated region
        $region41: #{roberta_class_forward.1} parent=39 // pred_check
          %p537 = pneg %p93
        $region42: #{roberta_class_forward.1} parent=39 // pred_check_branch
          %539 = sbr.rel (%p537) target = $region44
        $region43: #{roberta_class_forward.1} parent=39 // pred_region
          %s540 = sand.u32 %s83, 1
          %s541 = scalar_lea.sflag [#allocation4], %s540
          %s542 = sand.u32 %s83, 1
          %s543 = smul.addr %s542, 192
          %s544 = scalar_lea.vmem [#allocation3], %s543
          %s546 = ssub.s32 3072, 3072
          %547 = vsyncadd %s541, %s546
          %s548 = smul.addr %s31, 48
          %s549 = smul.addr %s548, 64
          %s550 = scalar_lea.hbm %s2, %s549
          %s551 = sshll.u32 %s544, 4
          %s552 = int_to_ptr.vmem [resolvable:$true] %s551
          %557 = dma.hbm_to_vmem [thread:$0]  %s550, 3072, %s552, %s541, 192, 192, 12
        $region44: #{roberta_class_forward.1} parent=39 // pred_fallthru
          _
        // Predicated region
        $region45: #{roberta_class_forward.1} parent=39 // pred_check
          %p558 = pneg %p119
        $region46: #{roberta_class_forward.1} parent=39 // pred_check_branch
          %560 = sbr.rel (%p558) target = $region48
        $region47: #{roberta_class_forward.1} parent=39 // pred_region
          %p561 = scmp.lt.s32.totalorder %s31, 1
          %s562 = scalar_select %p561, %s31, 1
          %s563 = smul.addr %s562, 3
          %s564 = scalar_lea.vmem %s3, %s563
        $region48: #{roberta_class_forward.1} parent=39 // pred_fallthru
          _
        // Predicated region
        $region49: #{roberta_class_forward.1} parent=39 // pred_check
          %p565 = pneg %p145
        $region50: #{roberta_class_forward.1} parent=39 // pred_check_branch
          %567 = sbr.rel (%p565) target = $region52
        $region51: #{roberta_class_forward.1} parent=39 // pred_region
          %s568 = sand.u32 %s31, 1
          %s569 = scalar_lea.sflag [#allocation7], %s568
          %s570 = sand.u32 %s135, 1
          %s571 = smul.addr %s570, 64
          %s572 = scalar_lea.vmem [#allocation6], %s571
          %s574 = ssub.s32 1024, 1024
          %575 = vsyncadd %s569, %s574
          %s576 = smul.addr %s31, 16
          %s577 = smul.addr %s576, 64
          %s578 = scalar_lea.hbm %s4, %s577
          %s579 = sshll.u32 %s572, 4
          %s580 = int_to_ptr.vmem [resolvable:$true] %s579
          %585 = dma.hbm_to_vmem [thread:$0]  %s578, 1024, %s580, %s569, 64, 64, 4
        $region52: #{roberta_class_forward.1} parent=39 // pred_fallthru
          _
        // Predicated region
        $region53: #{roberta_class_forward.1} parent=39 // pred_check
          %p586 = pneg %p171
        $region54: #{roberta_class_forward.1} parent=39 // pred_check_branch
          %588 = sbr.rel (%p586) target = $region56
        $region55: #{roberta_class_forward.1} parent=39 // pred_region
          %p589 = scmp.lt.s32.totalorder %s31, 1
          %s590 = scalar_select %p589, %s31, 1
          %s591 = scalar_lea.vmem %s5, %s590
        $region56: #{roberta_class_forward.1} parent=39 // pred_fallthru
          _
        // Predicated region
        $region57: #{roberta_class_forward.1} parent=39 // pred_check
          %p592 = pneg %p197
        $region58: #{roberta_class_forward.1} parent=39 // pred_check_branch
          %594 = sbr.rel (%p592) target = $region60
        $region59: #{roberta_class_forward.1} parent=39 // pred_region
          %p595 = scmp.lt.s32.totalorder %s31, 1
          %s596 = scalar_select %p595, %s31, 1
          %s597 = scalar_lea.vmem %s6, %s596
        $region60: #{roberta_class_forward.1} parent=39 // pred_fallthru
          _
        // Predicated region
        $region61: #{roberta_class_forward.1} parent=39 // pred_check
          %p598 = pneg %p223
        $region62: #{roberta_class_forward.1} parent=39 // pred_check_branch
          %600 = sbr.rel (%p598) target = $region64
        $region63: #{roberta_class_forward.1} parent=39 // pred_region
          %p601 = scmp.lt.s32.totalorder %s31, 1
          %s602 = scalar_select %p601, %s31, 1
          %s603 = scalar_lea.vmem %s7, %s602
        $region64: #{roberta_class_forward.1} parent=39 // pred_fallthru
          _
        // Predicated region
        $region65: #{roberta_class_forward.1} parent=39 // pred_check
          %p604 = pneg %p249
        $region66: #{roberta_class_forward.1} parent=39 // pred_check_branch
          %606 = sbr.rel (%p604) target = $region68
        $region67: #{roberta_class_forward.1} parent=39 // pred_region
          %p607 = scmp.lt.s32.totalorder %s31, 1
          %s608 = scalar_select %p607, %s31, 1
          %s609 = smul.addr %s608, 32
          %s610 = smul.addr %s609, 4
          %s611 = scalar_lea.vmem %s8, %s610
        $region68: #{roberta_class_forward.1} parent=39 // pred_fallthru
          _
        // Predicated region
        $region69: #{roberta_class_forward.1} parent=39 // pred_check
          %p612 = pneg %p275
        $region70: #{roberta_class_forward.1} parent=39 // pred_check_branch
          %614 = sbr.rel (%p612) target = $region72
        $region71: #{roberta_class_forward.1} parent=39 // pred_region
          %p615 = scmp.lt.s32.totalorder %s31, 1
          %s616 = scalar_select %p615, %s31, 1
          %s617 = smul.addr %s616, 2
          %s618 = scalar_lea.vmem %s9, %s617
        $region72: #{roberta_class_forward.1} parent=39 // pred_fallthru
          _
        // Predicated region
        $region73: #{roberta_class_forward.1} parent=39 // pred_check
          %p619 = pneg %p301
        $region74: #{roberta_class_forward.1} parent=39 // pred_check_branch
          %621 = sbr.rel (%p619) target = $region76
        $region75: #{roberta_class_forward.1} parent=39 // pred_region
          %p622 = scmp.lt.s32.totalorder %s31, 1
          %s623 = scalar_select %p622, %s31, 1
          %s624 = smul.addr %s623, 32
          %s625 = smul.addr %s624, 4
          %s626 = scalar_lea.vmem %s10, %s625
        $region76: #{roberta_class_forward.1} parent=39 // pred_fallthru
          _
        // Predicated region
        $region77: #{roberta_class_forward.1} parent=39 // pred_check
          %p627 = pneg %p327
        $region78: #{roberta_class_forward.1} parent=39 // pred_check_branch
          %629 = sbr.rel (%p627) target = $region80
        $region79: #{roberta_class_forward.1} parent=39 // pred_region
          %p630 = scmp.lt.s32.totalorder %s31, 1
          %s631 = scalar_select %p630, %s31, 1
          %s632 = scalar_lea.vmem %s11, %s631
        $region80: #{roberta_class_forward.1} parent=39 // pred_fallthru
          _
        // Predicated region
        $region81: #{roberta_class_forward.1} parent=39 // pred_check
          %p633 = pneg %p353
        $region82: #{roberta_class_forward.1} parent=39 // pred_check_branch
          %635 = sbr.rel (%p633) target = $region84
        $region83: #{roberta_class_forward.1} parent=39 // pred_region
          %p636 = scmp.lt.s32.totalorder %s31, 1
          %s637 = scalar_select %p636, %s31, 1
          %s638 = scalar_lea.vmem %s12, %s637
        $region84: #{roberta_class_forward.1} parent=39 // pred_fallthru
          _
        // Predicated region
        $region85: #{roberta_class_forward.1} parent=39 // pred_check
          %p639 = pneg %p379
        $region86: #{roberta_class_forward.1} parent=39 // pred_check_branch
          %641 = sbr.rel (%p639) target = $region88
        $region87: #{roberta_class_forward.1} parent=39 // pred_region
          %p642 = scmp.lt.s32.totalorder %s31, 1
          %s643 = scalar_select %p642, %s31, 1
          %s644 = scalar_lea.vmem %s13, %s643
        $region88: #{roberta_class_forward.1} parent=39 // pred_fallthru
          _
      $region40: #{roberta_class_forward.1} parent=5 // pred_fallthru
        _
      %p645 = scmp.le.s32.totalorder 1, %s31
      %p646 = scmp.lt.s32.totalorder %s31, 3
      %p647 = pnand %p645, %p646
      %p648 = pneg %p647
      // Predicated region
      $region89: #{roberta_class_forward.1} parent=5 // pred_check
        _
      $region90: #{roberta_class_forward.1} parent=5 // pred_check_branch
        %650 = sbr.rel (%p647) target = $region92
      $region91: #{roberta_class_forward.1} parent=5 // pred_region
        %s651 = ssub.s32 %s31, 1
        %s652 = sand.u32 %s86, 1
        %s653 = scalar_lea.sflag [#allocation4], %s652
        %s654 = sand.u32 %s86, 1
        %s655 = smul.addr %s654, 192
        %s656 = scalar_lea.vmem [#allocation3], %s655
        // Predicated region
        $region93: #{roberta_class_forward.1} parent=91 // pred_check
          %p657 = pneg %p99
        $region94: #{roberta_class_forward.1} parent=91 // pred_check_branch
          %659 = sbr.rel (%p657) target = $region96
        $region95: #{roberta_class_forward.1} parent=91 // pred_region
          %660 = dma.done %s653, 3072
        $region96: #{roberta_class_forward.1} parent=91 // pred_fallthru
          _
        %s661 = sand.u32 %s36, 1
        %s662 = scalar_lea.sflag [#allocation7], %s661
        %s663 = sand.u32 %s138, 1
        %s664 = smul.addr %s663, 64
        %s665 = scalar_lea.vmem [#allocation6], %s664
        // Predicated region
        $region97: #{roberta_class_forward.1} parent=91 // pred_check
          %p666 = pneg %p151
        $region98: #{roberta_class_forward.1} parent=91 // pred_check_branch
          %668 = sbr.rel (%p666) target = $region100
        $region99: #{roberta_class_forward.1} parent=91 // pred_region
          %669 = dma.done %s662, 1024
        $region100: #{roberta_class_forward.1} parent=91 // pred_fallthru
          _
        // Predicated region
        $region101: #{roberta_class_forward.1} parent=91 // pred_check
          %p670 = pneg %p406
        $region102: #{roberta_class_forward.1} parent=91 // pred_check_branch
          %672 = sbr.rel (%p670) target = $region104
        $region103: #{roberta_class_forward.1} parent=91 // pred_region
          %673 = dma.done [#allocation7], 1024
        $region104: #{roberta_class_forward.1} parent=91 // pred_fallthru
          _
        %p674 = pneg %p52
        %p675 = pneg %p49
        %p676 = pneg %p73
        %p677 = pneg %p70
        %s678 = sand.u32 %s86, 1
        %s679 = scalar_lea.sflag [#allocation4], %s678
        %s680 = sand.u32 %s86, 1
        %s681 = smul.addr %s680, 192
        %s682 = scalar_lea.vmem [#allocation3], %s681
        %p683 = pneg %p99
        %p684 = pneg %p96
        %p685 = scmp.lt.s32.totalorder %s36, 1
        %s686 = scalar_select %p685, %s36, 1
        %s687 = smul.addr %s686, 3
        %s688 = scalar_lea.vmem %s3, %s687
        %p689 = pneg %p125
        %p690 = pneg %p122
        %s691 = sand.u32 %s36, 1
        %s692 = scalar_lea.sflag [#allocation7], %s691
        %s693 = sand.u32 %s138, 1
        %s694 = smul.addr %s693, 64
        %s695 = scalar_lea.vmem [#allocation6], %s694
        %p696 = pneg %p151
        %p697 = pneg %p148
        %p698 = scmp.lt.s32.totalorder %s36, 1
        %s699 = scalar_select %p698, %s36, 1
        %s700 = scalar_lea.vmem %s5, %s699
        %p701 = pneg %p177
        %p702 = pneg %p174
        %p703 = scmp.lt.s32.totalorder %s36, 1
        %s704 = scalar_select %p703, %s36, 1
        %s705 = scalar_lea.vmem %s6, %s704
        %p706 = pneg %p203
        %p707 = pneg %p200
        %p708 = scmp.lt.s32.totalorder %s36, 1
        %s709 = scalar_select %p708, %s36, 1
        %s710 = scalar_lea.vmem %s7, %s709
        %p711 = pneg %p229
        %p712 = pneg %p226
        %p713 = scmp.lt.s32.totalorder %s36, 1
        %s714 = scalar_select %p713, %s36, 1
        %s715 = smul.addr %s714, 32
        %s716 = smul.addr %s715, 4
        %s717 = scalar_lea.vmem %s8, %s716
        %p718 = pneg %p255
        %p719 = pneg %p252
        %p720 = scmp.lt.s32.totalorder %s36, 1
        %s721 = scalar_select %p720, %s36, 1
        %s722 = smul.addr %s721, 2
        %s723 = scalar_lea.vmem %s9, %s722
        %p724 = pneg %p281
        %p725 = pneg %p278
        %p726 = scmp.lt.s32.totalorder %s36, 1
        %s727 = scalar_select %p726, %s36, 1
        %s728 = smul.addr %s727, 32
        %s729 = smul.addr %s728, 4
        %s730 = scalar_lea.vmem %s10, %s729
        %p731 = pneg %p307
        %p732 = pneg %p304
        %p733 = scmp.lt.s32.totalorder %s36, 1
        %s734 = scalar_select %p733, %s36, 1
        %s735 = scalar_lea.vmem %s11, %s734
        %p736 = pneg %p333
        %p737 = pneg %p330
        %p738 = scmp.lt.s32.totalorder %s36, 1
        %s739 = scalar_select %p738, %s36, 1
        %s740 = scalar_lea.vmem %s12, %s739
        %p741 = pneg %p359
        %p742 = pneg %p356
        %p743 = scmp.lt.s32.totalorder %s36, 1
        %s744 = scalar_select %p743, %s36, 1
        %s745 = scalar_lea.vmem %s13, %s744
        %p746 = pneg %p385
        %p747 = pneg %p382
        %p748 = pneg %p406
        %p749 = pneg %p403
        %p750 = pneg %p427
        %p751 = pneg %p424
        %p752 = pneg %p448
        %p753 = pneg %p445
        %p754 = pneg %p469
        %p755 = pneg %p466
        %p756 = pneg %p490
        %p757 = pneg %p487
        %p758 = scmp.lt.s32.totalorder %s36, 1
        %s759 = scalar_select %p758, %s36, 1
        %s760 = smul.addr %s759, 3
        %s761 = scalar_lea.vmem %s3, %s760
        %p762 = scmp.lt.s32.totalorder %s36, 1
        %s763 = scalar_select %p762, %s36, 1
        %s764 = scalar_lea.vmem %s5, %s763
        %p765 = scmp.lt.s32.totalorder %s36, 1
        %s766 = scalar_select %p765, %s36, 1
        %s767 = scalar_lea.vmem %s6, %s766
        %p768 = scmp.lt.s32.totalorder %s36, 1
        %s769 = scalar_select %p768, %s36, 1
        %s770 = scalar_lea.vmem %s7, %s769
        %p771 = scmp.lt.s32.totalorder %s36, 1
        %s772 = scalar_select %p771, %s36, 1
        %s773 = smul.addr %s772, 32
        %s774 = smul.addr %s773, 4
        %s775 = scalar_lea.vmem %s8, %s774
        %p776 = scmp.lt.s32.totalorder %s36, 1
        %s777 = scalar_select %p776, %s36, 1
        %s778 = smul.addr %s777, 2
        %s779 = scalar_lea.vmem %s9, %s778
        %p780 = scmp.lt.s32.totalorder %s36, 1
        %s781 = scalar_select %p780, %s36, 1
        %s782 = smul.addr %s781, 32
        %s783 = smul.addr %s782, 4
        %s784 = scalar_lea.vmem %s10, %s783
        %p785 = scmp.lt.s32.totalorder %s36, 1
        %s786 = scalar_select %p785, %s36, 1
        %s787 = scalar_lea.vmem %s11, %s786
        %p788 = scmp.lt.s32.totalorder %s36, 1
        %s789 = scalar_select %p788, %s36, 1
        %s790 = scalar_lea.vmem %s12, %s789
        %p791 = scmp.lt.s32.totalorder %s36, 1
        %s792 = scalar_select %p791, %s36, 1
        %s793 = scalar_lea.vmem %s13, %s792
        %p795 = scmp.eq.s32.totalorder %s36, 0
        // Predicated region
        $region105: #{roberta_class_forward.1} parent=91 // pred_check
          %p796 = pneg %p795
        $region106: #{roberta_class_forward.1} parent=91 // pred_check_branch
          %798 = sbr.rel (%p796) target = $region108
        $region107: #{roberta_class_forward.1} parent=91 // pred_region
          %v799 = vld [vmem:[%s0] sm:$0xf]
          %v800 = vld [vmem:[%s0 + $0x4] sm:$0xf]
          %v803 = vunpack.c.l.b16 %v799
          %v804 = vunpack.c.l.b16 %v800
          %v805 = vpack.c.b16 %v804, %v803
          %807 = vst [vmem:[#allocation2] sm:$0xff] %v805
        $region108: #{roberta_class_forward.1} parent=91 // pred_fallthru
          _
        %v808 = vld [vmem:[#allocation2] sm:$0xff]
        %v809 = vld [vmem:[%s1] sm:$0x1]
        %v810 = vld [vmem:[%s1 + $0x1] sm:$0x1]
        %v811 = vld [vmem:[%s656] sm:$0xff]
        %v812 = vld [vmem:[%s656 + $0x8] sm:$0xf]
        %v813 = vld [vmem:[%s656 + $0xc] sm:$0xff]
        %v814 = vld [vmem:[%s656 + $0x14] sm:$0xf]
        %v815 = vld [vmem:[%s656 + $0x18] sm:$0xff]
        %v816 = vld [vmem:[%s656 + $0x20] sm:$0xf]
        %v817 = vld [vmem:[%s656 + $0x24] sm:$0xff]
        %v818 = vld [vmem:[%s656 + $0x2c] sm:$0xf]
        %v819 = vld [vmem:[%s656 + $0x30] sm:$0xff]
        %v820 = vld [vmem:[%s656 + $0x38] sm:$0xf]
        %v821 = vld [vmem:[%s656 + $0x3c] sm:$0xff]
        %v822 = vld [vmem:[%s656 + $0x44] sm:$0xf]
        %v823 = vld [vmem:[%s656 + $0x48] sm:$0xff]
        %v824 = vld [vmem:[%s656 + $0x50] sm:$0xf]
        %v825 = vld [vmem:[%s656 + $0x54] sm:$0xff]
        %v826 = vld [vmem:[%s656 + $0x5c] sm:$0xf]
        %v827 = vld [vmem:[%s656 + $0x60] sm:$0xff]
        %v828 = vld [vmem:[%s656 + $0x68] sm:$0xf]
        %v829 = vld [vmem:[%s656 + $0x6c] sm:$0xff]
        %v830 = vld [vmem:[%s656 + $0x74] sm:$0xf]
        %v831 = vld [vmem:[%s656 + $0x78] sm:$0xff]
        %v832 = vld [vmem:[%s656 + $0x80] sm:$0xf]
        %v833 = vld [vmem:[%s656 + $0x84] sm:$0xff]
        %v834 = vld [vmem:[%s656 + $0x8c] sm:$0xf]
        %v835 = vld [vmem:[%s656 + $0x90] sm:$0xff]
        %v836 = vld [vmem:[%s656 + $0x98] sm:$0xf]
        %v837 = vld [vmem:[%s656 + $0x9c] sm:$0xff]
        %v838 = vld [vmem:[%s656 + $0xa4] sm:$0xf]
        %v839 = vld [vmem:[%s656 + $0xa8] sm:$0xff]
        %v840 = vld [vmem:[%s656 + $0xb0] sm:$0xf]
        %v841 = vld [vmem:[%s656 + $0xb4] sm:$0xff]
        %v842 = vld [vmem:[%s656 + $0xbc] sm:$0xf]
        %v843 = vld [vmem:[%s761] sm:$0x7]
        %v845 = vlaneseq
        %v846 = vshrl.u32 %v845, 7
        %v847 = vsub.s32 0, %v846
        %v848 = vrot.slane %v843, %v847
        %v849 = vlaneseq
        %v850 = vshrl.u32 %v849, 7
        %v851 = vsub.s32 1, %v850
        %v852 = vrot.slane %v843, %v851
        %v853 = vlaneseq
        %v854 = vshrl.u32 %v853, 7
        %v855 = vsub.s32 2, %v854
        %v856 = vrot.slane %v843, %v855
        %v892 = vunpack.c.l.b16 %v811
        %v893 = vunpack.c.h.b16 %v811
        %v894 = vunpack.c.l.b16 %v812
        %v895 = vunpack.c.l.b16 %v813
        %v896 = vunpack.c.h.b16 %v813
        %v897 = vunpack.c.l.b16 %v814
        %v898 = vunpack.c.l.b16 %v815
        %v899 = vunpack.c.h.b16 %v815
        %v900 = vunpack.c.l.b16 %v816
        %v901 = vunpack.c.l.b16 %v817
        %v902 = vunpack.c.h.b16 %v817
        %v903 = vunpack.c.l.b16 %v818
        %v904 = vunpack.c.l.b16 %v819
        %v905 = vunpack.c.h.b16 %v819
        %v906 = vunpack.c.l.b16 %v820
        %v907 = vunpack.c.l.b16 %v821
        %v908 = vunpack.c.h.b16 %v821
        %v909 = vunpack.c.l.b16 %v822
        %v910 = vunpack.c.l.b16 %v823
        %v911 = vunpack.c.h.b16 %v823
        %v912 = vunpack.c.l.b16 %v824
        %v913 = vunpack.c.l.b16 %v825
        %v914 = vunpack.c.h.b16 %v825
        %v915 = vunpack.c.l.b16 %v826
        %v916 = vunpack.c.l.b16 %v827
        %v917 = vunpack.c.h.b16 %v827
        %v918 = vunpack.c.l.b16 %v828
        %v919 = vunpack.c.l.b16 %v829
        %v920 = vunpack.c.h.b16 %v829
        %v921 = vunpack.c.l.b16 %v830
        %v922 = vunpack.c.l.b16 %v831
        %v923 = vunpack.c.h.b16 %v831
        %v924 = vunpack.c.l.b16 %v832
        %v925 = vunpack.c.l.b16 %v833
        %v926 = vunpack.c.h.b16 %v833
        %v927 = vunpack.c.l.b16 %v834
        %v928 = vunpack.c.l.b16 %v835
        %v929 = vunpack.c.h.b16 %v835
        %v930 = vunpack.c.l.b16 %v836
        %v931 = vunpack.c.l.b16 %v837
        %v932 = vunpack.c.h.b16 %v837
        %v933 = vunpack.c.l.b16 %v838
        %v934 = vunpack.c.l.b16 %v839
        %v935 = vunpack.c.h.b16 %v839
        %v936 = vunpack.c.l.b16 %v840
        %v937 = vunpack.c.l.b16 %v841
        %v938 = vunpack.c.h.b16 %v841
        %v939 = vunpack.c.l.b16 %v842
        %v940 = vpack.c.b16 %v895, %v892
        %v941 = vpack.c.b16 %v896, %v893
        %v942 = vpack.c.b16 %v897, %v894
        %v943 = vpack.c.b16 %v901, %v898
        %v944 = vpack.c.b16 %v902, %v899
        %v945 = vpack.c.b16 %v903, %v900
        %v946 = vpack.c.b16 %v907, %v904
        %v947 = vpack.c.b16 %v908, %v905
        %v948 = vpack.c.b16 %v909, %v906
        %v949 = vpack.c.b16 %v913, %v910
        %v950 = vpack.c.b16 %v914, %v911
        %v951 = vpack.c.b16 %v915, %v912
        %v952 = vpack.c.b16 %v919, %v916
        %v953 = vpack.c.b16 %v920, %v917
        %v954 = vpack.c.b16 %v921, %v918
        %v955 = vpack.c.b16 %v925, %v922
        %v956 = vpack.c.b16 %v926, %v923
        %v957 = vpack.c.b16 %v927, %v924
        %v958 = vpack.c.b16 %v931, %v928
        %v959 = vpack.c.b16 %v932, %v929
        %v960 = vpack.c.b16 %v933, %v930
        %v961 = vpack.c.b16 %v937, %v934
        %v962 = vpack.c.b16 %v938, %v935
        %v963 = vpack.c.b16 %v939, %v936
        %988 = vmatprep.subr.bf16.mxu0 %v941
        %989 = vmatpush1.bf16.msra.mxu0 %v940
        %990 = vmatprep.subr.bf16.mxu0 %v944
        %991 = vmatpush1.bf16.msra.mxu0 %v943
        %992 = vmatprep.subr.bf16.mxu0 %v947
        %993 = vmatpush1.bf16.msra.mxu0 %v946
        %994 = vmatprep.subr.bf16.mxu0 %v950
        %995 = vmatpush1.bf16.msra.mxu0 %v949
        %996 = vmatprep.subr.bf16.mxu0 %v953
        %997 = vmatpush1.bf16.msra.mxu0 %v952
        %998 = vmatprep.subr.bf16.mxu0 %v956
        %999 = vmatpush1.bf16.msra.mxu0 %v955
        %1000 = vmatprep.subr.bf16.mxu0 %v959
        %1001 = vmatpush1.bf16.msra.mxu0 %v958
        %1002 = vmatprep.subr.bf16.mxu0 %v962
        %1003 = vmatpush1.bf16.msra.mxu0 %v961
        %1004 = vmatprep.subr.bf16.mxu0 0
        %1005 = vmatpush1.bf16.msra.mxu0 0
        %1006 = vmatprep.subr.bf16.mxu0 0
        %1007 = vmatpush1.bf16.msra.mxu0 0
        %1008 = vmatprep.subr.bf16.mxu0 0
        %1009 = vmatpush1.bf16.msra.mxu0 0
        %1010 = vmatprep.subr.bf16.mxu0 0
        %1011 = vmatpush1.bf16.msra.mxu0 0
        %1012 = vmatprep.subr.bf16.mxu0 0
        %1013 = vmatpush1.bf16.msra.mxu0 0
        %1014 = vmatprep.subr.bf16.mxu0 0
        %1015 = vmatpush1.bf16.msra.mxu0 0
        %1016 = vmatprep.subr.bf16.mxu0 0
        %1017 = vmatpush1.bf16.msra.mxu0 0
        %1018 = vmatprep.subr.bf16.mxu0 0
        %1019 = vmatpush1.bf16.msra.mxu0 0
        %1020 = vmatprep.mubr.bf16.mxu0 0
        %1021 = vmatmul.mubr.bf16.gmra.mrb[0].mxu0 %v808
        %v1022 = vpop.f32.mrb[0].mxu0
        %v1023 = vadd.f32 %v848, %v1022
        %v1024 = vpop.f32.mrb[0].mxu0
        %v1025 = vadd.f32 %v852, %v1024
        %v1026 = vpop.f32.mrb[0].mxu0
        %v1027 = vadd.f32 %v848, %v1026
        %v1028 = vpop.f32.mrb[0].mxu0
        %v1029 = vadd.f32 %v852, %v1028
        %1030 = vdwg.mxu0
        %1031 = vmatprep.subr.bf16.mxu0 0
        %1032 = vmatpush1.bf16.msra.mxu0 %v942
        %1033 = vmatprep.subr.bf16.mxu0 0
        %1034 = vmatpush1.bf16.msra.mxu0 %v945
        %1035 = vmatprep.subr.bf16.mxu0 0
        %1036 = vmatpush1.bf16.msra.mxu0 %v948
        %1037 = vmatprep.subr.bf16.mxu0 0
        %1038 = vmatpush1.bf16.msra.mxu0 %v951
        %1039 = vmatprep.subr.bf16.mxu0 0
        %1040 = vmatpush1.bf16.msra.mxu0 %v954
        %1041 = vmatprep.subr.bf16.mxu0 0
        %1042 = vmatpush1.bf16.msra.mxu0 %v957
        %1043 = vmatprep.subr.bf16.mxu0 0
        %1044 = vmatpush1.bf16.msra.mxu0 %v960
        %1045 = vmatprep.subr.bf16.mxu0 0
        %1046 = vmatpush1.bf16.msra.mxu0 %v963
        %1047 = vmatprep.subr.bf16.mxu0 0
        %1048 = vmatpush1.bf16.msra.mxu0 0
        %1049 = vmatprep.subr.bf16.mxu0 0
        %1050 = vmatpush1.bf16.msra.mxu0 0
        %1051 = vmatprep.subr.bf16.mxu0 0
        %1052 = vmatpush1.bf16.msra.mxu0 0
        %1053 = vmatprep.subr.bf16.mxu0 0
        %1054 = vmatpush1.bf16.msra.mxu0 0
        %1055 = vmatprep.subr.bf16.mxu0 0
        %1056 = vmatpush1.bf16.msra.mxu0 0
        %1057 = vmatprep.subr.bf16.mxu0 0
        %1058 = vmatpush1.bf16.msra.mxu0 0
        %1059 = vmatprep.subr.bf16.mxu0 0
        %1060 = vmatpush1.bf16.msra.mxu0 0
        %1061 = vmatprep.subr.bf16.mxu0 0
        %1062 = vmatpush1.bf16.msra.mxu0 0
        %1063 = vmatprep.mubr.bf16.mxu0 0
        %1064 = vmatmul.mubr.bf16.gmra.mrb[0].mxu0 %v808
        %v1065 = vpop.f32.mrb[0].mxu0
        %v1066 = vadd.f32 %v856, %v1065
        %v1067 = vpop.f32.mrb[0].mxu0
        %v1068 = vpop.f32.mrb[0].mxu0
        %v1069 = vadd.f32 %v856, %v1068
        %v1070 = vpop.f32.mrb[0].mxu0
        %1071 = vdwg.mxu0
        %v1072 = vpack.c.bf16 %v1027, %v1023
        %v1073 = vpack.c.bf16 %v1029, %v1025
        %v1074 = vpack.c.bf16 %v1069, %v1066
        %v1076 = vunpack.c.l.b16 %v1072
        %v1077 = vunpack.c.h.b16 %v1072
        %v1078 = vpack.c.b16 %v1076, %v1076
        %v1079 = vpack.c.b16 %v1077, %v1077
        %v1081 = vunpack.c.l.b16 %v1073
        %v1082 = vunpack.c.h.b16 %v1073
        %v1083 = vpack.c.b16 %v1081, %v1081
        %v1084 = vpack.c.b16 %v1082, %v1082
        %v1086 = vunpack.c.l.b16 %v1074
        %v1087 = vunpack.c.h.b16 %v1074
        %v1088 = vpack.c.b16 %v1086, %v1086
        %v1089 = vpack.c.b16 %v1087, %v1087
        %vm1090 = vcmask 261120
        %v1092 = vsel %vm1090, %v1078, 0
        %v1095 = vsel %vm1090, %v1083, 0
        %1097 = vmatprep.subr.bf16.mxu0 0
        %1098 = vmatpush1.bf16.xpose.msra.mxu0 %v1095
        %1099 = vmatprep.subr.bf16.mxu0 0
        %1100 = vmatpush1.bf16.xpose.msra.mxu0 0
        %1101 = vmatprep.subr.bf16.mxu0 0
        %1102 = vmatpush1.bf16.xpose.msra.mxu0 0
        %1103 = vmatprep.subr.bf16.mxu0 0
        %1104 = vmatpush1.bf16.xpose.msra.mxu0 0
        %1105 = vmatprep.subr.bf16.mxu0 0
        %1106 = vmatpush1.bf16.xpose.msra.mxu0 0
        %1107 = vmatprep.subr.bf16.mxu0 0
        %1108 = vmatpush1.bf16.xpose.msra.mxu0 0
        %1109 = vmatprep.subr.bf16.mxu0 0
        %1110 = vmatpush1.bf16.xpose.msra.mxu0 0
        %1111 = vmatprep.subr.bf16.mxu0 0
        %1112 = vmatpush1.bf16.xpose.msra.mxu0 0
        %1113 = vmatprep.subr.bf16.mxu0 0
        %1114 = vmatpush1.bf16.xpose.msra.mxu0 0
        %1115 = vmatprep.subr.bf16.mxu0 0
        %1116 = vmatpush1.bf16.xpose.msra.mxu0 0
        %1117 = vmatprep.subr.bf16.mxu0 0
        %1118 = vmatpush1.bf16.xpose.msra.mxu0 0
        %1119 = vmatprep.subr.bf16.mxu0 0
        %1120 = vmatpush1.bf16.xpose.msra.mxu0 0
        %1121 = vmatprep.subr.bf16.mxu0 0
        %1122 = vmatpush1.bf16.xpose.msra.mxu0 0
        %1123 = vmatprep.subr.bf16.mxu0 0
        %1124 = vmatpush1.bf16.xpose.msra.mxu0 0
        %1125 = vmatprep.subr.bf16.mxu0 0
        %1126 = vmatpush1.bf16.xpose.msra.mxu0 0
        %1127 = vmatprep.subr.bf16.mxu0 0
        %1128 = vmatpush1.bf16.xpose.msra.mxu0 0
        %1129 = vmatprep.mubr.bf16.mxu0 0
        %1130 = vmatmul.mubr.bf16.gmra.mrb[0].mxu0 %v1092
        %v1131 = vpop.f32.mrb[0].mxu0
        %v1132 = vadd.f32 0.0, %v1131
        %v1133 = vpop.f32.mrb[0].mxu0
        %v1134 = vpop.f32.mrb[0].mxu0
        %v1135 = vpop.f32.mrb[0].mxu0
        %1136 = vdwg.mxu0
        %v1138 = vsel %vm1090, %v1079, 0
        %v1141 = vsel %vm1090, %v1084, 0
        %1143 = vmatprep.subr.bf16.mxu0 0
        %1144 = vmatpush1.bf16.xpose.msra.mxu0 %v1141
        %1145 = vmatprep.subr.bf16.mxu0 0
        %1146 = vmatpush1.bf16.xpose.msra.mxu0 0
        %1147 = vmatprep.subr.bf16.mxu0 0
        %1148 = vmatpush1.bf16.xpose.msra.mxu0 0
        %1149 = vmatprep.subr.bf16.mxu0 0
        %1150 = vmatpush1.bf16.xpose.msra.mxu0 0
        %1151 = vmatprep.subr.bf16.mxu0 0
        %1152 = vmatpush1.bf16.xpose.msra.mxu0 0
        %1153 = vmatprep.subr.bf16.mxu0 0
        %1154 = vmatpush1.bf16.xpose.msra.mxu0 0
        %1155 = vmatprep.subr.bf16.mxu0 0
        %1156 = vmatpush1.bf16.xpose.msra.mxu0 0
        %1157 = vmatprep.subr.bf16.mxu0 0
        %1158 = vmatpush1.bf16.xpose.msra.mxu0 0
        %1159 = vmatprep.subr.bf16.mxu0 0
        %1160 = vmatpush1.bf16.xpose.msra.mxu0 0
        %1161 = vmatprep.subr.bf16.mxu0 0
        %1162 = vmatpush1.bf16.xpose.msra.mxu0 0
        %1163 = vmatprep.subr.bf16.mxu0 0
        %1164 = vmatpush1.bf16.xpose.msra.mxu0 0
        %1165 = vmatprep.subr.bf16.mxu0 0
        %1166 = vmatpush1.bf16.xpose.msra.mxu0 0
        %1167 = vmatprep.subr.bf16.mxu0 0
        %1168 = vmatpush1.bf16.xpose.msra.mxu0 0
        %1169 = vmatprep.subr.bf16.mxu0 0
        %1170 = vmatpush1.bf16.xpose.msra.mxu0 0
        %1171 = vmatprep.subr.bf16.mxu0 0
        %1172 = vmatpush1.bf16.xpose.msra.mxu0 0
        %1173 = vmatprep.subr.bf16.mxu0 0
        %1174 = vmatpush1.bf16.xpose.msra.mxu0 0
        %1175 = vmatprep.mubr.bf16.mxu0 0
        %1176 = vmatmul.mubr.bf16.gmra.mrb[0].mxu0 %v1138
        %v1177 = vpop.f32.mrb[0].mxu0
        %v1178 = vadd.f32 0.0, %v1177
        %v1179 = vpop.f32.mrb[0].mxu0
        %v1180 = vpop.f32.mrb[0].mxu0
        %v1181 = vpop.f32.mrb[0].mxu0
        %1182 = vdwg.mxu0
        %v1183 = vmul.f32 %v1132, 0.17677669
        %v1184 = vmul.f32 %v1178, 0.17677669
        %v1187 = vlaneseq
        %v1188 = vshrl.u32 %v1187, 7
        %v1189 = vsub.s32 0, %v1188
        %v1190 = vrot.slane %v809, %v1189
        %v1191 = vlaneseq
        %v1192 = vshrl.u32 %v1191, 7
        %v1193 = vsub.s32 0, %v1192
        %v1194 = vrot.slane %v810, %v1193
        %v1197 = vadd.f32 %v1183, %v1190
        %v1198 = vadd.f32 %v1184, %v1194
        %vm1199 = vcmask 64512
        %v1200 = vsel %vm1199, %v1197, -inf
        %1201 = vmax.xlane.f32.xlu0 %v1200
        %v1202 = vpop.xlane.xlu0 %1201
        %v1203 = vsel %vm1199, %v1198, -inf
        %1204 = vmax.xlane.f32.xlu0 %v1203
        %v1205 = vpop.xlane.xlu0 %1204
        %v1206 = vsub.f32 %v1197, %v1202
        %v1207 = vsub.f32 %v1198, %v1205
        %v1208 = vmul.f32 %v1206, 1.442695
        %v1209 = vpow.pop %v1208
        %v1210 = vmul.f32 %v1207, 1.442695
        %v1211 = vpow.pop %v1210
        %v1212 = vsel %vm1199, %v1209, 0.0
        %1213 = vadd.xlane.f32.xlu0 %v1212
        %v1214 = vpop.xlane.xlu0 %1213
        %v1215 = vsel %vm1199, %v1211, 0.0
        %1216 = vadd.xlane.f32.xlu0 %v1215
        %v1217 = vpop.xlane.xlu0 %1216
        %v1218 = vrcp.pop %v1214
        %v1219 = vrcp.pop %v1217
        %v1220 = vmul.f32 %v1209, %v1218
        %v1221 = vmul.f32 %v1211, %v1219
        %v1222 = vpack.c.bf16 %v1220, %v1220
        %v1223 = vpack.c.bf16 %v1221, %v1221
        %v1225 = vsel %vm1199, %v1222, 0
        %vm1227 = vcmask 1043456
        %v1229 = vsel %vm1227, %v1088, 0
        %1231 = vmatprep.subr.bf16.mxu0 0
        %1232 = vmatpush1.bf16.msra.mxu0 %v1229
        %1233 = vmatprep.subr.bf16.mxu0 0
        %1234 = vmatpush1.bf16.msra.mxu0 0
        %1235 = vmatprep.subr.bf16.mxu0 0
        %1236 = vmatpush1.bf16.msra.mxu0 0
        %1237 = vmatprep.subr.bf16.mxu0 0
        %1238 = vmatpush1.bf16.msra.mxu0 0
        %1239 = vmatprep.subr.bf16.mxu0 0
        %1240 = vmatpush1.bf16.msra.mxu0 0
        %1241 = vmatprep.subr.bf16.mxu0 0
        %1242 = vmatpush1.bf16.msra.mxu0 0
        %1243 = vmatprep.subr.bf16.mxu0 0
        %1244 = vmatpush1.bf16.msra.mxu0 0
        %1245 = vmatprep.subr.bf16.mxu0 0
        %1246 = vmatpush1.bf16.msra.mxu0 0
        %1247 = vmatprep.subr.bf16.mxu0 0
        %1248 = vmatpush1.bf16.msra.mxu0 0
        %1249 = vmatprep.subr.bf16.mxu0 0
        %1250 = vmatpush1.bf16.msra.mxu0 0
        %1251 = vmatprep.subr.bf16.mxu0 0
        %1252 = vmatpush1.bf16.msra.mxu0 0
        %1253 = vmatprep.subr.bf16.mxu0 0
        %1254 = vmatpush1.bf16.msra.mxu0 0
        %1255 = vmatprep.subr.bf16.mxu0 0
        %1256 = vmatpush1.bf16.msra.mxu0 0
        %1257 = vmatprep.subr.bf16.mxu0 0
        %1258 = vmatpush1.bf16.msra.mxu0 0
        %1259 = vmatprep.subr.bf16.mxu0 0
        %1260 = vmatpush1.bf16.msra.mxu0 0
        %1261 = vmatprep.subr.bf16.mxu0 0
        %1262 = vmatpush1.bf16.msra.mxu0 0
        %1263 = vmatprep.mubr.bf16.mxu0 0
        %1264 = vmatmul.mubr.bf16.gmra.mrb[0].mxu0 %v1225
        %v1265 = vpop.f32.mrb[0].mxu0
        %v1266 = vadd.f32 0.0, %v1265
        %v1267 = vpop.f32.mrb[0].mxu0
        %v1268 = vpop.f32.mrb[0].mxu0
        %v1269 = vpop.f32.mrb[0].mxu0
        %1270 = vdwg.mxu0
        %v1272 = vsel %vm1199, %v1223, 0
        %v1275 = vsel %vm1227, %v1089, 0
        %1277 = vmatprep.subr.bf16.mxu0 0
        %1278 = vmatpush1.bf16.msra.mxu0 %v1275
        %1279 = vmatprep.subr.bf16.mxu0 0
        %1280 = vmatpush1.bf16.msra.mxu0 0
        %1281 = vmatprep.subr.bf16.mxu0 0
        %1282 = vmatpush1.bf16.msra.mxu0 0
        %1283 = vmatprep.subr.bf16.mxu0 0
        %1284 = vmatpush1.bf16.msra.mxu0 0
        %1285 = vmatprep.subr.bf16.mxu0 0
        %1286 = vmatpush1.bf16.msra.mxu0 0
        %1287 = vmatprep.subr.bf16.mxu0 0
        %1288 = vmatpush1.bf16.msra.mxu0 0
        %1289 = vmatprep.subr.bf16.mxu0 0
        %1290 = vmatpush1.bf16.msra.mxu0 0
        %1291 = vmatprep.subr.bf16.mxu0 0
        %1292 = vmatpush1.bf16.msra.mxu0 0
        %1293 = vmatprep.subr.bf16.mxu0 0
        %1294 = vmatpush1.bf16.msra.mxu0 0
        %1295 = vmatprep.subr.bf16.mxu0 0
        %1296 = vmatpush1.bf16.msra.mxu0 0
        %1297 = vmatprep.subr.bf16.mxu0 0
        %1298 = vmatpush1.bf16.msra.mxu0 0
        %1299 = vmatprep.subr.bf16.mxu0 0
        %1300 = vmatpush1.bf16.msra.mxu0 0
        %1301 = vmatprep.subr.bf16.mxu0 0
        %1302 = vmatpush1.bf16.msra.mxu0 0
        %1303 = vmatprep.subr.bf16.mxu0 0
        %1304 = vmatpush1.bf16.msra.mxu0 0
        %1305 = vmatprep.subr.bf16.mxu0 0
        %1306 = vmatpush1.bf16.msra.mxu0 0
        %1307 = vmatprep.subr.bf16.mxu0 0
        %1308 = vmatpush1.bf16.msra.mxu0 0
        %1309 = vmatprep.mubr.bf16.mxu0 0
        %1310 = vmatmul.mubr.bf16.gmra.mrb[0].mxu0 %v1272
        %v1311 = vpop.f32.mrb[0].mxu0
        %v1312 = vadd.f32 0.0, %v1311
        %v1313 = vpop.f32.mrb[0].mxu0
        %v1314 = vpop.f32.mrb[0].mxu0
        %v1315 = vpop.f32.mrb[0].mxu0
        %1316 = vdwg.mxu0
        %1317 = vrot.lane.b32.xlu0 %v1078, 96
        %v1318 = vpop.permute.xlu0 %1317
        %1319 = vrot.lane.b32.xlu0 %v1083, 96
        %v1320 = vpop.permute.xlu0 %1319
        %v1322 = vsel %vm1090, %v1318, 0
        %v1325 = vsel %vm1090, %v1320, 0
        %1327 = vmatprep.subr.bf16.mxu0 0
        %1328 = vmatpush1.bf16.xpose.msra.mxu0 %v1325
        %1329 = vmatprep.subr.bf16.mxu0 0
        %1330 = vmatpush1.bf16.xpose.msra.mxu0 0
        %1331 = vmatprep.subr.bf16.mxu0 0
        %1332 = vmatpush1.bf16.xpose.msra.mxu0 0
        %1333 = vmatprep.subr.bf16.mxu0 0
        %1334 = vmatpush1.bf16.xpose.msra.mxu0 0
        %1335 = vmatprep.subr.bf16.mxu0 0
        %1336 = vmatpush1.bf16.xpose.msra.mxu0 0
        %1337 = vmatprep.subr.bf16.mxu0 0
        %1338 = vmatpush1.bf16.xpose.msra.mxu0 0
        %1339 = vmatprep.subr.bf16.mxu0 0
        %1340 = vmatpush1.bf16.xpose.msra.mxu0 0
        %1341 = vmatprep.subr.bf16.mxu0 0
        %1342 = vmatpush1.bf16.xpose.msra.mxu0 0
        %1343 = vmatprep.subr.bf16.mxu0 0
        %1344 = vmatpush1.bf16.xpose.msra.mxu0 0
        %1345 = vmatprep.subr.bf16.mxu0 0
        %1346 = vmatpush1.bf16.xpose.msra.mxu0 0
        %1347 = vmatprep.subr.bf16.mxu0 0
        %1348 = vmatpush1.bf16.xpose.msra.mxu0 0
        %1349 = vmatprep.subr.bf16.mxu0 0
        %1350 = vmatpush1.bf16.xpose.msra.mxu0 0
        %1351 = vmatprep.subr.bf16.mxu0 0
        %1352 = vmatpush1.bf16.xpose.msra.mxu0 0
        %1353 = vmatprep.subr.bf16.mxu0 0
        %1354 = vmatpush1.bf16.xpose.msra.mxu0 0
        %1355 = vmatprep.subr.bf16.mxu0 0
        %1356 = vmatpush1.bf16.xpose.msra.mxu0 0
        %1357 = vmatprep.subr.bf16.mxu0 0
        %1358 = vmatpush1.bf16.xpose.msra.mxu0 0
        %1359 = vmatprep.mubr.bf16.mxu0 0
        %1360 = vmatmul.mubr.bf16.gmra.mrb[0].mxu0 %v1322
        %v1361 = vpop.f32.mrb[0].mxu0
        %v1362 = vadd.f32 0.0, %v1361
        %v1363 = vpop.f32.mrb[0].mxu0
        %v1364 = vpop.f32.mrb[0].mxu0
        %v1365 = vpop.f32.mrb[0].mxu0
        %1366 = vdwg.mxu0
        %1367 = vrot.lane.b32.xlu0 %v1079, 96
        %v1368 = vpop.permute.xlu0 %1367
        %1369 = vrot.lane.b32.xlu0 %v1084, 96
        %v1370 = vpop.permute.xlu0 %1369
        %v1372 = vsel %vm1090, %v1368, 0
        %v1375 = vsel %vm1090, %v1370, 0
        %1377 = vmatprep.subr.bf16.mxu0 0
        %1378 = vmatpush1.bf16.xpose.msra.mxu0 %v1375
        %1379 = vmatprep.subr.bf16.mxu0 0
        %1380 = vmatpush1.bf16.xpose.msra.mxu0 0
        %1381 = vmatprep.subr.bf16.mxu0 0
        %1382 = vmatpush1.bf16.xpose.msra.mxu0 0
        %1383 = vmatprep.subr.bf16.mxu0 0
        %1384 = vmatpush1.bf16.xpose.msra.mxu0 0
        %1385 = vmatprep.subr.bf16.mxu0 0
        %1386 = vmatpush1.bf16.xpose.msra.mxu0 0
        %1387 = vmatprep.subr.bf16.mxu0 0
        %1388 = vmatpush1.bf16.xpose.msra.mxu0 0
        %1389 = vmatprep.subr.bf16.mxu0 0
        %1390 = vmatpush1.bf16.xpose.msra.mxu0 0
        %1391 = vmatprep.subr.bf16.mxu0 0
        %1392 = vmatpush1.bf16.xpose.msra.mxu0 0
        %1393 = vmatprep.subr.bf16.mxu0 0
        %1394 = vmatpush1.bf16.xpose.msra.mxu0 0
        %1395 = vmatprep.subr.bf16.mxu0 0
        %1396 = vmatpush1.bf16.xpose.msra.mxu0 0
        %1397 = vmatprep.subr.bf16.mxu0 0
        %1398 = vmatpush1.bf16.xpose.msra.mxu0 0
        %1399 = vmatprep.subr.bf16.mxu0 0
        %1400 = vmatpush1.bf16.xpose.msra.mxu0 0
        %1401 = vmatprep.subr.bf16.mxu0 0
        %1402 = vmatpush1.bf16.xpose.msra.mxu0 0
        %1403 = vmatprep.subr.bf16.mxu0 0
        %1404 = vmatpush1.bf16.xpose.msra.mxu0 0
        %1405 = vmatprep.subr.bf16.mxu0 0
        %1406 = vmatpush1.bf16.xpose.msra.mxu0 0
        %1407 = vmatprep.subr.bf16.mxu0 0
        %1408 = vmatpush1.bf16.xpose.msra.mxu0 0
        %1409 = vmatprep.mubr.bf16.mxu0 0
        %1410 = vmatmul.mubr.bf16.gmra.mrb[0].mxu0 %v1372
        %v1411 = vpop.f32.mrb[0].mxu0
        %v1412 = vadd.f32 0.0, %v1411
        %v1413 = vpop.f32.mrb[0].mxu0
        %v1414 = vpop.f32.mrb[0].mxu0
        %v1415 = vpop.f32.mrb[0].mxu0
        %1416 = vdwg.mxu0
        %v1417 = vmul.f32 %v1362, 0.17677669
        %v1418 = vmul.f32 %v1412, 0.17677669
        %v1419 = vadd.f32 %v1417, %v1190
        %v1420 = vadd.f32 %v1418, %v1194
        %v1421 = vsel %vm1199, %v1419, -inf
        %1422 = vmax.xlane.f32.xlu0 %v1421
        %v1423 = vpop.xlane.xlu0 %1422
        %v1424 = vsel %vm1199, %v1420, -inf
        %1425 = vmax.xlane.f32.xlu0 %v1424
        %v1426 = vpop.xlane.xlu0 %1425
        %v1427 = vsub.f32 %v1419, %v1423
        %v1428 = vsub.f32 %v1420, %v1426
        %v1429 = vmul.f32 %v1427, 1.442695
        %v1430 = vpow.pop %v1429
        %v1431 = vmul.f32 %v1428, 1.442695
        %v1432 = vpow.pop %v1431
        %v1433 = vsel %vm1199, %v1430, 0.0
        %1434 = vadd.xlane.f32.xlu0 %v1433
        %v1435 = vpop.xlane.xlu0 %1434
        %v1436 = vsel %vm1199, %v1432, 0.0
        %1437 = vadd.xlane.f32.xlu0 %v1436
        %v1438 = vpop.xlane.xlu0 %1437
        %v1439 = vrcp.pop %v1435
        %v1440 = vrcp.pop %v1438
        %v1441 = vmul.f32 %v1430, %v1439
        %v1442 = vmul.f32 %v1432, %v1440
        %v1443 = vpack.c.bf16 %v1441, %v1441
        %v1444 = vpack.c.bf16 %v1442, %v1442
        %1445 = vrot.lane.b32.xlu0 %v1088, 96
        %v1446 = vpop.permute.xlu0 %1445
        %v1448 = vsel %vm1199, %v1443, 0
        %v1451 = vsel %vm1227, %v1446, 0
        %1453 = vmatprep.subr.bf16.mxu0 0
        %1454 = vmatpush1.bf16.msra.mxu0 %v1451
        %1455 = vmatprep.subr.bf16.mxu0 0
        %1456 = vmatpush1.bf16.msra.mxu0 0
        %1457 = vmatprep.subr.bf16.mxu0 0
        %1458 = vmatpush1.bf16.msra.mxu0 0
        %1459 = vmatprep.subr.bf16.mxu0 0
        %1460 = vmatpush1.bf16.msra.mxu0 0
        %1461 = vmatprep.subr.bf16.mxu0 0
        %1462 = vmatpush1.bf16.msra.mxu0 0
        %1463 = vmatprep.subr.bf16.mxu0 0
        %1464 = vmatpush1.bf16.msra.mxu0 0
        %1465 = vmatprep.subr.bf16.mxu0 0
        %1466 = vmatpush1.bf16.msra.mxu0 0
        %1467 = vmatprep.subr.bf16.mxu0 0
        %1468 = vmatpush1.bf16.msra.mxu0 0
        %1469 = vmatprep.subr.bf16.mxu0 0
        %1470 = vmatpush1.bf16.msra.mxu0 0
        %1471 = vmatprep.subr.bf16.mxu0 0
        %1472 = vmatpush1.bf16.msra.mxu0 0
        %1473 = vmatprep.subr.bf16.mxu0 0
        %1474 = vmatpush1.bf16.msra.mxu0 0
        %1475 = vmatprep.subr.bf16.mxu0 0
        %1476 = vmatpush1.bf16.msra.mxu0 0
        %1477 = vmatprep.subr.bf16.mxu0 0
        %1478 = vmatpush1.bf16.msra.mxu0 0
        %1479 = vmatprep.subr.bf16.mxu0 0
        %1480 = vmatpush1.bf16.msra.mxu0 0
        %1481 = vmatprep.subr.bf16.mxu0 0
        %1482 = vmatpush1.bf16.msra.mxu0 0
        %1483 = vmatprep.subr.bf16.mxu0 0
        %1484 = vmatpush1.bf16.msra.mxu0 0
        %1485 = vmatprep.mubr.bf16.mxu0 0
        %1486 = vmatmul.mubr.bf16.gmra.mrb[0].mxu0 %v1448
        %v1487 = vpop.f32.mrb[0].mxu0
        %v1488 = vadd.f32 0.0, %v1487
        %v1489 = vpop.f32.mrb[0].mxu0
        %v1490 = vpop.f32.mrb[0].mxu0
        %v1491 = vpop.f32.mrb[0].mxu0
        %1492 = vdwg.mxu0
        %1493 = vrot.lane.b32.xlu0 %v1089, 96
        %v1494 = vpop.permute.xlu0 %1493
        %v1496 = vsel %vm1199, %v1444, 0
        %v1499 = vsel %vm1227, %v1494, 0
        %1501 = vmatprep.subr.bf16.mxu0 0
        %1502 = vmatpush1.bf16.msra.mxu0 %v1499
        %1503 = vmatprep.subr.bf16.mxu0 0
        %1504 = vmatpush1.bf16.msra.mxu0 0
        %1505 = vmatprep.subr.bf16.mxu0 0
        %1506 = vmatpush1.bf16.msra.mxu0 0
        %1507 = vmatprep.subr.bf16.mxu0 0
        %1508 = vmatpush1.bf16.msra.mxu0 0
        %1509 = vmatprep.subr.bf16.mxu0 0
        %1510 = vmatpush1.bf16.msra.mxu0 0
        %1511 = vmatprep.subr.bf16.mxu0 0
        %1512 = vmatpush1.bf16.msra.mxu0 0
        %1513 = vmatprep.subr.bf16.mxu0 0
        %1514 = vmatpush1.bf16.msra.mxu0 0
        %1515 = vmatprep.subr.bf16.mxu0 0
        %1516 = vmatpush1.bf16.msra.mxu0 0
        %1517 = vmatprep.subr.bf16.mxu0 0
        %1518 = vmatpush1.bf16.msra.mxu0 0
        %1519 = vmatprep.subr.bf16.mxu0 0
        %1520 = vmatpush1.bf16.msra.mxu0 0
        %1521 = vmatprep.subr.bf16.mxu0 0
        %1522 = vmatpush1.bf16.msra.mxu0 0
        %1523 = vmatprep.subr.bf16.mxu0 0
        %1524 = vmatpush1.bf16.msra.mxu0 0
        %1525 = vmatprep.subr.bf16.mxu0 0
        %1526 = vmatpush1.bf16.msra.mxu0 0
        %1527 = vmatprep.subr.bf16.mxu0 0
        %1528 = vmatpush1.bf16.msra.mxu0 0
        %1529 = vmatprep.subr.bf16.mxu0 0
        %1530 = vmatpush1.bf16.msra.mxu0 0
        %1531 = vmatprep.subr.bf16.mxu0 0
        %1532 = vmatpush1.bf16.msra.mxu0 0
        %1533 = vmatprep.mubr.bf16.mxu0 0
        %1534 = vmatmul.mubr.bf16.gmra.mrb[0].mxu0 %v1496
        %v1535 = vpop.f32.mrb[0].mxu0
        %v1536 = vadd.f32 0.0, %v1535
        %v1537 = vpop.f32.mrb[0].mxu0
        %v1538 = vpop.f32.mrb[0].mxu0
        %v1539 = vpop.f32.mrb[0].mxu0
        %1540 = vdwg.mxu0
        %1541 = vrot.lane.b32.xlu0 %v1078, 64
        %v1542 = vpop.permute.xlu0 %1541
        %1543 = vrot.lane.b32.xlu0 %v1083, 64
        %v1544 = vpop.permute.xlu0 %1543
        %v1546 = vsel %vm1090, %v1542, 0
        %v1549 = vsel %vm1090, %v1544, 0
        %1551 = vmatprep.subr.bf16.mxu0 0
        %1552 = vmatpush1.bf16.xpose.msra.mxu0 %v1549
        %1553 = vmatprep.subr.bf16.mxu0 0
        %1554 = vmatpush1.bf16.xpose.msra.mxu0 0
        %1555 = vmatprep.subr.bf16.mxu0 0
        %1556 = vmatpush1.bf16.xpose.msra.mxu0 0
        %1557 = vmatprep.subr.bf16.mxu0 0
        %1558 = vmatpush1.bf16.xpose.msra.mxu0 0
        %1559 = vmatprep.subr.bf16.mxu0 0
        %1560 = vmatpush1.bf16.xpose.msra.mxu0 0
        %1561 = vmatprep.subr.bf16.mxu0 0
        %1562 = vmatpush1.bf16.xpose.msra.mxu0 0
        %1563 = vmatprep.subr.bf16.mxu0 0
        %1564 = vmatpush1.bf16.xpose.msra.mxu0 0
        %1565 = vmatprep.subr.bf16.mxu0 0
        %1566 = vmatpush1.bf16.xpose.msra.mxu0 0
        %1567 = vmatprep.subr.bf16.mxu0 0
        %1568 = vmatpush1.bf16.xpose.msra.mxu0 0
        %1569 = vmatprep.subr.bf16.mxu0 0
        %1570 = vmatpush1.bf16.xpose.msra.mxu0 0
        %1571 = vmatprep.subr.bf16.mxu0 0
        %1572 = vmatpush1.bf16.xpose.msra.mxu0 0
        %1573 = vmatprep.subr.bf16.mxu0 0
        %1574 = vmatpush1.bf16.xpose.msra.mxu0 0
        %1575 = vmatprep.subr.bf16.mxu0 0
        %1576 = vmatpush1.bf16.xpose.msra.mxu0 0
        %1577 = vmatprep.subr.bf16.mxu0 0
        %1578 = vmatpush1.bf16.xpose.msra.mxu0 0
        %1579 = vmatprep.subr.bf16.mxu0 0
        %1580 = vmatpush1.bf16.xpose.msra.mxu0 0
        %1581 = vmatprep.subr.bf16.mxu0 0
        %1582 = vmatpush1.bf16.xpose.msra.mxu0 0
        %1583 = vmatprep.mubr.bf16.mxu0 0
        %1584 = vmatmul.mubr.bf16.gmra.mrb[0].mxu0 %v1546
        %v1585 = vpop.f32.mrb[0].mxu0
        %v1586 = vadd.f32 0.0, %v1585
        %v1587 = vpop.f32.mrb[0].mxu0
        %v1588 = vpop.f32.mrb[0].mxu0
        %v1589 = vpop.f32.mrb[0].mxu0
        %1590 = vdwg.mxu0
        %1591 = vrot.lane.b32.xlu0 %v1079, 64
        %v1592 = vpop.permute.xlu0 %1591
        %1593 = vrot.lane.b32.xlu0 %v1084, 64
        %v1594 = vpop.permute.xlu0 %1593
        %v1596 = vsel %vm1090, %v1592, 0
        %v1599 = vsel %vm1090, %v1594, 0
        %1601 = vmatprep.subr.bf16.mxu0 0
        %1602 = vmatpush1.bf16.xpose.msra.mxu0 %v1599
        %1603 = vmatprep.subr.bf16.mxu0 0
        %1604 = vmatpush1.bf16.xpose.msra.mxu0 0
        %1605 = vmatprep.subr.bf16.mxu0 0
        %1606 = vmatpush1.bf16.xpose.msra.mxu0 0
        %1607 = vmatprep.subr.bf16.mxu0 0
        %1608 = vmatpush1.bf16.xpose.msra.mxu0 0
        %1609 = vmatprep.subr.bf16.mxu0 0
        %1610 = vmatpush1.bf16.xpose.msra.mxu0 0
        %1611 = vmatprep.subr.bf16.mxu0 0
        %1612 = vmatpush1.bf16.xpose.msra.mxu0 0
        %1613 = vmatprep.subr.bf16.mxu0 0
        %1614 = vmatpush1.bf16.xpose.msra.mxu0 0
        %1615 = vmatprep.subr.bf16.mxu0 0
        %1616 = vmatpush1.bf16.xpose.msra.mxu0 0
        %1617 = vmatprep.subr.bf16.mxu0 0
        %1618 = vmatpush1.bf16.xpose.msra.mxu0 0
        %1619 = vmatprep.subr.bf16.mxu0 0
        %1620 = vmatpush1.bf16.xpose.msra.mxu0 0
        %1621 = vmatprep.subr.bf16.mxu0 0
        %1622 = vmatpush1.bf16.xpose.msra.mxu0 0
        %1623 = vmatprep.subr.bf16.mxu0 0
        %1624 = vmatpush1.bf16.xpose.msra.mxu0 0
        %1625 = vmatprep.subr.bf16.mxu0 0
        %1626 = vmatpush1.bf16.xpose.msra.mxu0 0
        %1627 = vmatprep.subr.bf16.mxu0 0
        %1628 = vmatpush1.bf16.xpose.msra.mxu0 0
        %1629 = vmatprep.subr.bf16.mxu0 0
        %1630 = vmatpush1.bf16.xpose.msra.mxu0 0
        %1631 = vmatprep.subr.bf16.mxu0 0
        %1632 = vmatpush1.bf16.xpose.msra.mxu0 0
        %1633 = vmatprep.mubr.bf16.mxu0 0
        %1634 = vmatmul.mubr.bf16.gmra.mrb[0].mxu0 %v1596
        %v1635 = vpop.f32.mrb[0].mxu0
        %v1636 = vadd.f32 0.0, %v1635
        %v1637 = vpop.f32.mrb[0].mxu0
        %v1638 = vpop.f32.mrb[0].mxu0
        %v1639 = vpop.f32.mrb[0].mxu0
        %1640 = vdwg.mxu0
        %v1641 = vmul.f32 %v1586, 0.17677669
        %v1642 = vmul.f32 %v1636, 0.17677669
        %v1643 = vadd.f32 %v1641, %v1190
        %v1644 = vadd.f32 %v1642, %v1194
        %v1645 = vsel %vm1199, %v1643, -inf
        %1646 = vmax.xlane.f32.xlu0 %v1645
        %v1647 = vpop.xlane.xlu0 %1646
        %v1648 = vsel %vm1199, %v1644, -inf
        %1649 = vmax.xlane.f32.xlu0 %v1648
        %v1650 = vpop.xlane.xlu0 %1649
        %v1651 = vsub.f32 %v1643, %v1647
        %v1652 = vsub.f32 %v1644, %v1650
        %v1653 = vmul.f32 %v1651, 1.442695
        %v1654 = vpow.pop %v1653
        %v1655 = vmul.f32 %v1652, 1.442695
        %v1656 = vpow.pop %v1655
        %v1657 = vsel %vm1199, %v1654, 0.0
        %1658 = vadd.xlane.f32.xlu0 %v1657
        %v1659 = vpop.xlane.xlu0 %1658
        %v1660 = vsel %vm1199, %v1656, 0.0
        %1661 = vadd.xlane.f32.xlu0 %v1660
        %v1662 = vpop.xlane.xlu0 %1661
        %v1663 = vrcp.pop %v1659
        %v1664 = vrcp.pop %v1662
        %v1665 = vmul.f32 %v1654, %v1663
        %v1666 = vmul.f32 %v1656, %v1664
        %v1667 = vpack.c.bf16 %v1665, %v1665
        %v1668 = vpack.c.bf16 %v1666, %v1666
        %1669 = vrot.lane.b32.xlu0 %v1088, 64
        %v1670 = vpop.permute.xlu0 %1669
        %v1672 = vsel %vm1199, %v1667, 0
        %v1675 = vsel %vm1227, %v1670, 0
        %1677 = vmatprep.subr.bf16.mxu0 0
        %1678 = vmatpush1.bf16.msra.mxu0 %v1675
        %1679 = vmatprep.subr.bf16.mxu0 0
        %1680 = vmatpush1.bf16.msra.mxu0 0
        %1681 = vmatprep.subr.bf16.mxu0 0
        %1682 = vmatpush1.bf16.msra.mxu0 0
        %1683 = vmatprep.subr.bf16.mxu0 0
        %1684 = vmatpush1.bf16.msra.mxu0 0
        %1685 = vmatprep.subr.bf16.mxu0 0
        %1686 = vmatpush1.bf16.msra.mxu0 0
        %1687 = vmatprep.subr.bf16.mxu0 0
        %1688 = vmatpush1.bf16.msra.mxu0 0
        %1689 = vmatprep.subr.bf16.mxu0 0
        %1690 = vmatpush1.bf16.msra.mxu0 0
        %1691 = vmatprep.subr.bf16.mxu0 0
        %1692 = vmatpush1.bf16.msra.mxu0 0
        %1693 = vmatprep.subr.bf16.mxu0 0
        %1694 = vmatpush1.bf16.msra.mxu0 0
        %1695 = vmatprep.subr.bf16.mxu0 0
        %1696 = vmatpush1.bf16.msra.mxu0 0
        %1697 = vmatprep.subr.bf16.mxu0 0
        %1698 = vmatpush1.bf16.msra.mxu0 0
        %1699 = vmatprep.subr.bf16.mxu0 0
        %1700 = vmatpush1.bf16.msra.mxu0 0
        %1701 = vmatprep.subr.bf16.mxu0 0
        %1702 = vmatpush1.bf16.msra.mxu0 0
        %1703 = vmatprep.subr.bf16.mxu0 0
        %1704 = vmatpush1.bf16.msra.mxu0 0
        %1705 = vmatprep.subr.bf16.mxu0 0
        %1706 = vmatpush1.bf16.msra.mxu0 0
        %1707 = vmatprep.subr.bf16.mxu0 0
        %1708 = vmatpush1.bf16.msra.mxu0 0
        %1709 = vmatprep.mubr.bf16.mxu0 0
        %1710 = vmatmul.mubr.bf16.gmra.mrb[0].mxu0 %v1672
        %v1711 = vpop.f32.mrb[0].mxu0
        %v1712 = vadd.f32 0.0, %v1711
        %v1713 = vpop.f32.mrb[0].mxu0
        %v1714 = vpop.f32.mrb[0].mxu0
        %v1715 = vpop.f32.mrb[0].mxu0
        %1716 = vdwg.mxu0
        %1717 = vrot.lane.b32.xlu0 %v1089, 64
        %v1718 = vpop.permute.xlu0 %1717
        %v1720 = vsel %vm1199, %v1668, 0
        %v1723 = vsel %vm1227, %v1718, 0
        %1725 = vmatprep.subr.bf16.mxu0 0
        %1726 = vmatpush1.bf16.msra.mxu0 %v1723
        %1727 = vmatprep.subr.bf16.mxu0 0
        %1728 = vmatpush1.bf16.msra.mxu0 0
        %1729 = vmatprep.subr.bf16.mxu0 0
        %1730 = vmatpush1.bf16.msra.mxu0 0
        %1731 = vmatprep.subr.bf16.mxu0 0
        %1732 = vmatpush1.bf16.msra.mxu0 0
        %1733 = vmatprep.subr.bf16.mxu0 0
        %1734 = vmatpush1.bf16.msra.mxu0 0
        %1735 = vmatprep.subr.bf16.mxu0 0
        %1736 = vmatpush1.bf16.msra.mxu0 0
        %1737 = vmatprep.subr.bf16.mxu0 0
        %1738 = vmatpush1.bf16.msra.mxu0 0
        %1739 = vmatprep.subr.bf16.mxu0 0
        %1740 = vmatpush1.bf16.msra.mxu0 0
        %1741 = vmatprep.subr.bf16.mxu0 0
        %1742 = vmatpush1.bf16.msra.mxu0 0
        %1743 = vmatprep.subr.bf16.mxu0 0
        %1744 = vmatpush1.bf16.msra.mxu0 0
        %1745 = vmatprep.subr.bf16.mxu0 0
        %1746 = vmatpush1.bf16.msra.mxu0 0
        %1747 = vmatprep.subr.bf16.mxu0 0
        %1748 = vmatpush1.bf16.msra.mxu0 0
        %1749 = vmatprep.subr.bf16.mxu0 0
        %1750 = vmatpush1.bf16.msra.mxu0 0
        %1751 = vmatprep.subr.bf16.mxu0 0
        %1752 = vmatpush1.bf16.msra.mxu0 0
        %1753 = vmatprep.subr.bf16.mxu0 0
        %1754 = vmatpush1.bf16.msra.mxu0 0
        %1755 = vmatprep.subr.bf16.mxu0 0
        %1756 = vmatpush1.bf16.msra.mxu0 0
        %1757 = vmatprep.mubr.bf16.mxu0 0
        %1758 = vmatmul.mubr.bf16.gmra.mrb[0].mxu0 %v1720
        %v1759 = vpop.f32.mrb[0].mxu0
        %v1760 = vadd.f32 0.0, %v1759
        %v1761 = vpop.f32.mrb[0].mxu0
        %v1762 = vpop.f32.mrb[0].mxu0
        %v1763 = vpop.f32.mrb[0].mxu0
        %1764 = vdwg.mxu0
        %1765 = vrot.lane.b32.xlu0 %v1078, 32
        %v1766 = vpop.permute.xlu0 %1765
        %1767 = vrot.lane.b32.xlu0 %v1083, 32
        %v1768 = vpop.permute.xlu0 %1767
        %v1770 = vsel %vm1090, %v1766, 0
        %v1773 = vsel %vm1090, %v1768, 0
        %1775 = vmatprep.subr.bf16.mxu0 0
        %1776 = vmatpush1.bf16.xpose.msra.mxu0 %v1773
        %1777 = vmatprep.subr.bf16.mxu0 0
        %1778 = vmatpush1.bf16.xpose.msra.mxu0 0
        %1779 = vmatprep.subr.bf16.mxu0 0
        %1780 = vmatpush1.bf16.xpose.msra.mxu0 0
        %1781 = vmatprep.subr.bf16.mxu0 0
        %1782 = vmatpush1.bf16.xpose.msra.mxu0 0
        %1783 = vmatprep.subr.bf16.mxu0 0
        %1784 = vmatpush1.bf16.xpose.msra.mxu0 0
        %1785 = vmatprep.subr.bf16.mxu0 0
        %1786 = vmatpush1.bf16.xpose.msra.mxu0 0
        %1787 = vmatprep.subr.bf16.mxu0 0
        %1788 = vmatpush1.bf16.xpose.msra.mxu0 0
        %1789 = vmatprep.subr.bf16.mxu0 0
        %1790 = vmatpush1.bf16.xpose.msra.mxu0 0
        %1791 = vmatprep.subr.bf16.mxu0 0
        %1792 = vmatpush1.bf16.xpose.msra.mxu0 0
        %1793 = vmatprep.subr.bf16.mxu0 0
        %1794 = vmatpush1.bf16.xpose.msra.mxu0 0
        %1795 = vmatprep.subr.bf16.mxu0 0
        %1796 = vmatpush1.bf16.xpose.msra.mxu0 0
        %1797 = vmatprep.subr.bf16.mxu0 0
        %1798 = vmatpush1.bf16.xpose.msra.mxu0 0
        %1799 = vmatprep.subr.bf16.mxu0 0
        %1800 = vmatpush1.bf16.xpose.msra.mxu0 0
        %1801 = vmatprep.subr.bf16.mxu0 0
        %1802 = vmatpush1.bf16.xpose.msra.mxu0 0
        %1803 = vmatprep.subr.bf16.mxu0 0
        %1804 = vmatpush1.bf16.xpose.msra.mxu0 0
        %1805 = vmatprep.subr.bf16.mxu0 0
        %1806 = vmatpush1.bf16.xpose.msra.mxu0 0
        %1807 = vmatprep.mubr.bf16.mxu0 0
        %1808 = vmatmul.mubr.bf16.gmra.mrb[0].mxu0 %v1770
        %v1809 = vpop.f32.mrb[0].mxu0
        %v1810 = vadd.f32 0.0, %v1809
        %v1811 = vpop.f32.mrb[0].mxu0
        %v1812 = vpop.f32.mrb[0].mxu0
        %v1813 = vpop.f32.mrb[0].mxu0
        %1814 = vdwg.mxu0
        %1815 = vrot.lane.b32.xlu0 %v1079, 32
        %v1816 = vpop.permute.xlu0 %1815
        %1817 = vrot.lane.b32.xlu0 %v1084, 32
        %v1818 = vpop.permute.xlu0 %1817
        %v1820 = vsel %vm1090, %v1816, 0
        %v1823 = vsel %vm1090, %v1818, 0
        %1825 = vmatprep.subr.bf16.mxu0 0
        %1826 = vmatpush1.bf16.xpose.msra.mxu0 %v1823
        %1827 = vmatprep.subr.bf16.mxu0 0
        %1828 = vmatpush1.bf16.xpose.msra.mxu0 0
        %1829 = vmatprep.subr.bf16.mxu0 0
        %1830 = vmatpush1.bf16.xpose.msra.mxu0 0
        %1831 = vmatprep.subr.bf16.mxu0 0
        %1832 = vmatpush1.bf16.xpose.msra.mxu0 0
        %1833 = vmatprep.subr.bf16.mxu0 0
        %1834 = vmatpush1.bf16.xpose.msra.mxu0 0
        %1835 = vmatprep.subr.bf16.mxu0 0
        %1836 = vmatpush1.bf16.xpose.msra.mxu0 0
        %1837 = vmatprep.subr.bf16.mxu0 0
        %1838 = vmatpush1.bf16.xpose.msra.mxu0 0
        %1839 = vmatprep.subr.bf16.mxu0 0
        %1840 = vmatpush1.bf16.xpose.msra.mxu0 0
        %1841 = vmatprep.subr.bf16.mxu0 0
        %1842 = vmatpush1.bf16.xpose.msra.mxu0 0
        %1843 = vmatprep.subr.bf16.mxu0 0
        %1844 = vmatpush1.bf16.xpose.msra.mxu0 0
        %1845 = vmatprep.subr.bf16.mxu0 0
        %1846 = vmatpush1.bf16.xpose.msra.mxu0 0
        %1847 = vmatprep.subr.bf16.mxu0 0
        %1848 = vmatpush1.bf16.xpose.msra.mxu0 0
        %1849 = vmatprep.subr.bf16.mxu0 0
        %1850 = vmatpush1.bf16.xpose.msra.mxu0 0
        %1851 = vmatprep.subr.bf16.mxu0 0
        %1852 = vmatpush1.bf16.xpose.msra.mxu0 0
        %1853 = vmatprep.subr.bf16.mxu0 0
        %1854 = vmatpush1.bf16.xpose.msra.mxu0 0
        %1855 = vmatprep.subr.bf16.mxu0 0
        %1856 = vmatpush1.bf16.xpose.msra.mxu0 0
        %1857 = vmatprep.mubr.bf16.mxu0 0
        %1858 = vmatmul.mubr.bf16.gmra.mrb[0].mxu0 %v1820
        %v1859 = vpop.f32.mrb[0].mxu0
        %v1860 = vadd.f32 0.0, %v1859
        %v1861 = vpop.f32.mrb[0].mxu0
        %v1862 = vpop.f32.mrb[0].mxu0
        %v1863 = vpop.f32.mrb[0].mxu0
        %1864 = vdwg.mxu0
        %v1865 = vmul.f32 %v1810, 0.17677669
        %v1866 = vmul.f32 %v1860, 0.17677669
        %v1867 = vadd.f32 %v1865, %v1190
        %v1868 = vadd.f32 %v1866, %v1194
        %v1869 = vsel %vm1199, %v1867, -inf
        %1870 = vmax.xlane.f32.xlu0 %v1869
        %v1871 = vpop.xlane.xlu0 %1870
        %v1872 = vsel %vm1199, %v1868, -inf
        %1873 = vmax.xlane.f32.xlu0 %v1872
        %v1874 = vpop.xlane.xlu0 %1873
        %v1875 = vsub.f32 %v1867, %v1871
        %v1876 = vsub.f32 %v1868, %v1874
        %v1877 = vmul.f32 %v1875, 1.442695
        %v1878 = vpow.pop %v1877
        %v1879 = vmul.f32 %v1876, 1.442695
        %v1880 = vpow.pop %v1879
        %v1881 = vsel %vm1199, %v1878, 0.0
        %1882 = vadd.xlane.f32.xlu0 %v1881
        %v1883 = vpop.xlane.xlu0 %1882
        %v1884 = vsel %vm1199, %v1880, 0.0
        %1885 = vadd.xlane.f32.xlu0 %v1884
        %v1886 = vpop.xlane.xlu0 %1885
        %v1887 = vrcp.pop %v1883
        %v1888 = vrcp.pop %v1886
        %v1889 = vmul.f32 %v1878, %v1887
        %v1890 = vmul.f32 %v1880, %v1888
        %v1891 = vpack.c.bf16 %v1889, %v1889
        %v1892 = vpack.c.bf16 %v1890, %v1890
        %1893 = vrot.lane.b32.xlu0 %v1088, 32
        %v1894 = vpop.permute.xlu0 %1893
        %v1896 = vsel %vm1199, %v1891, 0
        %v1899 = vsel %vm1227, %v1894, 0
        %1901 = vmatprep.subr.bf16.mxu0 0
        %1902 = vmatpush1.bf16.msra.mxu0 %v1899
        %1903 = vmatprep.subr.bf16.mxu0 0
        %1904 = vmatpush1.bf16.msra.mxu0 0
        %1905 = vmatprep.subr.bf16.mxu0 0
        %1906 = vmatpush1.bf16.msra.mxu0 0
        %1907 = vmatprep.subr.bf16.mxu0 0
        %1908 = vmatpush1.bf16.msra.mxu0 0
        %1909 = vmatprep.subr.bf16.mxu0 0
        %1910 = vmatpush1.bf16.msra.mxu0 0
        %1911 = vmatprep.subr.bf16.mxu0 0
        %1912 = vmatpush1.bf16.msra.mxu0 0
        %1913 = vmatprep.subr.bf16.mxu0 0
        %1914 = vmatpush1.bf16.msra.mxu0 0
        %1915 = vmatprep.subr.bf16.mxu0 0
        %1916 = vmatpush1.bf16.msra.mxu0 0
        %1917 = vmatprep.subr.bf16.mxu0 0
        %1918 = vmatpush1.bf16.msra.mxu0 0
        %1919 = vmatprep.subr.bf16.mxu0 0
        %1920 = vmatpush1.bf16.msra.mxu0 0
        %1921 = vmatprep.subr.bf16.mxu0 0
        %1922 = vmatpush1.bf16.msra.mxu0 0
        %1923 = vmatprep.subr.bf16.mxu0 0
        %1924 = vmatpush1.bf16.msra.mxu0 0
        %1925 = vmatprep.subr.bf16.mxu0 0
        %1926 = vmatpush1.bf16.msra.mxu0 0
        %1927 = vmatprep.subr.bf16.mxu0 0
        %1928 = vmatpush1.bf16.msra.mxu0 0
        %1929 = vmatprep.subr.bf16.mxu0 0
        %1930 = vmatpush1.bf16.msra.mxu0 0
        %1931 = vmatprep.subr.bf16.mxu0 0
        %1932 = vmatpush1.bf16.msra.mxu0 0
        %1933 = vmatprep.mubr.bf16.mxu0 0
        %1934 = vmatmul.mubr.bf16.gmra.mrb[0].mxu0 %v1896
        %v1935 = vpop.f32.mrb[0].mxu0
        %v1936 = vadd.f32 0.0, %v1935
        %v1937 = vpop.f32.mrb[0].mxu0
        %v1938 = vpop.f32.mrb[0].mxu0
        %v1939 = vpop.f32.mrb[0].mxu0
        %1940 = vdwg.mxu0
        %1941 = vrot.lane.b32.xlu0 %v1089, 32
        %v1942 = vpop.permute.xlu0 %1941
        %v1944 = vsel %vm1199, %v1892, 0
        %v1947 = vsel %vm1227, %v1942, 0
        %1949 = vmatprep.subr.bf16.mxu0 0
        %1950 = vmatpush1.bf16.msra.mxu0 %v1947
        %1951 = vmatprep.subr.bf16.mxu0 0
        %1952 = vmatpush1.bf16.msra.mxu0 0
        %1953 = vmatprep.subr.bf16.mxu0 0
        %1954 = vmatpush1.bf16.msra.mxu0 0
        %1955 = vmatprep.subr.bf16.mxu0 0
        %1956 = vmatpush1.bf16.msra.mxu0 0
        %1957 = vmatprep.subr.bf16.mxu0 0
        %1958 = vmatpush1.bf16.msra.mxu0 0
        %1959 = vmatprep.subr.bf16.mxu0 0
        %1960 = vmatpush1.bf16.msra.mxu0 0
        %1961 = vmatprep.subr.bf16.mxu0 0
        %1962 = vmatpush1.bf16.msra.mxu0 0
        %1963 = vmatprep.subr.bf16.mxu0 0
        %1964 = vmatpush1.bf16.msra.mxu0 0
        %1965 = vmatprep.subr.bf16.mxu0 0
        %1966 = vmatpush1.bf16.msra.mxu0 0
        %1967 = vmatprep.subr.bf16.mxu0 0
        %1968 = vmatpush1.bf16.msra.mxu0 0
        %1969 = vmatprep.subr.bf16.mxu0 0
        %1970 = vmatpush1.bf16.msra.mxu0 0
        %1971 = vmatprep.subr.bf16.mxu0 0
        %1972 = vmatpush1.bf16.msra.mxu0 0
        %1973 = vmatprep.subr.bf16.mxu0 0
        %1974 = vmatpush1.bf16.msra.mxu0 0
        %1975 = vmatprep.subr.bf16.mxu0 0
        %1976 = vmatpush1.bf16.msra.mxu0 0
        %1977 = vmatprep.subr.bf16.mxu0 0
        %1978 = vmatpush1.bf16.msra.mxu0 0
        %1979 = vmatprep.subr.bf16.mxu0 0
        %1980 = vmatpush1.bf16.msra.mxu0 0
        %1981 = vmatprep.mubr.bf16.mxu0 0
        %1982 = vmatmul.mubr.bf16.gmra.mrb[0].mxu0 %v1944
        %v1983 = vpop.f32.mrb[0].mxu0
        %v1984 = vadd.f32 0.0, %v1983
        %v1985 = vpop.f32.mrb[0].mxu0
        %v1986 = vpop.f32.mrb[0].mxu0
        %v1987 = vpop.f32.mrb[0].mxu0
        %1988 = vdwg.mxu0
        %1991 = vrot.lane.b32.xlu0 %v1488, 32
        %v1992 = vpop.permute.xlu0 %1991
        %1993 = vrot.lane.b32.xlu0 %v1536, 32
        %v1994 = vpop.permute.xlu0 %1993
        %1999 = vrot.lane.b32.xlu0 %v1712, 64
        %v2000 = vpop.permute.xlu0 %1999
        %2001 = vrot.lane.b32.xlu0 %v1760, 64
        %v2002 = vpop.permute.xlu0 %2001
        %2007 = vrot.lane.b32.xlu0 %v1936, 96
        %v2008 = vpop.permute.xlu0 %2007
        %2009 = vrot.lane.b32.xlu0 %v1984, 96
        %v2010 = vpop.permute.xlu0 %2009
        %v2013 = vsel %vm1090, %v1266, %v1992
        %v2014 = vsel %vm1090, %v1312, %v1994
        %vm2015 = vcmask 523264
        %v2016 = vsel %vm2015, %v2013, %v2000
        %v2017 = vsel %vm2015, %v2014, %v2002
        %vm2018 = vcmask 785408
        %v2019 = vsel %vm2018, %v2016, %v2008
        %v2020 = vsel %vm2018, %v2017, %v2010
        %v2021 = vpack.c.bf16 %v2020, %v2019
        %v2022 = vld [vmem:[%s665] sm:$0xf]
        %v2023 = vld [vmem:[%s665 + $0x4] sm:$0xf]
        %v2024 = vld [vmem:[%s665 + $0x8] sm:$0xf]
        %v2025 = vld [vmem:[%s665 + $0xc] sm:$0xf]
        %v2026 = vld [vmem:[%s665 + $0x10] sm:$0xf]
        %v2027 = vld [vmem:[%s665 + $0x14] sm:$0xf]
        %v2028 = vld [vmem:[%s665 + $0x18] sm:$0xf]
        %v2029 = vld [vmem:[%s665 + $0x1c] sm:$0xf]
        %v2030 = vld [vmem:[%s665 + $0x20] sm:$0xf]
        %v2031 = vld [vmem:[%s665 + $0x24] sm:$0xf]
        %v2032 = vld [vmem:[%s665 + $0x28] sm:$0xf]
        %v2033 = vld [vmem:[%s665 + $0x2c] sm:$0xf]
        %v2034 = vld [vmem:[%s665 + $0x30] sm:$0xf]
        %v2035 = vld [vmem:[%s665 + $0x34] sm:$0xf]
        %v2036 = vld [vmem:[%s665 + $0x38] sm:$0xf]
        %v2037 = vld [vmem:[%s665 + $0x3c] sm:$0xf]
        %v2038 = vld [vmem:[%s764] sm:$0x1]
        %v2040 = vlaneseq
        %v2041 = vshrl.u32 %v2040, 7
        %v2042 = vsub.s32 0, %v2041
        %v2043 = vrot.slane %v2038, %v2042
        %v2061 = vunpack.c.l.b16 %v2022
        %v2062 = vunpack.c.l.b16 %v2023
        %v2063 = vunpack.c.l.b16 %v2024
        %v2064 = vunpack.c.l.b16 %v2025
        %v2065 = vunpack.c.l.b16 %v2026
        %v2066 = vunpack.c.l.b16 %v2027
        %v2067 = vunpack.c.l.b16 %v2028
        %v2068 = vunpack.c.l.b16 %v2029
        %v2069 = vunpack.c.l.b16 %v2030
        %v2070 = vunpack.c.l.b16 %v2031
        %v2071 = vunpack.c.l.b16 %v2032
        %v2072 = vunpack.c.l.b16 %v2033
        %v2073 = vunpack.c.l.b16 %v2034
        %v2074 = vunpack.c.l.b16 %v2035
        %v2075 = vunpack.c.l.b16 %v2036
        %v2076 = vunpack.c.l.b16 %v2037
        %v2077 = vpack.c.b16 %v2062, %v2061
        %v2078 = vpack.c.b16 %v2064, %v2063
        %v2079 = vpack.c.b16 %v2066, %v2065
        %v2080 = vpack.c.b16 %v2068, %v2067
        %v2081 = vpack.c.b16 %v2070, %v2069
        %v2082 = vpack.c.b16 %v2072, %v2071
        %v2083 = vpack.c.b16 %v2074, %v2073
        %v2084 = vpack.c.b16 %v2076, %v2075
        %2093 = vmatprep.subr.bf16.mxu0 0
        %2094 = vmatpush1.bf16.msra.mxu0 %v2077
        %2095 = vmatprep.subr.bf16.mxu0 0
        %2096 = vmatpush1.bf16.msra.mxu0 %v2078
        %2097 = vmatprep.subr.bf16.mxu0 0
        %2098 = vmatpush1.bf16.msra.mxu0 %v2079
        %2099 = vmatprep.subr.bf16.mxu0 0
        %2100 = vmatpush1.bf16.msra.mxu0 %v2080
        %2101 = vmatprep.subr.bf16.mxu0 0
        %2102 = vmatpush1.bf16.msra.mxu0 %v2081
        %2103 = vmatprep.subr.bf16.mxu0 0
        %2104 = vmatpush1.bf16.msra.mxu0 %v2082
        %2105 = vmatprep.subr.bf16.mxu0 0
        %2106 = vmatpush1.bf16.msra.mxu0 %v2083
        %2107 = vmatprep.subr.bf16.mxu0 0
        %2108 = vmatpush1.bf16.msra.mxu0 %v2084
        %2109 = vmatprep.subr.bf16.mxu0 0
        %2110 = vmatpush1.bf16.msra.mxu0 0
        %2111 = vmatprep.subr.bf16.mxu0 0
        %2112 = vmatpush1.bf16.msra.mxu0 0
        %2113 = vmatprep.subr.bf16.mxu0 0
        %2114 = vmatpush1.bf16.msra.mxu0 0
        %2115 = vmatprep.subr.bf16.mxu0 0
        %2116 = vmatpush1.bf16.msra.mxu0 0
        %2117 = vmatprep.subr.bf16.mxu0 0
        %2118 = vmatpush1.bf16.msra.mxu0 0
        %2119 = vmatprep.subr.bf16.mxu0 0
        %2120 = vmatpush1.bf16.msra.mxu0 0
        %2121 = vmatprep.subr.bf16.mxu0 0
        %2122 = vmatpush1.bf16.msra.mxu0 0
        %2123 = vmatprep.subr.bf16.mxu0 0
        %2124 = vmatpush1.bf16.msra.mxu0 0
        %2125 = vmatprep.mubr.bf16.mxu0 0
        %2126 = vmatmul.mubr.bf16.gmra.mrb[0].mxu0 %v2021
        %v2127 = vpop.f32.mrb[0].mxu0
        %v2128 = vadd.f32 %v2043, %v2127
        %v2129 = vpop.f32.mrb[0].mxu0
        %v2130 = vpop.f32.mrb[0].mxu0
        %v2131 = vadd.f32 %v2043, %v2130
        %v2132 = vpop.f32.mrb[0].mxu0
        %2133 = vdwg.mxu0
        %v2134 = vunpack.c.l.bf16 %v808
        %v2135 = vunpack.c.h.bf16 %v808
        %v2136 = vadd.f32 %v2134, %v2128
        %v2137 = vadd.f32 %v2135, %v2131
        %v2138 = vld [vmem:[%s767] sm:$0x1]
        %v2139 = vld [vmem:[%s770] sm:$0x1]
        %2140 = vadd.xlane.f32.xlu0 %v2136
        %v2141 = vpop.xlane.xlu0 %2140
        %2142 = vadd.xlane.f32.xlu0 %v2137
        %v2143 = vpop.xlane.xlu0 %2142
        %v2144 = vrcp.pop 128.0
        %v2145 = vmul.f32 %v2141, %v2144
        %v2146 = vmul.f32 %v2143, %v2144
        %v2147 = vsub.f32 %v2136, %v2145
        %v2148 = vsub.f32 %v2137, %v2146
        %v2149 = vmul.f32 %v2147, %v2147
        %v2150 = vmul.f32 %v2148, %v2148
        %2151 = vadd.xlane.f32.xlu0 %v2149
        %v2152 = vpop.xlane.xlu0 %2151
        %2153 = vadd.xlane.f32.xlu0 %v2150
        %v2154 = vpop.xlane.xlu0 %2153
        %v2155 = vmul.f32 %v2152, %v2144
        %v2156 = vmul.f32 %v2154, %v2144
        %v2157 = vadd.f32 %v2155, 1e-05
        %v2158 = vadd.f32 %v2156, 1e-05
        %v2159 = vrsqrt.pop %v2157
        %v2160 = vrsqrt.pop %v2158
        %v2161 = vmul.f32 %v2147, %v2159
        %v2162 = vmul.f32 %v2148, %v2160
        %v2164 = vlaneseq
        %v2165 = vshrl.u32 %v2164, 7
        %v2166 = vsub.s32 0, %v2165
        %v2167 = vrot.slane %v2138, %v2166
        %v2169 = vmul.f32 %v2161, %v2167
        %v2170 = vmul.f32 %v2162, %v2167
        %v2172 = vlaneseq
        %v2173 = vshrl.u32 %v2172, 7
        %v2174 = vsub.s32 0, %v2173
        %v2175 = vrot.slane %v2139, %v2174
        %v2177 = vadd.f32 %v2169, %v2175
        %v2178 = vadd.f32 %v2170, %v2175
        %v2179 = vpack.c.bf16 %v2178, %v2177
        %v2180 = vld [vmem:[%s775] sm:$0xff]
        %v2181 = vld [vmem:[%s775 + $0x8] sm:$0xff]
        %v2182 = vld [vmem:[%s775 + $0x10] sm:$0xff]
        %v2183 = vld [vmem:[%s775 + $0x18] sm:$0xff]
        %v2184 = vld [vmem:[%s775 + $0x20] sm:$0xff]
        %v2185 = vld [vmem:[%s775 + $0x28] sm:$0xff]
        %v2186 = vld [vmem:[%s775 + $0x30] sm:$0xff]
        %v2187 = vld [vmem:[%s775 + $0x38] sm:$0xff]
        %v2188 = vld [vmem:[%s775 + $0x40] sm:$0xff]
        %v2189 = vld [vmem:[%s775 + $0x48] sm:$0xff]
        %v2190 = vld [vmem:[%s775 + $0x50] sm:$0xff]
        %v2191 = vld [vmem:[%s775 + $0x58] sm:$0xff]
        %v2192 = vld [vmem:[%s775 + $0x60] sm:$0xff]
        %v2193 = vld [vmem:[%s775 + $0x68] sm:$0xff]
        %v2194 = vld [vmem:[%s775 + $0x70] sm:$0xff]
        %v2195 = vld [vmem:[%s775 + $0x78] sm:$0xff]
        %v2196 = vld [vmem:[%s779] sm:$0x3]
        %v2198 = vlaneseq
        %v2199 = vshrl.u32 %v2198, 7
        %v2200 = vsub.s32 0, %v2199
        %v2201 = vrot.slane %v2196, %v2200
        %v2202 = vlaneseq
        %v2203 = vshrl.u32 %v2202, 7
        %v2204 = vsub.s32 1, %v2203
        %v2205 = vrot.slane %v2196, %v2204
        %v2224 = vunpack.c.l.b16 %v2180
        %v2225 = vunpack.c.h.b16 %v2180
        %v2226 = vunpack.c.l.b16 %v2181
        %v2227 = vunpack.c.h.b16 %v2181
        %v2228 = vunpack.c.l.b16 %v2182
        %v2229 = vunpack.c.h.b16 %v2182
        %v2230 = vunpack.c.l.b16 %v2183
        %v2231 = vunpack.c.h.b16 %v2183
        %v2232 = vunpack.c.l.b16 %v2184
        %v2233 = vunpack.c.h.b16 %v2184
        %v2234 = vunpack.c.l.b16 %v2185
        %v2235 = vunpack.c.h.b16 %v2185
        %v2236 = vunpack.c.l.b16 %v2186
        %v2237 = vunpack.c.h.b16 %v2186
        %v2238 = vunpack.c.l.b16 %v2187
        %v2239 = vunpack.c.h.b16 %v2187
        %v2240 = vunpack.c.l.b16 %v2188
        %v2241 = vunpack.c.h.b16 %v2188
        %v2242 = vunpack.c.l.b16 %v2189
        %v2243 = vunpack.c.h.b16 %v2189
        %v2244 = vunpack.c.l.b16 %v2190
        %v2245 = vunpack.c.h.b16 %v2190
        %v2246 = vunpack.c.l.b16 %v2191
        %v2247 = vunpack.c.h.b16 %v2191
        %v2248 = vunpack.c.l.b16 %v2192
        %v2249 = vunpack.c.h.b16 %v2192
        %v2250 = vunpack.c.l.b16 %v2193
        %v2251 = vunpack.c.h.b16 %v2193
        %v2252 = vunpack.c.l.b16 %v2194
        %v2253 = vunpack.c.h.b16 %v2194
        %v2254 = vunpack.c.l.b16 %v2195
        %v2255 = vunpack.c.h.b16 %v2195
        %v2256 = vpack.c.b16 %v2226, %v2224
        %v2257 = vpack.c.b16 %v2227, %v2225
        %v2258 = vpack.c.b16 %v2230, %v2228
        %v2259 = vpack.c.b16 %v2231, %v2229
        %v2260 = vpack.c.b16 %v2234, %v2232
        %v2261 = vpack.c.b16 %v2235, %v2233
        %v2262 = vpack.c.b16 %v2238, %v2236
        %v2263 = vpack.c.b16 %v2239, %v2237
        %v2264 = vpack.c.b16 %v2242, %v2240
        %v2265 = vpack.c.b16 %v2243, %v2241
        %v2266 = vpack.c.b16 %v2246, %v2244
        %v2267 = vpack.c.b16 %v2247, %v2245
        %v2268 = vpack.c.b16 %v2250, %v2248
        %v2269 = vpack.c.b16 %v2251, %v2249
        %v2270 = vpack.c.b16 %v2254, %v2252
        %v2271 = vpack.c.b16 %v2255, %v2253
        %2288 = vmatprep.subr.bf16.mxu0 %v2257
        %2289 = vmatpush1.bf16.msra.mxu0 %v2256
        %2290 = vmatprep.subr.bf16.mxu0 %v2259
        %2291 = vmatpush1.bf16.msra.mxu0 %v2258
        %2292 = vmatprep.subr.bf16.mxu0 %v2261
        %2293 = vmatpush1.bf16.msra.mxu0 %v2260
        %2294 = vmatprep.subr.bf16.mxu0 %v2263
        %2295 = vmatpush1.bf16.msra.mxu0 %v2262
        %2296 = vmatprep.subr.bf16.mxu0 %v2265
        %2297 = vmatpush1.bf16.msra.mxu0 %v2264
        %2298 = vmatprep.subr.bf16.mxu0 %v2267
        %2299 = vmatpush1.bf16.msra.mxu0 %v2266
        %2300 = vmatprep.subr.bf16.mxu0 %v2269
        %2301 = vmatpush1.bf16.msra.mxu0 %v2268
        %2302 = vmatprep.subr.bf16.mxu0 %v2271
        %2303 = vmatpush1.bf16.msra.mxu0 %v2270
        %2304 = vmatprep.subr.bf16.mxu0 0
        %2305 = vmatpush1.bf16.msra.mxu0 0
        %2306 = vmatprep.subr.bf16.mxu0 0
        %2307 = vmatpush1.bf16.msra.mxu0 0
        %2308 = vmatprep.subr.bf16.mxu0 0
        %2309 = vmatpush1.bf16.msra.mxu0 0
        %2310 = vmatprep.subr.bf16.mxu0 0
        %2311 = vmatpush1.bf16.msra.mxu0 0
        %2312 = vmatprep.subr.bf16.mxu0 0
        %2313 = vmatpush1.bf16.msra.mxu0 0
        %2314 = vmatprep.subr.bf16.mxu0 0
        %2315 = vmatpush1.bf16.msra.mxu0 0
        %2316 = vmatprep.subr.bf16.mxu0 0
        %2317 = vmatpush1.bf16.msra.mxu0 0
        %2318 = vmatprep.subr.bf16.mxu0 0
        %2319 = vmatpush1.bf16.msra.mxu0 0
        %2320 = vmatprep.mubr.bf16.mxu0 0
        %2321 = vmatmul.mubr.bf16.gmra.mrb[0].mxu0 %v2179
        %v2322 = vpop.f32.mrb[0].mxu0
        %v2323 = vadd.f32 %v2201, %v2322
        %v2324 = vpop.f32.mrb[0].mxu0
        %v2325 = vadd.f32 %v2205, %v2324
        %v2326 = vpop.f32.mrb[0].mxu0
        %v2327 = vadd.f32 %v2201, %v2326
        %v2328 = vpop.f32.mrb[0].mxu0
        %v2329 = vadd.f32 %v2205, %v2328
        %2330 = vdwg.mxu0
        %v2331 = vmul.f32 %v2323, 0.5
        %v2332 = vmul.f32 %v2325, 0.5
        %v2333 = vmul.f32 %v2327, 0.5
        %v2334 = vmul.f32 %v2329, 0.5
        %v2335 = vmul.f32 %v2323, 0.044715
        %v2336 = vmul.f32 %v2325, 0.044715
        %v2337 = vmul.f32 %v2327, 0.044715
        %v2338 = vmul.f32 %v2329, 0.044715
        %v2339 = vmul.f32 %v2335, %v2323
        %v2340 = vmul.f32 %v2336, %v2325
        %v2341 = vmul.f32 %v2337, %v2327
        %v2342 = vmul.f32 %v2338, %v2329
        %v2343 = vmul.f32 %v2339, %v2323
        %v2344 = vmul.f32 %v2340, %v2325
        %v2345 = vmul.f32 %v2341, %v2327
        %v2346 = vmul.f32 %v2342, %v2329
        %v2347 = vadd.f32 %v2323, %v2343
        %v2348 = vadd.f32 %v2325, %v2344
        %v2349 = vadd.f32 %v2327, %v2345
        %v2350 = vadd.f32 %v2329, %v2346
        %v2351 = vmul.f32 %v2347, 0.7978846
        %v2352 = vmul.f32 %v2348, 0.7978846
        %v2353 = vmul.f32 %v2349, 0.7978846
        %v2354 = vmul.f32 %v2350, 0.7978846
        %v2355 = vtanh.pop %v2351
        %v2356 = vtanh.pop %v2352
        %v2357 = vtanh.pop %v2353
        %v2358 = vtanh.pop %v2354
        %v2359 = vadd.f32 %v2355, 1.0
        %v2360 = vadd.f32 %v2356, 1.0
        %v2361 = vadd.f32 %v2357, 1.0
        %v2362 = vadd.f32 %v2358, 1.0
        %v2363 = vmul.f32 %v2331, %v2359
        %v2364 = vmul.f32 %v2332, %v2360
        %v2365 = vmul.f32 %v2333, %v2361
        %v2366 = vmul.f32 %v2334, %v2362
        %v2367 = vpack.c.bf16 %v2365, %v2363
        %v2368 = vpack.c.bf16 %v2366, %v2364
        %v2369 = vld [vmem:[%s784] sm:$0xf]
        %v2370 = vld [vmem:[%s784 + $0x4] sm:$0xf]
        %v2371 = vld [vmem:[%s784 + $0x8] sm:$0xf]
        %v2372 = vld [vmem:[%s784 + $0xc] sm:$0xf]
        %v2373 = vld [vmem:[%s784 + $0x10] sm:$0xf]
        %v2374 = vld [vmem:[%s784 + $0x14] sm:$0xf]
        %v2375 = vld [vmem:[%s784 + $0x18] sm:$0xf]
        %v2376 = vld [vmem:[%s784 + $0x1c] sm:$0xf]
        %v2377 = vld [vmem:[%s784 + $0x20] sm:$0xf]
        %v2378 = vld [vmem:[%s784 + $0x24] sm:$0xf]
        %v2379 = vld [vmem:[%s784 + $0x28] sm:$0xf]
        %v2380 = vld [vmem:[%s784 + $0x2c] sm:$0xf]
        %v2381 = vld [vmem:[%s784 + $0x30] sm:$0xf]
        %v2382 = vld [vmem:[%s784 + $0x34] sm:$0xf]
        %v2383 = vld [vmem:[%s784 + $0x38] sm:$0xf]
        %v2384 = vld [vmem:[%s784 + $0x3c] sm:$0xf]
        %v2385 = vld [vmem:[%s784 + $0x40] sm:$0xf]
        %v2386 = vld [vmem:[%s784 + $0x44] sm:$0xf]
        %v2387 = vld [vmem:[%s784 + $0x48] sm:$0xf]
        %v2388 = vld [vmem:[%s784 + $0x4c] sm:$0xf]
        %v2389 = vld [vmem:[%s784 + $0x50] sm:$0xf]
        %v2390 = vld [vmem:[%s784 + $0x54] sm:$0xf]
        %v2391 = vld [vmem:[%s784 + $0x58] sm:$0xf]
        %v2392 = vld [vmem:[%s784 + $0x5c] sm:$0xf]
        %v2393 = vld [vmem:[%s784 + $0x60] sm:$0xf]
        %v2394 = vld [vmem:[%s784 + $0x64] sm:$0xf]
        %v2395 = vld [vmem:[%s784 + $0x68] sm:$0xf]
        %v2396 = vld [vmem:[%s784 + $0x6c] sm:$0xf]
        %v2397 = vld [vmem:[%s784 + $0x70] sm:$0xf]
        %v2398 = vld [vmem:[%s784 + $0x74] sm:$0xf]
        %v2399 = vld [vmem:[%s784 + $0x78] sm:$0xf]
        %v2400 = vld [vmem:[%s784 + $0x7c] sm:$0xf]
        %v2401 = vld [vmem:[%s787] sm:$0x1]
        %v2403 = vlaneseq
        %v2404 = vshrl.u32 %v2403, 7
        %v2405 = vsub.s32 0, %v2404
        %v2406 = vrot.slane %v2401, %v2405
        %v2440 = vunpack.c.l.b16 %v2369
        %v2441 = vunpack.c.l.b16 %v2370
        %v2442 = vunpack.c.l.b16 %v2371
        %v2443 = vunpack.c.l.b16 %v2372
        %v2444 = vunpack.c.l.b16 %v2373
        %v2445 = vunpack.c.l.b16 %v2374
        %v2446 = vunpack.c.l.b16 %v2375
        %v2447 = vunpack.c.l.b16 %v2376
        %v2448 = vunpack.c.l.b16 %v2377
        %v2449 = vunpack.c.l.b16 %v2378
        %v2450 = vunpack.c.l.b16 %v2379
        %v2451 = vunpack.c.l.b16 %v2380
        %v2452 = vunpack.c.l.b16 %v2381
        %v2453 = vunpack.c.l.b16 %v2382
        %v2454 = vunpack.c.l.b16 %v2383
        %v2455 = vunpack.c.l.b16 %v2384
        %v2456 = vunpack.c.l.b16 %v2385
        %v2457 = vunpack.c.l.b16 %v2386
        %v2458 = vunpack.c.l.b16 %v2387
        %v2459 = vunpack.c.l.b16 %v2388
        %v2460 = vunpack.c.l.b16 %v2389
        %v2461 = vunpack.c.l.b16 %v2390
        %v2462 = vunpack.c.l.b16 %v2391
        %v2463 = vunpack.c.l.b16 %v2392
        %v2464 = vunpack.c.l.b16 %v2393
        %v2465 = vunpack.c.l.b16 %v2394
        %v2466 = vunpack.c.l.b16 %v2395
        %v2467 = vunpack.c.l.b16 %v2396
        %v2468 = vunpack.c.l.b16 %v2397
        %v2469 = vunpack.c.l.b16 %v2398
        %v2470 = vunpack.c.l.b16 %v2399
        %v2471 = vunpack.c.l.b16 %v2400
        %v2472 = vpack.c.b16 %v2441, %v2440
        %v2473 = vpack.c.b16 %v2443, %v2442
        %v2474 = vpack.c.b16 %v2445, %v2444
        %v2475 = vpack.c.b16 %v2447, %v2446
        %v2476 = vpack.c.b16 %v2449, %v2448
        %v2477 = vpack.c.b16 %v2451, %v2450
        %v2478 = vpack.c.b16 %v2453, %v2452
        %v2479 = vpack.c.b16 %v2455, %v2454
        %v2480 = vpack.c.b16 %v2457, %v2456
        %v2481 = vpack.c.b16 %v2459, %v2458
        %v2482 = vpack.c.b16 %v2461, %v2460
        %v2483 = vpack.c.b16 %v2463, %v2462
        %v2484 = vpack.c.b16 %v2465, %v2464
        %v2485 = vpack.c.b16 %v2467, %v2466
        %v2486 = vpack.c.b16 %v2469, %v2468
        %v2487 = vpack.c.b16 %v2471, %v2470
        %2504 = vmatprep.subr.bf16.mxu0 0
        %2505 = vmatpush1.bf16.msra.mxu0 %v2472
        %2506 = vmatprep.subr.bf16.mxu0 0
        %2507 = vmatpush1.bf16.msra.mxu0 %v2473
        %2508 = vmatprep.subr.bf16.mxu0 0
        %2509 = vmatpush1.bf16.msra.mxu0 %v2474
        %2510 = vmatprep.subr.bf16.mxu0 0
        %2511 = vmatpush1.bf16.msra.mxu0 %v2475
        %2512 = vmatprep.subr.bf16.mxu0 0
        %2513 = vmatpush1.bf16.msra.mxu0 %v2476
        %2514 = vmatprep.subr.bf16.mxu0 0
        %2515 = vmatpush1.bf16.msra.mxu0 %v2477
        %2516 = vmatprep.subr.bf16.mxu0 0
        %2517 = vmatpush1.bf16.msra.mxu0 %v2478
        %2518 = vmatprep.subr.bf16.mxu0 0
        %2519 = vmatpush1.bf16.msra.mxu0 %v2479
        %2520 = vmatprep.subr.bf16.mxu0 0
        %2521 = vmatpush1.bf16.msra.mxu0 %v2480
        %2522 = vmatprep.subr.bf16.mxu0 0
        %2523 = vmatpush1.bf16.msra.mxu0 %v2481
        %2524 = vmatprep.subr.bf16.mxu0 0
        %2525 = vmatpush1.bf16.msra.mxu0 %v2482
        %2526 = vmatprep.subr.bf16.mxu0 0
        %2527 = vmatpush1.bf16.msra.mxu0 %v2483
        %2528 = vmatprep.subr.bf16.mxu0 0
        %2529 = vmatpush1.bf16.msra.mxu0 %v2484
        %2530 = vmatprep.subr.bf16.mxu0 0
        %2531 = vmatpush1.bf16.msra.mxu0 %v2485
        %2532 = vmatprep.subr.bf16.mxu0 0
        %2533 = vmatpush1.bf16.msra.mxu0 %v2486
        %2534 = vmatprep.subr.bf16.mxu0 0
        %2535 = vmatpush1.bf16.msra.mxu0 %v2487
        %2536 = vmatprep.mubr.bf16.mxu0 %v2368
        %2537 = vmatmul.mubr.bf16.gmra.mrb[0].mxu0 %v2367
        %v2538 = vpop.f32.mrb[0].mxu0
        %v2539 = vadd.f32 %v2406, %v2538
        %v2540 = vpop.f32.mrb[0].mxu0
        %v2541 = vpop.f32.mrb[0].mxu0
        %v2542 = vadd.f32 %v2406, %v2541
        %v2543 = vpop.f32.mrb[0].mxu0
        %2544 = vdwg.mxu0
        %v2545 = vadd.f32 %v2177, %v2539
        %v2546 = vadd.f32 %v2178, %v2542
        %v2547 = vld [vmem:[%s790] sm:$0x1]
        %v2548 = vld [vmem:[%s793] sm:$0x1]
        %2549 = vadd.xlane.f32.xlu0 %v2545
        %v2550 = vpop.xlane.xlu0 %2549
        %2551 = vadd.xlane.f32.xlu0 %v2546
        %v2552 = vpop.xlane.xlu0 %2551
        %v2553 = vmul.f32 %v2550, %v2144
        %v2554 = vmul.f32 %v2552, %v2144
        %v2555 = vsub.f32 %v2545, %v2553
        %v2556 = vsub.f32 %v2546, %v2554
        %v2557 = vmul.f32 %v2555, %v2555
        %v2558 = vmul.f32 %v2556, %v2556
        %2559 = vadd.xlane.f32.xlu0 %v2557
        %v2560 = vpop.xlane.xlu0 %2559
        %2561 = vadd.xlane.f32.xlu0 %v2558
        %v2562 = vpop.xlane.xlu0 %2561
        %v2563 = vmul.f32 %v2560, %v2144
        %v2564 = vmul.f32 %v2562, %v2144
        %v2565 = vadd.f32 %v2563, 1e-05
        %v2566 = vadd.f32 %v2564, 1e-05
        %v2567 = vrsqrt.pop %v2565
        %v2568 = vrsqrt.pop %v2566
        %v2569 = vmul.f32 %v2555, %v2567
        %v2570 = vmul.f32 %v2556, %v2568
        %v2572 = vlaneseq
        %v2573 = vshrl.u32 %v2572, 7
        %v2574 = vsub.s32 0, %v2573
        %v2575 = vrot.slane %v2547, %v2574
        %v2577 = vmul.f32 %v2569, %v2575
        %v2578 = vmul.f32 %v2570, %v2575
        %v2580 = vlaneseq
        %v2581 = vshrl.u32 %v2580, 7
        %v2582 = vsub.s32 0, %v2581
        %v2583 = vrot.slane %v2548, %v2582
        %v2585 = vadd.f32 %v2577, %v2583
        %v2586 = vadd.f32 %v2578, %v2583
        %v2587 = vpack.c.bf16 %v2586, %v2585
        %2588 = vst [vmem:[#allocation2] sm:$0xff] %v2587
        %p2589 = scmp.eq.s32.totalorder %s36, 1
        // Predicated region
        $region109: #{roberta_class_forward.1} parent=91 // pred_check
          %p2590 = pneg %p2589
        $region110: #{roberta_class_forward.1} parent=91 // pred_check_branch
          %2592 = sbr.rel (%p2590) target = $region112
        $region111: #{roberta_class_forward.1} parent=91 // pred_region
          %v2593 = vpack.c.bf16 %v2585, %v2585
          %v2594 = vpack.c.bf16 %v2586, %v2586
          %v2595 = vld [vmem:[#allocation8] sm:$0xf]
          %v2596 = vld [vmem:[#allocation8 + $0x4] sm:$0xf]
          %v2597 = vld [vmem:[#allocation8 + $0x8] sm:$0xf]
          %v2598 = vld [vmem:[#allocation8 + $0xc] sm:$0xf]
          %v2599 = vld [vmem:[#allocation8 + $0x10] sm:$0xf]
          %v2600 = vld [vmem:[#allocation8 + $0x14] sm:$0xf]
          %v2601 = vld [vmem:[#allocation8 + $0x18] sm:$0xf]
          %v2602 = vld [vmem:[#allocation8 + $0x1c] sm:$0xf]
          %v2603 = vld [vmem:[#allocation8 + $0x20] sm:$0xf]
          %v2604 = vld [vmem:[#allocation8 + $0x24] sm:$0xf]
          %v2605 = vld [vmem:[#allocation8 + $0x28] sm:$0xf]
          %v2606 = vld [vmem:[#allocation8 + $0x2c] sm:$0xf]
          %v2607 = vld [vmem:[#allocation8 + $0x30] sm:$0xf]
          %v2608 = vld [vmem:[#allocation8 + $0x34] sm:$0xf]
          %v2609 = vld [vmem:[#allocation8 + $0x38] sm:$0xf]
          %v2610 = vld [vmem:[#allocation8 + $0x3c] sm:$0xf]
          %v2611 = vld [vmem:[%s15] sm:$0x1]
          %v2613 = vlaneseq
          %v2614 = vshrl.u32 %v2613, 7
          %v2615 = vsub.s32 0, %v2614
          %v2616 = vrot.slane %v2611, %v2615
          %v2620 = vunpack.c.l.b16 %v2593
          %v2621 = vunpack.c.l.b16 %v2594
          %v2622 = vrot.slane %v2621, 7
          %vm2623 = vcmask 1041409
          %v2624 = vsel %vm2623, %v2622, %v2620
          %v2625 = vpack.c.b16 %v2624, %v2624
          %v2643 = vunpack.c.l.b16 %v2595
          %v2644 = vunpack.c.l.b16 %v2596
          %v2645 = vunpack.c.l.b16 %v2597
          %v2646 = vunpack.c.l.b16 %v2598
          %v2647 = vunpack.c.l.b16 %v2599
          %v2648 = vunpack.c.l.b16 %v2600
          %v2649 = vunpack.c.l.b16 %v2601
          %v2650 = vunpack.c.l.b16 %v2602
          %v2651 = vunpack.c.l.b16 %v2603
          %v2652 = vunpack.c.l.b16 %v2604
          %v2653 = vunpack.c.l.b16 %v2605
          %v2654 = vunpack.c.l.b16 %v2606
          %v2655 = vunpack.c.l.b16 %v2607
          %v2656 = vunpack.c.l.b16 %v2608
          %v2657 = vunpack.c.l.b16 %v2609
          %v2658 = vunpack.c.l.b16 %v2610
          %v2659 = vpack.c.b16 %v2644, %v2643
          %v2660 = vpack.c.b16 %v2646, %v2645
          %v2661 = vpack.c.b16 %v2648, %v2647
          %v2662 = vpack.c.b16 %v2650, %v2649
          %v2663 = vpack.c.b16 %v2652, %v2651
          %v2664 = vpack.c.b16 %v2654, %v2653
          %v2665 = vpack.c.b16 %v2656, %v2655
          %v2666 = vpack.c.b16 %v2658, %v2657
          %2675 = vmatprep.subr.bf16.mxu0 0
          %2676 = vmatpush1.bf16.msra.mxu0 %v2659
          %2677 = vmatprep.subr.bf16.mxu0 0
          %2678 = vmatpush1.bf16.msra.mxu0 %v2660
          %2679 = vmatprep.subr.bf16.mxu0 0
          %2680 = vmatpush1.bf16.msra.mxu0 %v2661
          %2681 = vmatprep.subr.bf16.mxu0 0
          %2682 = vmatpush1.bf16.msra.mxu0 %v2662
          %2683 = vmatprep.subr.bf16.mxu0 0
          %2684 = vmatpush1.bf16.msra.mxu0 %v2663
          %2685 = vmatprep.subr.bf16.mxu0 0
          %2686 = vmatpush1.bf16.msra.mxu0 %v2664
          %2687 = vmatprep.subr.bf16.mxu0 0
          %2688 = vmatpush1.bf16.msra.mxu0 %v2665
          %2689 = vmatprep.subr.bf16.mxu0 0
          %2690 = vmatpush1.bf16.msra.mxu0 %v2666
          %2691 = vmatprep.subr.bf16.mxu0 0
          %2692 = vmatpush1.bf16.msra.mxu0 0
          %2693 = vmatprep.subr.bf16.mxu0 0
          %2694 = vmatpush1.bf16.msra.mxu0 0
          %2695 = vmatprep.subr.bf16.mxu0 0
          %2696 = vmatpush1.bf16.msra.mxu0 0
          %2697 = vmatprep.subr.bf16.mxu0 0
          %2698 = vmatpush1.bf16.msra.mxu0 0
          %2699 = vmatprep.subr.bf16.mxu0 0
          %2700 = vmatpush1.bf16.msra.mxu0 0
          %2701 = vmatprep.subr.bf16.mxu0 0
          %2702 = vmatpush1.bf16.msra.mxu0 0
          %2703 = vmatprep.subr.bf16.mxu0 0
          %2704 = vmatpush1.bf16.msra.mxu0 0
          %2705 = vmatprep.subr.bf16.mxu0 0
          %2706 = vmatpush1.bf16.msra.mxu0 0
          %2707 = vmatprep.mubr.bf16.mxu0 0
          %2708 = vmatmul.mubr.bf16.gmra.mrb[0].mxu0 %v2625
          %v2709 = vpop.f32.mrb[0].mxu0
          %v2710 = vadd.f32 %v2616, %v2709
          %v2711 = vpop.f32.mrb[0].mxu0
          %v2712 = vpop.f32.mrb[0].mxu0
          %v2713 = vpop.f32.mrb[0].mxu0
          %2714 = vdwg.mxu0
          %v2715 = vmax.f32 %v2710, 0.0
          %v2716 = vpack.c.bf16 %v2715, %v2715
          %v2717 = vld [vmem:[%s16] sm:$0xf]
          %v2718 = vld [vmem:[%s16 + $0x4] sm:$0xf]
          %v2719 = vld [vmem:[%s16 + $0x8] sm:$0xf]
          %v2720 = vld [vmem:[%s16 + $0xc] sm:$0xf]
          %v2721 = vld [vmem:[%s16 + $0x10] sm:$0xf]
          %v2722 = vld [vmem:[%s16 + $0x14] sm:$0xf]
          %v2723 = vld [vmem:[%s16 + $0x18] sm:$0xf]
          %v2724 = vld [vmem:[%s16 + $0x1c] sm:$0xf]
          %v2725 = vld [vmem:[%s16 + $0x20] sm:$0xf]
          %v2726 = vld [vmem:[%s16 + $0x24] sm:$0xf]
          %v2727 = vld [vmem:[%s16 + $0x28] sm:$0xf]
          %v2728 = vld [vmem:[%s16 + $0x2c] sm:$0xf]
          %v2729 = vld [vmem:[%s16 + $0x30] sm:$0xf]
          %v2730 = vld [vmem:[%s16 + $0x34] sm:$0xf]
          %v2731 = vld [vmem:[%s16 + $0x38] sm:$0xf]
          %v2732 = vld [vmem:[%s16 + $0x3c] sm:$0xf]
          %v2733 = vld [vmem:[%s17] sm:$0x1]
          %v2735 = vlaneseq
          %v2736 = vshrl.u32 %v2735, 7
          %v2737 = vsub.s32 0, %v2736
          %v2738 = vrot.slane %v2733, %v2737
          %v2756 = vunpack.c.l.b16 %v2717
          %v2757 = vunpack.c.l.b16 %v2718
          %v2758 = vunpack.c.l.b16 %v2719
          %v2759 = vunpack.c.l.b16 %v2720
          %v2760 = vunpack.c.l.b16 %v2721
          %v2761 = vunpack.c.l.b16 %v2722
          %v2762 = vunpack.c.l.b16 %v2723
          %v2763 = vunpack.c.l.b16 %v2724
          %v2764 = vunpack.c.l.b16 %v2725
          %v2765 = vunpack.c.l.b16 %v2726
          %v2766 = vunpack.c.l.b16 %v2727
          %v2767 = vunpack.c.l.b16 %v2728
          %v2768 = vunpack.c.l.b16 %v2729
          %v2769 = vunpack.c.l.b16 %v2730
          %v2770 = vunpack.c.l.b16 %v2731
          %v2771 = vunpack.c.l.b16 %v2732
          %v2772 = vpack.c.b16 %v2757, %v2756
          %v2773 = vpack.c.b16 %v2759, %v2758
          %v2774 = vpack.c.b16 %v2761, %v2760
          %v2775 = vpack.c.b16 %v2763, %v2762
          %v2776 = vpack.c.b16 %v2765, %v2764
          %v2777 = vpack.c.b16 %v2767, %v2766
          %v2778 = vpack.c.b16 %v2769, %v2768
          %v2779 = vpack.c.b16 %v2771, %v2770
          %2788 = vmatprep.subr.bf16.mxu0 0
          %2789 = vmatpush1.bf16.msra.mxu0 %v2772
          %2790 = vmatprep.subr.bf16.mxu0 0
          %2791 = vmatpush1.bf16.msra.mxu0 %v2773
          %2792 = vmatprep.subr.bf16.mxu0 0
          %2793 = vmatpush1.bf16.msra.mxu0 %v2774
          %2794 = vmatprep.subr.bf16.mxu0 0
          %2795 = vmatpush1.bf16.msra.mxu0 %v2775
          %2796 = vmatprep.subr.bf16.mxu0 0
          %2797 = vmatpush1.bf16.msra.mxu0 %v2776
          %2798 = vmatprep.subr.bf16.mxu0 0
          %2799 = vmatpush1.bf16.msra.mxu0 %v2777
          %2800 = vmatprep.subr.bf16.mxu0 0
          %2801 = vmatpush1.bf16.msra.mxu0 %v2778
          %2802 = vmatprep.subr.bf16.mxu0 0
          %2803 = vmatpush1.bf16.msra.mxu0 %v2779
          %2804 = vmatprep.subr.bf16.mxu0 0
          %2805 = vmatpush1.bf16.msra.mxu0 0
          %2806 = vmatprep.subr.bf16.mxu0 0
          %2807 = vmatpush1.bf16.msra.mxu0 0
          %2808 = vmatprep.subr.bf16.mxu0 0
          %2809 = vmatpush1.bf16.msra.mxu0 0
          %2810 = vmatprep.subr.bf16.mxu0 0
          %2811 = vmatpush1.bf16.msra.mxu0 0
          %2812 = vmatprep.subr.bf16.mxu0 0
          %2813 = vmatpush1.bf16.msra.mxu0 0
          %2814 = vmatprep.subr.bf16.mxu0 0
          %2815 = vmatpush1.bf16.msra.mxu0 0
          %2816 = vmatprep.subr.bf16.mxu0 0
          %2817 = vmatpush1.bf16.msra.mxu0 0
          %2818 = vmatprep.subr.bf16.mxu0 0
          %2819 = vmatpush1.bf16.msra.mxu0 0
          %2820 = vmatprep.mubr.bf16.mxu0 0
          %2821 = vmatmul.mubr.bf16.gmra.mrb[0].mxu0 %v2716
          %v2822 = vpop.f32.mrb[0].mxu0
          %v2823 = vadd.f32 %v2738, %v2822
          %v2824 = vpop.f32.mrb[0].mxu0
          %v2825 = vpop.f32.mrb[0].mxu0
          %v2826 = vpop.f32.mrb[0].mxu0
          %2827 = vdwg.mxu0
          %2828 = vst [vmem:[#allocation9] sm:$0x3] %v2823
        $region112: #{roberta_class_forward.1} parent=91 // pred_fallthru
          _
        // Predicated region
        $region113: #{roberta_class_forward.1} parent=91 // pred_check
          %p2829 = pneg %p487
        $region114: #{roberta_class_forward.1} parent=91 // pred_check_branch
          %2831 = sbr.rel (%p2829) target = $region116
        $region115: #{roberta_class_forward.1} parent=91 // pred_region
          %s2833 = ssub.s32 32, 32
          %2834 = vsyncadd [#allocation5], %s2833
          %s2836 = sshll.u32 [#allocation9], 4
          %s2837 = int_to_ptr.vmem [resolvable:$true] %s2836
          %2839 = dma.vmem_to_hbm [thread:$0]  %s2837, 32, %s18, [#allocation5]
        $region116: #{roberta_class_forward.1} parent=91 // pred_fallthru
          _
        // Predicated region
        $region117: #{roberta_class_forward.1} parent=91 // pred_check
          %p2840 = pneg %p487
        $region118: #{roberta_class_forward.1} parent=91 // pred_check_branch
          %2842 = sbr.rel (%p2840) target = $region120
        $region119: #{roberta_class_forward.1} parent=91 // pred_region
          %2843 = dma.done [#allocation5], 32
        $region120: #{roberta_class_forward.1} parent=91 // pred_fallthru
          _
      $region92: #{roberta_class_forward.1} parent=5 // pred_fallthru
        _
      %p2844 = scmp.le.s32.totalorder 2, %s31
      // Predicated region
      $region121: #{roberta_class_forward.1} parent=5 // pred_check
        %p2845 = pneg %p2844
      $region122: #{roberta_class_forward.1} parent=5 // pred_check_branch
        %2847 = sbr.rel (%p2845) target = $region124
      $region123: #{roberta_class_forward.1} parent=5 // pred_region
        %s2848 = ssub.s32 %s31, 2
      $region124: #{roberta_class_forward.1} parent=5 // pred_fallthru
        _
    $region6: #{roberta_class_forward.1} parent=1 // loop_footer
      %s35 = sadd.s32 1, %s31
    $region7: #{roberta_class_forward.1} parent=1 // loop_footer_branch
      %30 = sbr.rel target = $region3
    $region8: #{roberta_class_forward.1} parent=1 // loop_exit
      _
    %2849 = vsyncpa [#allocation4], 1
    %s2850 = scalar_lea.sflag [#allocation4], 1
    %2851 = vsyncpa %s2850, 1
    %2852 = vsyncpa [#allocation7], 1
    %s2853 = scalar_lea.sflag [#allocation7], 1
    %2854 = vsyncpa %s2853, 1
    %2855 = vsyncpa [#allocation5], 1
    %s2856 = scalar_lea.sflag [#allocation5], 1
    %2857 = vsyncpa %s2856, 1

</llo_original>
